<compile_context>
chip_gen: v7x
topology: tpu7x:2x2x1
jax: 0.10.0
libtpu: 0.0.40
codegen_flags: <defaults>
</compile_context>

<pallas_src>
import numpy as np
import jax
import jax.numpy as jnp
from jax import lax
from jax.experimental import pallas as pl
from jax.experimental.pallas import tpu as pltpu


# ---------------------------------------------------------------------------
# Host-side tap tables: flat lane offsets + zero-padding boundary masks
# ---------------------------------------------------------------------------
def _tap_offsets_and_masks(D, H, W, NB):
    """tap order = kd-major, kh, kw (kd=dd+1, ...); masks shape (27, NB*D*H*W)."""
    M = D * H * W
    idx = np.arange(M)
    d_i = idx // (H * W)
    h_i = (idx // W) % H
    w_i = idx % W
    offs, masks = [], []
    for dd in (-1, 0, 1):
        for dh in (-1, 0, 1):
            for dw in (-1, 0, 1):
                ok = np.ones(M, dtype=bool)
                for delta, pos, size in ((dd, d_i, D), (dh, h_i, H), (dw, w_i, W)):
                    if delta < 0:
                        ok &= pos >= 1
                    elif delta > 0:
                        ok &= pos <= size - 2
                offs.append(dd * H * W + dh * W + dw)
                masks.append(ok)
    masks = np.stack(masks).astype(np.float32)        # (27, M)
    masks = np.tile(masks, (1, NB))                   # repeat per batch element
    return tuple(offs), jnp.asarray(masks)


# ---------------------------------------------------------------------------
# Fused C3 kernel (one grid step == one batch group, lane axis = NB*D*H*W)
# ---------------------------------------------------------------------------
def _make_c3_kernel(n_b, offs, cp, L, shortcut, mxu_dtype):
    f32 = jnp.float32

    def kernel(x_ref, mask_ref,
               w1_ref, s1_ref, b1_ref,            # C3.cv1   (padded to cp)
               w2_ref, s2_ref, b2_ref,            # C3.cv2   (bypass branch)
               wb1_ref, sb1_ref, bb1_ref,         # Bottleneck.cv1 (stacked over n)
               wstk_ref, sb2_ref, bb2_ref,        # Bottleneck.cv2, tap-stacked
               w3_ref, s3_ref, b3_ref,            # C3.cv3   (merged, concat-free)
               o_ref,
               stk_ref, cat_ref):                 # VMEM scratch

        def cbs(w, vq, s, b):                      # 1x1x1 conv + folded BN + SiLU
            y = jnp.dot(w, vq, preferred_element_type=f32)
            y = y * s + b
            return y * jax.nn.sigmoid(y)

        xq = x_ref[...].astype(mxu_dtype)          # (C1, L) cast once, reused
        a = cbs(w1_ref[...], xq, s1_ref[...], b1_ref[...])        # (cp, L) f32
        bypass = cbs(w2_ref[...], xq, s2_ref[...], b2_ref[...])   # (cp, L) f32

        # ----- bottleneck stack (statically unrolled) ------------------------
        m_feat = a
        for i in range(n_b):
            t = cbs(wb1_ref[i], m_feat.astype(mxu_dtype),
                    sb1_ref[i], bb1_ref[i])                        # (cp, L) f32

            # Build the tap-stacked activation (27*cp, L) in one VMEM pass:
            # XLU roll + host-precomputed boundary mask, aligned sublane stores.
            for tap, off in enumerate(offs):
                sh = t if off == 0 else pltpu.roll(t, (-off) % L, axis=1)
                stk_ref[tap * cp:(tap + 1) * cp, :] = sh * mask_ref[tap:tap + 1, :]

            # Single MXU matmul with K = 27*cp instead of 27 K=cp matmuls.
            y = jnp.dot(wstk_ref[i], stk_ref[...].astype(mxu_dtype),
                        preferred_element_type=f32)
            y = y * sb2_ref[i] + bb2_ref[i]                        # folded BN
            y = y * jax.nn.sigmoid(y)                              # SiLU
            m_feat = m_feat + y if shortcut else y                 # residual add

        # ----- cv3 over the in-VMEM "concat": one K = 2*cp matmul -----------
        cat_ref[0:cp, :] = m_feat
        cat_ref[cp:2 * cp, :] = bypass
        y3 = jnp.dot(w3_ref[...], cat_ref[...].astype(mxu_dtype),
                     preferred_element_type=f32)
        y3 = y3 * s3_ref[...] + b3_ref[...]
        o_ref[...] = (y3 * jax.nn.sigmoid(y3)).astype(o_ref.dtype)

    return kernel


def c3_forward(x_ncdhw, p, *, shortcut=True, mxu_dtype=jnp.bfloat16):
    """C3 forward.  x_ncdhw: (N, C1, D, H, W) float32 (PyTorch layout)."""
    N, C1, D, H, W = x_ncdhw.shape
    M = D * H * W
    C2 = p["w3"].shape[0]
    c_ = p["w1"].shape[0]
    n_b = p["wb1"].shape[0]
    cp = max(8, ((c_ + 7) // 8) * 8)               # sublane-aligned bottleneck width

    # ----- batch grouping: widen the lane axis, keep >= 2 grid steps --------
    nb_cap = min(N, max(1, 4096 // M))
    if N >= 2:
        nb_cap = max(1, min(nb_cap, N // 2))
    NB = next(c for c in range(nb_cap, 0, -1) if N % c == 0)
    L = NB * M
    grid = (N // NB,)

    offs, masks = _tap_offsets_and_masks(D, H, W, NB)

    # ----- host-side weight packing (zero-pad to cp, tap-stack, cast bf16) --
    def pad_to(a, axis, size):
        padw = [(0, 0)] * a.ndim
        padw[axis] = (0, size - a.shape[axis])
        return jnp.pad(a, padw)

    wd = mxu_dtype
    w1p = pad_to(p["w1"], 0, cp).astype(wd)
    s1p, b1p = pad_to(p["s1"], 0, cp), pad_to(p["b1"], 0, cp)
    w2p = pad_to(p["w2"], 0, cp).astype(wd)
    s2p, b2p = pad_to(p["s2"], 0, cp), pad_to(p["b2"], 0, cp)
    wb1p = pad_to(pad_to(p["wb1"], 1, cp), 2, cp).astype(wd)          # (n, cp, cp)
    sb1p, bb1p = pad_to(p["sb1"], 1, cp), pad_to(p["bb1"], 1, cp)     # (n, cp, 1)
    wb2p = pad_to(pad_to(p["wb2"], 1, cp), 2, cp)                     # (n, cp, cp, 3,3,3)
    # (n, cout, kd, kh, kw, cin) -> (n, cp, 27*cp); tap order matches `offs`.
    wstk = jnp.transpose(wb2p, (0, 1, 3, 4, 5, 2)).reshape(n_b, cp, 27 * cp).astype(wd)
    sb2p, bb2p = pad_to(p["sb2"], 1, cp), pad_to(p["bb2"], 1, cp)
    w3p = jnp.concatenate([pad_to(p["w3"][:, :c_], 1, cp),
                           pad_to(p["w3"][:, c_:], 1, cp)], axis=1).astype(wd)
    s3, b3 = p["s3"], p["b3"]

    # Lane-dense layout: (C1, N*M), lane index = b*M + (d*H*W + h*W + w).
    x2 = jnp.reshape(jnp.transpose(x_ncdhw.reshape(N, C1, M), (1, 0, 2)), (C1, N * M))

    wargs = (w1p, s1p, b1p, w2p, s2p, b2p, wb1p, sb1p, bb1p,
             wstk, sb2p, bb2p, w3p, s3, b3)

    def rep_spec(a):
        nd = a.ndim
        return pl.BlockSpec(a.shape, lambda i, _nd=nd: (0,) * _nd)

    # Generation-aware VMEM budget (v5e/v6e: 128 MiB physical, v7x: 64 MiB).
    try:
        vmem_cap = int(pltpu.get_tpu_info().vmem_capacity_bytes)
    except Exception:
        vmem_cap = 64 * 1024 * 1024
    vmem_limit = int(min(max(vmem_cap * 3 // 4, 32 * 1024 * 1024), 112 * 1024 * 1024))

    out = pl.pallas_call(
        _make_c3_kernel(n_b, offs, cp, L, shortcut, mxu_dtype),
        out_shape=jax.ShapeDtypeStruct((C2, N * M), x_ncdhw.dtype),
        grid=grid,
        in_specs=[pl.BlockSpec((C1, L), lambda i: (0, i)),   # activations
                  rep_spec(masks)]                           # halo masks
                 + [rep_spec(w) for w in wargs],             # weights / BN affine
        out_specs=pl.BlockSpec((C2, L), lambda i: (0, i)),
        scratch_shapes=[pltpu.VMEM((27 * cp, L), jnp.float32),   # tap stack
                        pltpu.VMEM((2 * cp, L), jnp.float32)],   # cv3 "concat"
        compiler_params=pltpu.CompilerParams(
            dimension_semantics=("parallel",),
            vmem_limit_bytes=vmem_limit),
    )(x2, masks, *wargs)

    return jnp.transpose(out.reshape(C2, N, M), (1, 0, 2)).reshape(N, C2, D, H, W)


# ---------------------------------------------------------------------------
# Parameter construction (deterministic synthetic weights, BN folded)
# ---------------------------------------------------------------------------
def _fold_bn(gamma, beta, mean, var, eps=1e-5):
    scale = gamma / jnp.sqrt(var + eps)
    bias = beta - mean * scale
    return scale[:, None], bias[:, None]          # (C, 1) for (C, L) broadcast


def _conv_bn_params(key, cin, cout, k):
    ks = jax.random.split(key, 5)
    if k == 1:
        w = 0.3 * jax.random.normal(ks[0], (cout, cin), jnp.float32)
    else:
        w = 0.2 * jax.random.normal(ks[0], (cout, cin, k, k, k), jnp.float32)
    gamma = 1.0 + 0.1 * jax.random.normal(ks[1], (cout,), jnp.float32)
    beta = 0.1 * jax.random.normal(ks[2], (cout,), jnp.float32)
    mean = 0.1 * jax.random.normal(ks[3], (cout,), jnp.float32)
    var = 0.5 + jax.random.uniform(ks[4], (cout,), jnp.float32)
    s, b = _fold_bn(gamma, beta, mean, var)
    return w, s, b


def make_c3_params(c1, c2, n, key, e=0.5):
    c_ = int(c2 * e)
    keys = jax.random.split(key, 3 + 2 * n)
    w1, s1, b1 = _conv_bn_params(keys[0], c1, c_, 1)        # C3.cv1
    w2, s2, b2 = _conv_bn_params(keys[1], c1, c_, 1)        # C3.cv2
    w3, s3, b3 = _conv_bn_params(keys[2], 2 * c_, c2, 1)    # C3.cv3
    wb1, sb1, bb1, wb2, sb2, bb2 = [], [], [], [], [], []
    for i in range(n):                                      # Bottlenecks, e=1.0
        wa, sa, ba = _conv_bn_params(keys[3 + 2 * i], c_, c_, 1)
        wc, sc, bc = _conv_bn_params(keys[4 + 2 * i], c_, c_, 3)
        wb1.append(wa); sb1.append(sa); bb1.append(ba)
        wb2.append(wc); sb2.append(sc); bb2.append(bc)
    return dict(w1=w1, s1=s1, b1=b1, w2=w2, s2=s2, b2=b2,
                wb1=jnp.stack(wb1), sb1=jnp.stack(sb1), bb1=jnp.stack(bb1),
                wb2=jnp.stack(wb2), sb2=jnp.stack(sb2), bb2=jnp.stack(bb2),
                w3=w3, s3=s3, b3=b3)


# ---------------------------------------------------------------------------
# Pure-JAX reference (mirrors the PyTorch C3 forward with folded BN).
# `mxu_dtype` rounds both matmul operands through the kernel's MXU input dtype
# (accumulation stays f32), so the comparison isolates kernel correctness.
# ---------------------------------------------------------------------------
def c3_reference(x, p, *, shortcut=True, mxu_dtype=jnp.float32):
    hp = lax.Precision.HIGHEST
    q = lambda a: a.astype(mxu_dtype).astype(jnp.float32)

    def bnact(y, s, b):
        y = (y * s[:, 0][None, :, None, None, None]
             + b[:, 0][None, :, None, None, None])
        return y * jax.nn.sigmoid(y)

    def cbs1(v, w, s, b):
        y = jnp.einsum("oc,ncdhw->nodhw", q(w), q(v), precision=hp)
        return bnact(y, s, b)

    def cbs3(v, w, s, b):
        y = lax.conv_general_dilated(
            q(v), q(w), window_strides=(1, 1, 1),
            padding=((1, 1), (1, 1), (1, 1)),
            dimension_numbers=("NCDHW", "OIDHW", "NCDHW"),
            precision=hp)
        return bnact(y, s, b)

    a = cbs1(x, p["w1"], p["s1"], p["b1"])
    bypass = cbs1(x, p["w2"], p["s2"], p["b2"])
    m = a
    for i in range(p["wb1"].shape[0]):
        t = cbs1(m, p["wb1"][i], p["sb1"][i], p["bb1"][i])
        y = cbs3(t, p["wb2"][i], p["sb2"][i], p["bb2"][i])
        m = m + y if shortcut else y
    cat = jnp.concatenate([m, bypass], axis=1)
    return cbs1(cat, p["w3"], p["s3"], p["b3"])


if __name__ == "__main__":
    # Small shapes consistent with C3(c1=8, c2=8, n=1) on a 3D feature map.
    N, C1, C2, D, H, W, N_BOTTLENECK = 2, 8, 8, 8, 8, 8, 1

    kx, kp = jax.random.split(jax.random.PRNGKey(0))
    x = jax.random.normal(kx, (N, C1, D, H, W), jnp.float32)
    params = make_c3_params(C1, C2, N_BOTTLENECK, kp)

    out = jax.block_until_ready(c3_forward(x, params, mxu_dtype=jnp.bfloat16))
    ref = jax.block_until_ready(c3_reference(x, params, mxu_dtype=jnp.bfloat16))

    assert out.shape == (N, C2, D, H, W), out.shape
    err = float(jnp.max(jnp.abs(out - ref)))
    assert jnp.allclose(out, ref, rtol=1e-2, atol=1e-2), f"max abs err = {err}"

    print("KERNEL_OK")
</pallas_src>

<mosaic_0001>
module attributes {stable_mosaic.version = 11 : i64} {
  func.func @kernel(%arg0: i32, %arg1: memref<8x512xf32, #tpu.memory_space<vmem>>, %arg2: memref<27x512xf32, #tpu.memory_space<vmem>>, %arg3: memref<8x8xbf16, #tpu.memory_space<vmem>>, %arg4: memref<8x1xf32, #tpu.memory_space<vmem>>, %arg5: memref<8x1xf32, #tpu.memory_space<vmem>>, %arg6: memref<8x8xbf16, #tpu.memory_space<vmem>>, %arg7: memref<8x1xf32, #tpu.memory_space<vmem>>, %arg8: memref<8x1xf32, #tpu.memory_space<vmem>>, %arg9: memref<1x8x8xbf16, #tpu.memory_space<vmem>>, %arg10: memref<1x8x1xf32, #tpu.memory_space<vmem>>, %arg11: memref<1x8x1xf32, #tpu.memory_space<vmem>>, %arg12: memref<1x8x216xbf16, #tpu.memory_space<vmem>>, %arg13: memref<1x8x1xf32, #tpu.memory_space<vmem>>, %arg14: memref<1x8x1xf32, #tpu.memory_space<vmem>>, %arg15: memref<8x16xbf16, #tpu.memory_space<vmem>>, %arg16: memref<8x1xf32, #tpu.memory_space<vmem>>, %arg17: memref<8x1xf32, #tpu.memory_space<vmem>>, %arg18: memref<8x512xf32, #tpu.memory_space<vmem>>, %arg19: memref<216x512xf32, #tpu.memory_space<vmem>>, %arg20: memref<16x512xf32, #tpu.memory_space<vmem>>) attributes {dimension_semantics = [#tpu.dimension_semantics<parallel>], iteration_bounds = array<i64: 2>, scalar_prefetch = 0 : i64, scratch_operands = 2 : i64, tpu.core_type = #tpu.core_type<tc>, window_params = [{transform_indices = @transform_0, window_bounds = array<i64: 8, 512>}, {pipeline_mode = #tpu.pipeline_mode<synchronous>, transform_indices = @transform_1, window_bounds = array<i64: 27, 512>}, {pipeline_mode = #tpu.pipeline_mode<synchronous>, transform_indices = @transform_2, window_bounds = array<i64: 8, 8>}, {pipeline_mode = #tpu.pipeline_mode<synchronous>, transform_indices = @transform_3, window_bounds = array<i64: 8, 1>}, {pipeline_mode = #tpu.pipeline_mode<synchronous>, transform_indices = @transform_4, window_bounds = array<i64: 8, 1>}, {pipeline_mode = #tpu.pipeline_mode<synchronous>, transform_indices = @transform_5, window_bounds = array<i64: 8, 8>}, {pipeline_mode = #tpu.pipeline_mode<synchronous>, transform_indices = @transform_6, window_bounds = array<i64: 8, 1>}, {pipeline_mode = #tpu.pipeline_mode<synchronous>, transform_indices = @transform_7, window_bounds = array<i64: 8, 1>}, {pipeline_mode = #tpu.pipeline_mode<synchronous>, transform_indices = @transform_8, window_bounds = array<i64: 1, 8, 8>}, {pipeline_mode = #tpu.pipeline_mode<synchronous>, transform_indices = @transform_9, window_bounds = array<i64: 1, 8, 1>}, {pipeline_mode = #tpu.pipeline_mode<synchronous>, transform_indices = @transform_10, window_bounds = array<i64: 1, 8, 1>}, {pipeline_mode = #tpu.pipeline_mode<synchronous>, transform_indices = @transform_11, window_bounds = array<i64: 1, 8, 216>}, {pipeline_mode = #tpu.pipeline_mode<synchronous>, transform_indices = @transform_12, window_bounds = array<i64: 1, 8, 1>}, {pipeline_mode = #tpu.pipeline_mode<synchronous>, transform_indices = @transform_13, window_bounds = array<i64: 1, 8, 1>}, {pipeline_mode = #tpu.pipeline_mode<synchronous>, transform_indices = @transform_14, window_bounds = array<i64: 8, 16>}, {pipeline_mode = #tpu.pipeline_mode<synchronous>, transform_indices = @transform_15, window_bounds = array<i64: 8, 1>}, {pipeline_mode = #tpu.pipeline_mode<synchronous>, transform_indices = @transform_16, window_bounds = array<i64: 8, 1>}, {transform_indices = @transform_17, window_bounds = array<i64: 8, 512>}]} {
    %c0 = arith.constant 0 : index
    %c0_0 = arith.constant 0 : index
    %0 = vector.load %arg1[%c0, %c0_0] : memref<8x512xf32, #tpu.memory_space<vmem>>, vector<8x512xf32>
    %1 = arith.truncf %0 : vector<8x512xf32> to vector<8x512xbf16>
    %c0_1 = arith.constant 0 : index
    %c0_2 = arith.constant 0 : index
    %2 = vector.load %arg3[%c0_1, %c0_2] : memref<8x8xbf16, #tpu.memory_space<vmem>>, vector<8x8xbf16>
    %c0_3 = arith.constant 0 : index
    %c0_4 = arith.constant 0 : index
    %3 = vector.load %arg4[%c0_3, %c0_4] : memref<8x1xf32, #tpu.memory_space<vmem>>, vector<8x1xf32>
    %c0_5 = arith.constant 0 : index
    %c0_6 = arith.constant 0 : index
    %4 = vector.load %arg5[%c0_5, %c0_6] : memref<8x1xf32, #tpu.memory_space<vmem>>, vector<8x1xf32>
    %cst = arith.constant dense<0.000000e+00> : vector<8x512xf32>
    %5 = tpu.matmul %2, %1, %cst {dimension_numbers = #tpu.dot_dimension_numbers<[1], [0], [0], [1], [0, 0, 1, 1], [], []>} : vector<8x8xbf16>, vector<8x512xbf16>, vector<8x512xf32> -> vector<8x512xf32>
    %6 = vector.broadcast %3 : vector<8x1xf32> to vector<8x512xf32>
    %7 = arith.mulf %5, %6 : vector<8x512xf32>
    %8 = vector.broadcast %4 : vector<8x1xf32> to vector<8x512xf32>
    %9 = arith.addf %7, %8 : vector<8x512xf32>
    %10 = arith.negf %9 : vector<8x512xf32>
    %11 = math.exp %10 : vector<8x512xf32>
    %cst_7 = arith.constant 1.000000e+00 : f32
    %12 = vector.broadcast %cst_7 : f32 to vector<8x512xf32>
    %13 = arith.addf %12, %11 : vector<8x512xf32>
    %14 = arith.divf %12, %13 : vector<8x512xf32>
    %15 = arith.mulf %9, %14 : vector<8x512xf32>
    %c0_8 = arith.constant 0 : index
    %c0_9 = arith.constant 0 : index
    %16 = vector.load %arg6[%c0_8, %c0_9] : memref<8x8xbf16, #tpu.memory_space<vmem>>, vector<8x8xbf16>
    %c0_10 = arith.constant 0 : index
    %c0_11 = arith.constant 0 : index
    %17 = vector.load %arg7[%c0_10, %c0_11] : memref<8x1xf32, #tpu.memory_space<vmem>>, vector<8x1xf32>
    %c0_12 = arith.constant 0 : index
    %c0_13 = arith.constant 0 : index
    %18 = vector.load %arg8[%c0_12, %c0_13] : memref<8x1xf32, #tpu.memory_space<vmem>>, vector<8x1xf32>
    %cst_14 = arith.constant dense<0.000000e+00> : vector<8x512xf32>
    %19 = tpu.matmul %16, %1, %cst_14 {dimension_numbers = #tpu.dot_dimension_numbers<[1], [0], [0], [1], [0, 0, 1, 1], [], []>} : vector<8x8xbf16>, vector<8x512xbf16>, vector<8x512xf32> -> vector<8x512xf32>
    %20 = vector.broadcast %17 : vector<8x1xf32> to vector<8x512xf32>
    %21 = arith.mulf %19, %20 : vector<8x512xf32>
    %22 = vector.broadcast %18 : vector<8x1xf32> to vector<8x512xf32>
    %23 = arith.addf %21, %22 : vector<8x512xf32>
    %24 = arith.negf %23 : vector<8x512xf32>
    %25 = math.exp %24 : vector<8x512xf32>
    %cst_15 = arith.constant 1.000000e+00 : f32
    %26 = vector.broadcast %cst_15 : f32 to vector<8x512xf32>
    %27 = arith.addf %26, %25 : vector<8x512xf32>
    %28 = arith.divf %26, %27 : vector<8x512xf32>
    %29 = arith.mulf %23, %28 : vector<8x512xf32>
    %c0_16 = arith.constant 0 : index
    %c0_17 = arith.constant 0 : index
    %c0_18 = arith.constant 0 : index
    %30 = vector.load %arg9[%c0_16, %c0_17, %c0_18] : memref<1x8x8xbf16, #tpu.memory_space<vmem>>, vector<1x8x8xbf16>
    %31 = vector.shape_cast %30 : vector<1x8x8xbf16> to vector<8x8xbf16>
    %32 = arith.truncf %15 : vector<8x512xf32> to vector<8x512xbf16>
    %c0_19 = arith.constant 0 : index
    %c0_20 = arith.constant 0 : index
    %c0_21 = arith.constant 0 : index
    %33 = vector.load %arg10[%c0_19, %c0_20, %c0_21] : memref<1x8x1xf32, #tpu.memory_space<vmem>>, vector<1x8x1xf32>
    %34 = vector.shape_cast %33 : vector<1x8x1xf32> to vector<8x1xf32>
    %c0_22 = arith.constant 0 : index
    %c0_23 = arith.constant 0 : index
    %c0_24 = arith.constant 0 : index
    %35 = vector.load %arg11[%c0_22, %c0_23, %c0_24] : memref<1x8x1xf32, #tpu.memory_space<vmem>>, vector<1x8x1xf32>
    %36 = vector.shape_cast %35 : vector<1x8x1xf32> to vector<8x1xf32>
    %cst_25 = arith.constant dense<0.000000e+00> : vector<8x512xf32>
    %37 = tpu.matmul %31, %32, %cst_25 {dimension_numbers = #tpu.dot_dimension_numbers<[1], [0], [0], [1], [0, 0, 1, 1], [], []>} : vector<8x8xbf16>, vector<8x512xbf16>, vector<8x512xf32> -> vector<8x512xf32>
    %38 = vector.broadcast %34 : vector<8x1xf32> to vector<8x512xf32>
    %39 = arith.mulf %37, %38 : vector<8x512xf32>
    %40 = vector.broadcast %36 : vector<8x1xf32> to vector<8x512xf32>
    %41 = arith.addf %39, %40 : vector<8x512xf32>
    %42 = arith.negf %41 : vector<8x512xf32>
    %43 = math.exp %42 : vector<8x512xf32>
    %cst_26 = arith.constant 1.000000e+00 : f32
    %44 = vector.broadcast %cst_26 : f32 to vector<8x512xf32>
    %45 = arith.addf %44, %43 : vector<8x512xf32>
    %46 = arith.divf %44, %45 : vector<8x512xf32>
    %47 = arith.mulf %41, %46 : vector<8x512xf32>
    %c73_i32 = arith.constant 73 : i32
    %48 = tpu.dynamic_rotate %47 by %c73_i32 dim 1 : vector<8x512xf32>, i32 -> vector<8x512xf32>
    %c0_27 = arith.constant 0 : index
    %c0_28 = arith.constant 0 : index
    %49 = vector.load %arg2[%c0_27, %c0_28] : memref<27x512xf32, #tpu.memory_space<vmem>>, vector<1x512xf32>
    %50 = vector.broadcast %49 : vector<1x512xf32> to vector<8x512xf32>
    %51 = arith.mulf %48, %50 : vector<8x512xf32>
    %c0_29 = arith.constant 0 : index
    %c0_30 = arith.constant 0 : index
    %52 = vector.load %arg19[%c0_29, %c0_30] : memref<216x512xf32, #tpu.memory_space<vmem>>, vector<8x512xf32>
    tpu.vector_store %arg19[%c0_29, %c0_30], %51 {strides = array<i32>} : memref<216x512xf32, #tpu.memory_space<vmem>>, vector<8x512xf32>,
    %c72_i32 = arith.constant 72 : i32
    %53 = tpu.dynamic_rotate %47 by %c72_i32 dim 1 : vector<8x512xf32>, i32 -> vector<8x512xf32>
    %c1 = arith.constant 1 : index
    %c0_31 = arith.constant 0 : index
    %54 = vector.load %arg2[%c1, %c0_31] : memref<27x512xf32, #tpu.memory_space<vmem>>, vector<1x512xf32>
    %55 = vector.broadcast %54 : vector<1x512xf32> to vector<8x512xf32>
    %56 = arith.mulf %53, %55 : vector<8x512xf32>
    %c8 = arith.constant 8 : index
    %c0_32 = arith.constant 0 : index
    %57 = vector.load %arg19[%c8, %c0_32] : memref<216x512xf32, #tpu.memory_space<vmem>>, vector<8x512xf32>
    tpu.vector_store %arg19[%c8, %c0_32], %56 {strides = array<i32>} : memref<216x512xf32, #tpu.memory_space<vmem>>, vector<8x512xf32>,
    %c71_i32 = arith.constant 71 : i32
    %58 = tpu.dynamic_rotate %47 by %c71_i32 dim 1 : vector<8x512xf32>, i32 -> vector<8x512xf32>
    %c2 = arith.constant 2 : index
    %c0_33 = arith.constant 0 : index
    %59 = vector.load %arg2[%c2, %c0_33] : memref<27x512xf32, #tpu.memory_space<vmem>>, vector<1x512xf32>
    %60 = vector.broadcast %59 : vector<1x512xf32> to vector<8x512xf32>
    %61 = arith.mulf %58, %60 : vector<8x512xf32>
    %c16 = arith.constant 16 : index
    %c0_34 = arith.constant 0 : index
    %62 = vector.load %arg19[%c16, %c0_34] : memref<216x512xf32, #tpu.memory_space<vmem>>, vector<8x512xf32>
    tpu.vector_store %arg19[%c16, %c0_34], %61 {strides = array<i32>} : memref<216x512xf32, #tpu.memory_space<vmem>>, vector<8x512xf32>,
    %c65_i32 = arith.constant 65 : i32
    %63 = tpu.dynamic_rotate %47 by %c65_i32 dim 1 : vector<8x512xf32>, i32 -> vector<8x512xf32>
    %c3 = arith.constant 3 : index
    %c0_35 = arith.constant 0 : index
    %64 = vector.load %arg2[%c3, %c0_35] : memref<27x512xf32, #tpu.memory_space<vmem>>, vector<1x512xf32>
    %65 = vector.broadcast %64 : vector<1x512xf32> to vector<8x512xf32>
    %66 = arith.mulf %63, %65 : vector<8x512xf32>
    %c24 = arith.constant 24 : index
    %c0_36 = arith.constant 0 : index
    %67 = vector.load %arg19[%c24, %c0_36] : memref<216x512xf32, #tpu.memory_space<vmem>>, vector<8x512xf32>
    tpu.vector_store %arg19[%c24, %c0_36], %66 {strides = array<i32>} : memref<216x512xf32, #tpu.memory_space<vmem>>, vector<8x512xf32>,
    %c64_i32 = arith.constant 64 : i32
    %68 = tpu.dynamic_rotate %47 by %c64_i32 dim 1 : vector<8x512xf32>, i32 -> vector<8x512xf32>
    %c4 = arith.constant 4 : index
    %c0_37 = arith.constant 0 : index
    %69 = vector.load %arg2[%c4, %c0_37] : memref<27x512xf32, #tpu.memory_space<vmem>>, vector<1x512xf32>
    %70 = vector.broadcast %69 : vector<1x512xf32> to vector<8x512xf32>
    %71 = arith.mulf %68, %70 : vector<8x512xf32>
    %c32 = arith.constant 32 : index
    %c0_38 = arith.constant 0 : index
    %72 = vector.load %arg19[%c32, %c0_38] : memref<216x512xf32, #tpu.memory_space<vmem>>, vector<8x512xf32>
    tpu.vector_store %arg19[%c32, %c0_38], %71 {strides = array<i32>} : memref<216x512xf32, #tpu.memory_space<vmem>>, vector<8x512xf32>,
    %c63_i32 = arith.constant 63 : i32
    %73 = tpu.dynamic_rotate %47 by %c63_i32 dim 1 : vector<8x512xf32>, i32 -> vector<8x512xf32>
    %c5 = arith.constant 5 : index
    %c0_39 = arith.constant 0 : index
    %74 = vector.load %arg2[%c5, %c0_39] : memref<27x512xf32, #tpu.memory_space<vmem>>, vector<1x512xf32>
    %75 = vector.broadcast %74 : vector<1x512xf32> to vector<8x512xf32>
    %76 = arith.mulf %73, %75 : vector<8x512xf32>
    %c40 = arith.constant 40 : index
    %c0_40 = arith.constant 0 : index
    %77 = vector.load %arg19[%c40, %c0_40] : memref<216x512xf32, #tpu.memory_space<vmem>>, vector<8x512xf32>
    tpu.vector_store %arg19[%c40, %c0_40], %76 {strides = array<i32>} : memref<216x512xf32, #tpu.memory_space<vmem>>, vector<8x512xf32>,
    %c57_i32 = arith.constant 57 : i32
    %78 = tpu.dynamic_rotate %47 by %c57_i32 dim 1 : vector<8x512xf32>, i32 -> vector<8x512xf32>
    %c6 = arith.constant 6 : index
    %c0_41 = arith.constant 0 : index
    %79 = vector.load %arg2[%c6, %c0_41] : memref<27x512xf32, #tpu.memory_space<vmem>>, vector<1x512xf32>
    %80 = vector.broadcast %79 : vector<1x512xf32> to vector<8x512xf32>
    %81 = arith.mulf %78, %80 : vector<8x512xf32>
    %c48 = arith.constant 48 : index
    %c0_42 = arith.constant 0 : index
    %82 = vector.load %arg19[%c48, %c0_42] : memref<216x512xf32, #tpu.memory_space<vmem>>, vector<8x512xf32>
    tpu.vector_store %arg19[%c48, %c0_42], %81 {strides = array<i32>} : memref<216x512xf32, #tpu.memory_space<vmem>>, vector<8x512xf32>,
    %c56_i32 = arith.constant 56 : i32
    %83 = tpu.dynamic_rotate %47 by %c56_i32 dim 1 : vector<8x512xf32>, i32 -> vector<8x512xf32>
    %c7 = arith.constant 7 : index
    %c0_43 = arith.constant 0 : index
    %84 = vector.load %arg2[%c7, %c0_43] : memref<27x512xf32, #tpu.memory_space<vmem>>, vector<1x512xf32>
    %85 = vector.broadcast %84 : vector<1x512xf32> to vector<8x512xf32>
    %86 = arith.mulf %83, %85 : vector<8x512xf32>
    %c56 = arith.constant 56 : index
    %c0_44 = arith.constant 0 : index
    %87 = vector.load %arg19[%c56, %c0_44] : memref<216x512xf32, #tpu.memory_space<vmem>>, vector<8x512xf32>
    tpu.vector_store %arg19[%c56, %c0_44], %86 {strides = array<i32>} : memref<216x512xf32, #tpu.memory_space<vmem>>, vector<8x512xf32>,
    %c55_i32 = arith.constant 55 : i32
    %88 = tpu.dynamic_rotate %47 by %c55_i32 dim 1 : vector<8x512xf32>, i32 -> vector<8x512xf32>
    %c8_45 = arith.constant 8 : index
    %c0_46 = arith.constant 0 : index
    %89 = vector.load %arg2[%c8_45, %c0_46] : memref<27x512xf32, #tpu.memory_space<vmem>>, vector<1x512xf32>
    %90 = vector.broadcast %89 : vector<1x512xf32> to vector<8x512xf32>
    %91 = arith.mulf %88, %90 : vector<8x512xf32>
    %c64 = arith.constant 64 : index
    %c0_47 = arith.constant 0 : index
    %92 = vector.load %arg19[%c64, %c0_47] : memref<216x512xf32, #tpu.memory_space<vmem>>, vector<8x512xf32>
    tpu.vector_store %arg19[%c64, %c0_47], %91 {strides = array<i32>} : memref<216x512xf32, #tpu.memory_space<vmem>>, vector<8x512xf32>,
    %c9_i32 = arith.constant 9 : i32
    %93 = tpu.dynamic_rotate %47 by %c9_i32 dim 1 : vector<8x512xf32>, i32 -> vector<8x512xf32>
    %c9 = arith.constant 9 : index
    %c0_48 = arith.constant 0 : index
    %94 = vector.load %arg2[%c9, %c0_48] : memref<27x512xf32, #tpu.memory_space<vmem>>, vector<1x512xf32>
    %95 = vector.broadcast %94 : vector<1x512xf32> to vector<8x512xf32>
    %96 = arith.mulf %93, %95 : vector<8x512xf32>
    %c72 = arith.constant 72 : index
    %c0_49 = arith.constant 0 : index
    %97 = vector.load %arg19[%c72, %c0_49] : memref<216x512xf32, #tpu.memory_space<vmem>>, vector<8x512xf32>
    tpu.vector_store %arg19[%c72, %c0_49], %96 {strides = array<i32>} : memref<216x512xf32, #tpu.memory_space<vmem>>, vector<8x512xf32>,
    %c8_i32 = arith.constant 8 : i32
    %98 = tpu.dynamic_rotate %47 by %c8_i32 dim 1 : vector<8x512xf32>, i32 -> vector<8x512xf32>
    %c10 = arith.constant 10 : index
    %c0_50 = arith.constant 0 : index
    %99 = vector.load %arg2[%c10, %c0_50] : memref<27x512xf32, #tpu.memory_space<vmem>>, vector<1x512xf32>
    %100 = vector.broadcast %99 : vector<1x512xf32> to vector<8x512xf32>
    %101 = arith.mulf %98, %100 : vector<8x512xf32>
    %c80 = arith.constant 80 : index
    %c0_51 = arith.constant 0 : index
    %102 = vector.load %arg19[%c80, %c0_51] : memref<216x512xf32, #tpu.memory_space<vmem>>, vector<8x512xf32>
    tpu.vector_store %arg19[%c80, %c0_51], %101 {strides = array<i32>} : memref<216x512xf32, #tpu.memory_space<vmem>>, vector<8x512xf32>,
    %c7_i32 = arith.constant 7 : i32
    %103 = tpu.dynamic_rotate %47 by %c7_i32 dim 1 : vector<8x512xf32>, i32 -> vector<8x512xf32>
    %c11 = arith.constant 11 : index
    %c0_52 = arith.constant 0 : index
    %104 = vector.load %arg2[%c11, %c0_52] : memref<27x512xf32, #tpu.memory_space<vmem>>, vector<1x512xf32>
    %105 = vector.broadcast %104 : vector<1x512xf32> to vector<8x512xf32>
    %106 = arith.mulf %103, %105 : vector<8x512xf32>
    %c88 = arith.constant 88 : index
    %c0_53 = arith.constant 0 : index
    %107 = vector.load %arg19[%c88, %c0_53] : memref<216x512xf32, #tpu.memory_space<vmem>>, vector<8x512xf32>
    tpu.vector_store %arg19[%c88, %c0_53], %106 {strides = array<i32>} : memref<216x512xf32, #tpu.memory_space<vmem>>, vector<8x512xf32>,
    %c1_i32 = arith.constant 1 : i32
    %108 = tpu.dynamic_rotate %47 by %c1_i32 dim 1 : vector<8x512xf32>, i32 -> vector<8x512xf32>
    %c12 = arith.constant 12 : index
    %c0_54 = arith.constant 0 : index
    %109 = vector.load %arg2[%c12, %c0_54] : memref<27x512xf32, #tpu.memory_space<vmem>>, vector<1x512xf32>
    %110 = vector.broadcast %109 : vector<1x512xf32> to vector<8x512xf32>
    %111 = arith.mulf %108, %110 : vector<8x512xf32>
    %c96 = arith.constant 96 : index
    %c0_55 = arith.constant 0 : index
    %112 = vector.load %arg19[%c96, %c0_55] : memref<216x512xf32, #tpu.memory_space<vmem>>, vector<8x512xf32>
    tpu.vector_store %arg19[%c96, %c0_55], %111 {strides = array<i32>} : memref<216x512xf32, #tpu.memory_space<vmem>>, vector<8x512xf32>,
    %c13 = arith.constant 13 : index
    %c0_56 = arith.constant 0 : index
    %113 = vector.load %arg2[%c13, %c0_56] : memref<27x512xf32, #tpu.memory_space<vmem>>, vector<1x512xf32>
    %114 = vector.broadcast %113 : vector<1x512xf32> to vector<8x512xf32>
    %115 = arith.mulf %47, %114 : vector<8x512xf32>
    %c104 = arith.constant 104 : index
    %c0_57 = arith.constant 0 : index
    %116 = vector.load %arg19[%c104, %c0_57] : memref<216x512xf32, #tpu.memory_space<vmem>>, vector<8x512xf32>
    tpu.vector_store %arg19[%c104, %c0_57], %115 {strides = array<i32>} : memref<216x512xf32, #tpu.memory_space<vmem>>, vector<8x512xf32>,
    %c511_i32 = arith.constant 511 : i32
    %117 = tpu.dynamic_rotate %47 by %c511_i32 dim 1 : vector<8x512xf32>, i32 -> vector<8x512xf32>
    %c14 = arith.constant 14 : index
    %c0_58 = arith.constant 0 : index
    %118 = vector.load %arg2[%c14, %c0_58] : memref<27x512xf32, #tpu.memory_space<vmem>>, vector<1x512xf32>
    %119 = vector.broadcast %118 : vector<1x512xf32> to vector<8x512xf32>
    %120 = arith.mulf %117, %119 : vector<8x512xf32>
    %c112 = arith.constant 112 : index
    %c0_59 = arith.constant 0 : index
    %121 = vector.load %arg19[%c112, %c0_59] : memref<216x512xf32, #tpu.memory_space<vmem>>, vector<8x512xf32>
    tpu.vector_store %arg19[%c112, %c0_59], %120 {strides = array<i32>} : memref<216x512xf32, #tpu.memory_space<vmem>>, vector<8x512xf32>,
    %c505_i32 = arith.constant 505 : i32
    %122 = tpu.dynamic_rotate %47 by %c505_i32 dim 1 : vector<8x512xf32>, i32 -> vector<8x512xf32>
    %c15 = arith.constant 15 : index
    %c0_60 = arith.constant 0 : index
    %123 = vector.load %arg2[%c15, %c0_60] : memref<27x512xf32, #tpu.memory_space<vmem>>, vector<1x512xf32>
    %124 = vector.broadcast %123 : vector<1x512xf32> to vector<8x512xf32>
    %125 = arith.mulf %122, %124 : vector<8x512xf32>
    %c120 = arith.constant 120 : index
    %c0_61 = arith.constant 0 : index
    %126 = vector.load %arg19[%c120, %c0_61] : memref<216x512xf32, #tpu.memory_space<vmem>>, vector<8x512xf32>
    tpu.vector_store %arg19[%c120, %c0_61], %125 {strides = array<i32>} : memref<216x512xf32, #tpu.memory_space<vmem>>, vector<8x512xf32>,
    %c504_i32 = arith.constant 504 : i32
    %127 = tpu.dynamic_rotate %47 by %c504_i32 dim 1 : vector<8x512xf32>, i32 -> vector<8x512xf32>
    %c16_62 = arith.constant 16 : index
    %c0_63 = arith.constant 0 : index
    %128 = vector.load %arg2[%c16_62, %c0_63] : memref<27x512xf32, #tpu.memory_space<vmem>>, vector<1x512xf32>
    %129 = vector.broadcast %128 : vector<1x512xf32> to vector<8x512xf32>
    %130 = arith.mulf %127, %129 : vector<8x512xf32>
    %c128 = arith.constant 128 : index
    %c0_64 = arith.constant 0 : index
    %131 = vector.load %arg19[%c128, %c0_64] : memref<216x512xf32, #tpu.memory_space<vmem>>, vector<8x512xf32>
    tpu.vector_store %arg19[%c128, %c0_64], %130 {strides = array<i32>} : memref<216x512xf32, #tpu.memory_space<vmem>>, vector<8x512xf32>,
    %c503_i32 = arith.constant 503 : i32
    %132 = tpu.dynamic_rotate %47 by %c503_i32 dim 1 : vector<8x512xf32>, i32 -> vector<8x512xf32>
    %c17 = arith.constant 17 : index
    %c0_65 = arith.constant 0 : index
    %133 = vector.load %arg2[%c17, %c0_65] : memref<27x512xf32, #tpu.memory_space<vmem>>, vector<1x512xf32>
    %134 = vector.broadcast %133 : vector<1x512xf32> to vector<8x512xf32>
    %135 = arith.mulf %132, %134 : vector<8x512xf32>
    %c136 = arith.constant 136 : index
    %c0_66 = arith.constant 0 : index
    %136 = vector.load %arg19[%c136, %c0_66] : memref<216x512xf32, #tpu.memory_space<vmem>>, vector<8x512xf32>
    tpu.vector_store %arg19[%c136, %c0_66], %135 {strides = array<i32>} : memref<216x512xf32, #tpu.memory_space<vmem>>, vector<8x512xf32>,
    %c457_i32 = arith.constant 457 : i32
    %137 = tpu.dynamic_rotate %47 by %c457_i32 dim 1 : vector<8x512xf32>, i32 -> vector<8x512xf32>
    %c18 = arith.constant 18 : index
    %c0_67 = arith.constant 0 : index
    %138 = vector.load %arg2[%c18, %c0_67] : memref<27x512xf32, #tpu.memory_space<vmem>>, vector<1x512xf32>
    %139 = vector.broadcast %138 : vector<1x512xf32> to vector<8x512xf32>
    %140 = arith.mulf %137, %139 : vector<8x512xf32>
    %c144 = arith.constant 144 : index
    %c0_68 = arith.constant 0 : index
    %141 = vector.load %arg19[%c144, %c0_68] : memref<216x512xf32, #tpu.memory_space<vmem>>, vector<8x512xf32>
    tpu.vector_store %arg19[%c144, %c0_68], %140 {strides = array<i32>} : memref<216x512xf32, #tpu.memory_space<vmem>>, vector<8x512xf32>,
    %c456_i32 = arith.constant 456 : i32
    %142 = tpu.dynamic_rotate %47 by %c456_i32 dim 1 : vector<8x512xf32>, i32 -> vector<8x512xf32>
    %c19 = arith.constant 19 : index
    %c0_69 = arith.constant 0 : index
    %143 = vector.load %arg2[%c19, %c0_69] : memref<27x512xf32, #tpu.memory_space<vmem>>, vector<1x512xf32>
    %144 = vector.broadcast %143 : vector<1x512xf32> to vector<8x512xf32>
    %145 = arith.mulf %142, %144 : vector<8x512xf32>
    %c152 = arith.constant 152 : index
    %c0_70 = arith.constant 0 : index
    %146 = vector.load %arg19[%c152, %c0_70] : memref<216x512xf32, #tpu.memory_space<vmem>>, vector<8x512xf32>
    tpu.vector_store %arg19[%c152, %c0_70], %145 {strides = array<i32>} : memref<216x512xf32, #tpu.memory_space<vmem>>, vector<8x512xf32>,
    %c455_i32 = arith.constant 455 : i32
    %147 = tpu.dynamic_rotate %47 by %c455_i32 dim 1 : vector<8x512xf32>, i32 -> vector<8x512xf32>
    %c20 = arith.constant 20 : index
    %c0_71 = arith.constant 0 : index
    %148 = vector.load %arg2[%c20, %c0_71] : memref<27x512xf32, #tpu.memory_space<vmem>>, vector<1x512xf32>
    %149 = vector.broadcast %148 : vector<1x512xf32> to vector<8x512xf32>
    %150 = arith.mulf %147, %149 : vector<8x512xf32>
    %c160 = arith.constant 160 : index
    %c0_72 = arith.constant 0 : index
    %151 = vector.load %arg19[%c160, %c0_72] : memref<216x512xf32, #tpu.memory_space<vmem>>, vector<8x512xf32>
    tpu.vector_store %arg19[%c160, %c0_72], %150 {strides = array<i32>} : memref<216x512xf32, #tpu.memory_space<vmem>>, vector<8x512xf32>,
    %c449_i32 = arith.constant 449 : i32
    %152 = tpu.dynamic_rotate %47 by %c449_i32 dim 1 : vector<8x512xf32>, i32 -> vector<8x512xf32>
    %c21 = arith.constant 21 : index
    %c0_73 = arith.constant 0 : index
    %153 = vector.load %arg2[%c21, %c0_73] : memref<27x512xf32, #tpu.memory_space<vmem>>, vector<1x512xf32>
    %154 = vector.broadcast %153 : vector<1x512xf32> to vector<8x512xf32>
    %155 = arith.mulf %152, %154 : vector<8x512xf32>
    %c168 = arith.constant 168 : index
    %c0_74 = arith.constant 0 : index
    %156 = vector.load %arg19[%c168, %c0_74] : memref<216x512xf32, #tpu.memory_space<vmem>>, vector<8x512xf32>
    tpu.vector_store %arg19[%c168, %c0_74], %155 {strides = array<i32>} : memref<216x512xf32, #tpu.memory_space<vmem>>, vector<8x512xf32>,
    %c448_i32 = arith.constant 448 : i32
    %157 = tpu.dynamic_rotate %47 by %c448_i32 dim 1 : vector<8x512xf32>, i32 -> vector<8x512xf32>
    %c22 = arith.constant 22 : index
    %c0_75 = arith.constant 0 : index
    %158 = vector.load %arg2[%c22, %c0_75] : memref<27x512xf32, #tpu.memory_space<vmem>>, vector<1x512xf32>
    %159 = vector.broadcast %158 : vector<1x512xf32> to vector<8x512xf32>
    %160 = arith.mulf %157, %159 : vector<8x512xf32>
    %c176 = arith.constant 176 : index
    %c0_76 = arith.constant 0 : index
    %161 = vector.load %arg19[%c176, %c0_76] : memref<216x512xf32, #tpu.memory_space<vmem>>, vector<8x512xf32>
    tpu.vector_store %arg19[%c176, %c0_76], %160 {strides = array<i32>} : memref<216x512xf32, #tpu.memory_space<vmem>>, vector<8x512xf32>,
    %c447_i32 = arith.constant 447 : i32
    %162 = tpu.dynamic_rotate %47 by %c447_i32 dim 1 : vector<8x512xf32>, i32 -> vector<8x512xf32>
    %c23 = arith.constant 23 : index
    %c0_77 = arith.constant 0 : index
    %163 = vector.load %arg2[%c23, %c0_77] : memref<27x512xf32, #tpu.memory_space<vmem>>, vector<1x512xf32>
    %164 = vector.broadcast %163 : vector<1x512xf32> to vector<8x512xf32>
    %165 = arith.mulf %162, %164 : vector<8x512xf32>
    %c184 = arith.constant 184 : index
    %c0_78 = arith.constant 0 : index
    %166 = vector.load %arg19[%c184, %c0_78] : memref<216x512xf32, #tpu.memory_space<vmem>>, vector<8x512xf32>
    tpu.vector_store %arg19[%c184, %c0_78], %165 {strides = array<i32>} : memref<216x512xf32, #tpu.memory_space<vmem>>, vector<8x512xf32>,
    %c441_i32 = arith.constant 441 : i32
    %167 = tpu.dynamic_rotate %47 by %c441_i32 dim 1 : vector<8x512xf32>, i32 -> vector<8x512xf32>
    %c24_79 = arith.constant 24 : index
    %c0_80 = arith.constant 0 : index
    %168 = vector.load %arg2[%c24_79, %c0_80] : memref<27x512xf32, #tpu.memory_space<vmem>>, vector<1x512xf32>
    %169 = vector.broadcast %168 : vector<1x512xf32> to vector<8x512xf32>
    %170 = arith.mulf %167, %169 : vector<8x512xf32>
    %c192 = arith.constant 192 : index
    %c0_81 = arith.constant 0 : index
    %171 = vector.load %arg19[%c192, %c0_81] : memref<216x512xf32, #tpu.memory_space<vmem>>, vector<8x512xf32>
    tpu.vector_store %arg19[%c192, %c0_81], %170 {strides = array<i32>} : memref<216x512xf32, #tpu.memory_space<vmem>>, vector<8x512xf32>,
    %c440_i32 = arith.constant 440 : i32
    %172 = tpu.dynamic_rotate %47 by %c440_i32 dim 1 : vector<8x512xf32>, i32 -> vector<8x512xf32>
    %c25 = arith.constant 25 : index
    %c0_82 = arith.constant 0 : index
    %173 = vector.load %arg2[%c25, %c0_82] : memref<27x512xf32, #tpu.memory_space<vmem>>, vector<1x512xf32>
    %174 = vector.broadcast %173 : vector<1x512xf32> to vector<8x512xf32>
    %175 = arith.mulf %172, %174 : vector<8x512xf32>
    %c200 = arith.constant 200 : index
    %c0_83 = arith.constant 0 : index
    %176 = vector.load %arg19[%c200, %c0_83] : memref<216x512xf32, #tpu.memory_space<vmem>>, vector<8x512xf32>
    tpu.vector_store %arg19[%c200, %c0_83], %175 {strides = array<i32>} : memref<216x512xf32, #tpu.memory_space<vmem>>, vector<8x512xf32>,
    %c439_i32 = arith.constant 439 : i32
    %177 = tpu.dynamic_rotate %47 by %c439_i32 dim 1 : vector<8x512xf32>, i32 -> vector<8x512xf32>
    %c26 = arith.constant 26 : index
    %c0_84 = arith.constant 0 : index
    %178 = vector.load %arg2[%c26, %c0_84] : memref<27x512xf32, #tpu.memory_space<vmem>>, vector<1x512xf32>
    %179 = vector.broadcast %178 : vector<1x512xf32> to vector<8x512xf32>
    %180 = arith.mulf %177, %179 : vector<8x512xf32>
    %c208 = arith.constant 208 : index
    %c0_85 = arith.constant 0 : index
    %181 = vector.load %arg19[%c208, %c0_85] : memref<216x512xf32, #tpu.memory_space<vmem>>, vector<8x512xf32>
    tpu.vector_store %arg19[%c208, %c0_85], %180 {strides = array<i32>} : memref<216x512xf32, #tpu.memory_space<vmem>>, vector<8x512xf32>,
    %c0_86 = arith.constant 0 : index
    %c0_87 = arith.constant 0 : index
    %c0_88 = arith.constant 0 : index
    %182 = vector.load %arg12[%c0_86, %c0_87, %c0_88] : memref<1x8x216xbf16, #tpu.memory_space<vmem>>, vector<1x8x216xbf16>
    %183 = vector.shape_cast %182 : vector<1x8x216xbf16> to vector<8x216xbf16>
    %c0_89 = arith.constant 0 : index
    %c0_90 = arith.constant 0 : index
    %184 = vector.load %arg19[%c0_89, %c0_90] : memref<216x512xf32, #tpu.memory_space<vmem>>, vector<216x512xf32>
    %185 = arith.truncf %184 : vector<216x512xf32> to vector<216x512xbf16>
    %cst_91 = arith.constant dense<0.000000e+00> : vector<8x512xf32>
    %186 = tpu.matmul %183, %185, %cst_91 {dimension_numbers = #tpu.dot_dimension_numbers<[1], [0], [0], [1], [0, 0, 1, 1], [], []>} : vector<8x216xbf16>, vector<216x512xbf16>, vector<8x512xf32> -> vector<8x512xf32>
    %c0_92 = arith.constant 0 : index
    %c0_93 = arith.constant 0 : index
    %c0_94 = arith.constant 0 : index
    %187 = vector.load %arg13[%c0_92, %c0_93, %c0_94] : memref<1x8x1xf32, #tpu.memory_space<vmem>>, vector<1x8x1xf32>
    %188 = vector.shape_cast %187 : vector<1x8x1xf32> to vector<8x1xf32>
    %189 = vector.broadcast %188 : vector<8x1xf32> to vector<8x512xf32>
    %190 = arith.mulf %186, %189 : vector<8x512xf32>
    %c0_95 = arith.constant 0 : index
    %c0_96 = arith.constant 0 : index
    %c0_97 = arith.constant 0 : index
    %191 = vector.load %arg14[%c0_95, %c0_96, %c0_97] : memref<1x8x1xf32, #tpu.memory_space<vmem>>, vector<1x8x1xf32>
    %192 = vector.shape_cast %191 : vector<1x8x1xf32> to vector<8x1xf32>
    %193 = vector.broadcast %192 : vector<8x1xf32> to vector<8x512xf32>
    %194 = arith.addf %190, %193 : vector<8x512xf32>
    %195 = arith.negf %194 : vector<8x512xf32>
    %196 = math.exp %195 : vector<8x512xf32>
    %cst_98 = arith.constant 1.000000e+00 : f32
    %197 = vector.broadcast %cst_98 : f32 to vector<8x512xf32>
    %198 = arith.addf %197, %196 : vector<8x512xf32>
    %199 = arith.divf %197, %198 : vector<8x512xf32>
    %200 = arith.mulf %194, %199 : vector<8x512xf32>
    %201 = arith.addf %15, %200 : vector<8x512xf32>
    %c0_99 = arith.constant 0 : index
    %c0_100 = arith.constant 0 : index
    %202 = vector.load %arg20[%c0_99, %c0_100] : memref<16x512xf32, #tpu.memory_space<vmem>>, vector<8x512xf32>
    tpu.vector_store %arg20[%c0_99, %c0_100], %201 {strides = array<i32>} : memref<16x512xf32, #tpu.memory_space<vmem>>, vector<8x512xf32>,
    %c8_101 = arith.constant 8 : index
    %c0_102 = arith.constant 0 : index
    %203 = vector.load %arg20[%c8_101, %c0_102] : memref<16x512xf32, #tpu.memory_space<vmem>>, vector<8x512xf32>
    tpu.vector_store %arg20[%c8_101, %c0_102], %29 {strides = array<i32>} : memref<16x512xf32, #tpu.memory_space<vmem>>, vector<8x512xf32>,
    %c0_103 = arith.constant 0 : index
    %c0_104 = arith.constant 0 : index
    %204 = vector.load %arg15[%c0_103, %c0_104] : memref<8x16xbf16, #tpu.memory_space<vmem>>, vector<8x16xbf16>
    %c0_105 = arith.constant 0 : index
    %c0_106 = arith.constant 0 : index
    %205 = vector.load %arg20[%c0_105, %c0_106] : memref<16x512xf32, #tpu.memory_space<vmem>>, vector<16x512xf32>
    %206 = arith.truncf %205 : vector<16x512xf32> to vector<16x512xbf16>
    %cst_107 = arith.constant dense<0.000000e+00> : vector<8x512xf32>
    %207 = tpu.matmul %204, %206, %cst_107 {dimension_numbers = #tpu.dot_dimension_numbers<[1], [0], [0], [1], [0, 0, 1, 1], [], []>} : vector<8x16xbf16>, vector<16x512xbf16>, vector<8x512xf32> -> vector<8x512xf32>
    %c0_108 = arith.constant 0 : index
    %c0_109 = arith.constant 0 : index
    %208 = vector.load %arg16[%c0_108, %c0_109] : memref<8x1xf32, #tpu.memory_space<vmem>>, vector<8x1xf32>
    %209 = vector.broadcast %208 : vector<8x1xf32> to vector<8x512xf32>
    %210 = arith.mulf %207, %209 : vector<8x512xf32>
    %c0_110 = arith.constant 0 : index
    %c0_111 = arith.constant 0 : index
    %211 = vector.load %arg17[%c0_110, %c0_111] : memref<8x1xf32, #tpu.memory_space<vmem>>, vector<8x1xf32>
    %212 = vector.broadcast %211 : vector<8x1xf32> to vector<8x512xf32>
    %213 = arith.addf %210, %212 : vector<8x512xf32>
    %214 = arith.negf %213 : vector<8x512xf32>
    %215 = math.exp %214 : vector<8x512xf32>
    %cst_112 = arith.constant 1.000000e+00 : f32
    %216 = vector.broadcast %cst_112 : f32 to vector<8x512xf32>
    %217 = arith.addf %216, %215 : vector<8x512xf32>
    %218 = arith.divf %216, %217 : vector<8x512xf32>
    %219 = arith.mulf %213, %218 : vector<8x512xf32>
    %c0_113 = arith.constant 0 : index
    %c0_114 = arith.constant 0 : index
    %220 = vector.load %arg18[%c0_113, %c0_114] : memref<8x512xf32, #tpu.memory_space<vmem>>, vector<8x512xf32>
    tpu.vector_store %arg18[%c0_113, %c0_114], %219 {strides = array<i32>} : memref<8x512xf32, #tpu.memory_space<vmem>>, vector<8x512xf32>,
    return
  }
  func.func @transform_0(%arg0: i32) -> (i32, i32) {
    %c0_i32 = arith.constant 0 : i32
    %c0_i32_0 = arith.constant 0 : i32
    return %c0_i32, %arg0 : i32, i32
  }
  func.func @transform_1(%arg0: i32) -> (i32, i32) {
    %c0_i32 = arith.constant 0 : i32
    %c0_i32_0 = arith.constant 0 : i32
    %c0_i32_1 = arith.constant 0 : i32
    return %c0_i32, %c0_i32_0 : i32, i32
  }
  func.func @transform_2(%arg0: i32) -> (i32, i32) {
    %c0_i32 = arith.constant 0 : i32
    %c0_i32_0 = arith.constant 0 : i32
    %c0_i32_1 = arith.constant 0 : i32
    return %c0_i32, %c0_i32_0 : i32, i32
  }
  func.func @transform_3(%arg0: i32) -> (i32, i32) {
    %c0_i32 = arith.constant 0 : i32
    %c0_i32_0 = arith.constant 0 : i32
    %c0_i32_1 = arith.constant 0 : i32
    return %c0_i32, %c0_i32_0 : i32, i32
  }
  func.func @transform_4(%arg0: i32) -> (i32, i32) {
    %c0_i32 = arith.constant 0 : i32
    %c0_i32_0 = arith.constant 0 : i32
    %c0_i32_1 = arith.constant 0 : i32
    return %c0_i32, %c0_i32_0 : i32, i32
  }
  func.func @transform_5(%arg0: i32) -> (i32, i32) {
    %c0_i32 = arith.constant 0 : i32
    %c0_i32_0 = arith.constant 0 : i32
    %c0_i32_1 = arith.constant 0 : i32
    return %c0_i32, %c0_i32_0 : i32, i32
  }
  func.func @transform_6(%arg0: i32) -> (i32, i32) {
    %c0_i32 = arith.constant 0 : i32
    %c0_i32_0 = arith.constant 0 : i32
    %c0_i32_1 = arith.constant 0 : i32
    return %c0_i32, %c0_i32_0 : i32, i32
  }
  func.func @transform_7(%arg0: i32) -> (i32, i32) {
    %c0_i32 = arith.constant 0 : i32
    %c0_i32_0 = arith.constant 0 : i32
    %c0_i32_1 = arith.constant 0 : i32
    return %c0_i32, %c0_i32_0 : i32, i32
  }
  func.func @transform_8(%arg0: i32) -> (i32, i32, i32) {
    %c0_i32 = arith.constant 0 : i32
    %c0_i32_0 = arith.constant 0 : i32
    %c0_i32_1 = arith.constant 0 : i32
    %c0_i32_2 = arith.constant 0 : i32
    return %c0_i32, %c0_i32_0, %c0_i32_1 : i32, i32, i32
  }
  func.func @transform_9(%arg0: i32) -> (i32, i32, i32) {
    %c0_i32 = arith.constant 0 : i32
    %c0_i32_0 = arith.constant 0 : i32
    %c0_i32_1 = arith.constant 0 : i32
    %c0_i32_2 = arith.constant 0 : i32
    return %c0_i32, %c0_i32_0, %c0_i32_1 : i32, i32, i32
  }
  func.func @transform_10(%arg0: i32) -> (i32, i32, i32) {
    %c0_i32 = arith.constant 0 : i32
    %c0_i32_0 = arith.constant 0 : i32
    %c0_i32_1 = arith.constant 0 : i32
    %c0_i32_2 = arith.constant 0 : i32
    return %c0_i32, %c0_i32_0, %c0_i32_1 : i32, i32, i32
  }
  func.func @transform_11(%arg0: i32) -> (i32, i32, i32) {
    %c0_i32 = arith.constant 0 : i32
    %c0_i32_0 = arith.constant 0 : i32
    %c0_i32_1 = arith.constant 0 : i32
    %c0_i32_2 = arith.constant 0 : i32
    return %c0_i32, %c0_i32_0, %c0_i32_1 : i32, i32, i32
  }
  func.func @transform_12(%arg0: i32) -> (i32, i32, i32) {
    %c0_i32 = arith.constant 0 : i32
    %c0_i32_0 = arith.constant 0 : i32
    %c0_i32_1 = arith.constant 0 : i32
    %c0_i32_2 = arith.constant 0 : i32
    return %c0_i32, %c0_i32_0, %c0_i32_1 : i32, i32, i32
  }
  func.func @transform_13(%arg0: i32) -> (i32, i32, i32) {
    %c0_i32 = arith.constant 0 : i32
    %c0_i32_0 = arith.constant 0 : i32
    %c0_i32_1 = arith.constant 0 : i32
    %c0_i32_2 = arith.constant 0 : i32
    return %c0_i32, %c0_i32_0, %c0_i32_1 : i32, i32, i32
  }
  func.func @transform_14(%arg0: i32) -> (i32, i32) {
    %c0_i32 = arith.constant 0 : i32
    %c0_i32_0 = arith.constant 0 : i32
    %c0_i32_1 = arith.constant 0 : i32
    return %c0_i32, %c0_i32_0 : i32, i32
  }
  func.func @transform_15(%arg0: i32) -> (i32, i32) {
    %c0_i32 = arith.constant 0 : i32
    %c0_i32_0 = arith.constant 0 : i32
    %c0_i32_1 = arith.constant 0 : i32
    return %c0_i32, %c0_i32_0 : i32, i32
  }
  func.func @transform_16(%arg0: i32) -> (i32, i32) {
    %c0_i32 = arith.constant 0 : i32
    %c0_i32_0 = arith.constant 0 : i32
    %c0_i32_1 = arith.constant 0 : i32
    return %c0_i32, %c0_i32_0 : i32, i32
  }
  func.func @transform_17(%arg0: i32) -> (i32, i32) {
    %c0_i32 = arith.constant 0 : i32
    %c0_i32_0 = arith.constant 0 : i32
    return %c0_i32, %arg0 : i32, i32
  }
}

</mosaic_0001>

<llo_original>
// kernel: tpu_custom_call.1
$region0: #{tpu_custom_call.1}
  #allocation0 [shape = 'u32[]', space=smem, size = 0x4, offset = 0x4, fixed_abs, tag = 'smem constant byte address 0x4 - core index']
  #allocation1 [shape = 'u32[144,128]{1,0:T(1,128)}', space=vmem, size = 0x12000, scoped, tag = 'internal scratch']
  #allocation2 [shape = 'f32[216,512]{1,0:T(8,128)}', space=vmem, size = 0x6c000, scoped, tag = 'scratch operand']
  #allocation3 [shape = 'f32[16,512]{1,0:T(8,128)}', space=vmem, size = 0x8000, scoped, tag = 'scratch operand']
  %s0 = inlined_call_operand.vmem [shape: f32[8,1024], index: 0, kind: input, shape index: {}]
  %s1 = inlined_call_operand.hbm [shape: f32[27,512], index: 1, kind: input, shape index: {}]
  %s2 = inlined_call_operand.vmem [shape: bf16[8,8], index: 2, kind: input, shape index: {}]
  %s3 = inlined_call_operand.vmem [shape: f32[8,1], index: 3, kind: input, shape index: {}]
  %s4 = inlined_call_operand.vmem [shape: f32[8,1], index: 4, kind: input, shape index: {}]
  %s5 = inlined_call_operand.vmem [shape: bf16[8,8], index: 5, kind: input, shape index: {}]
  %s6 = inlined_call_operand.vmem [shape: f32[8,1], index: 6, kind: input, shape index: {}]
  %s7 = inlined_call_operand.vmem [shape: f32[8,1], index: 7, kind: input, shape index: {}]
  %s8 = inlined_call_operand.vmem [shape: bf16[1,8,8], index: 8, kind: input, shape index: {}]
  %s9 = inlined_call_operand.vmem [shape: f32[1,8,1], index: 9, kind: input, shape index: {}]
  %s10 = inlined_call_operand.vmem [shape: f32[1,8,1], index: 10, kind: input, shape index: {}]
  %s11 = inlined_call_operand.vmem [shape: bf16[1,8,216], index: 11, kind: input, shape index: {}]
  %s12 = inlined_call_operand.vmem [shape: f32[1,8,1], index: 12, kind: input, shape index: {}]
  %s13 = inlined_call_operand.vmem [shape: f32[1,8,1], index: 13, kind: input, shape index: {}]
  %s14 = inlined_call_operand.vmem [shape: bf16[8,16], index: 14, kind: input, shape index: {}]
  %s15 = inlined_call_operand.vmem [shape: f32[8,1], index: 15, kind: input, shape index: {}]
  %s16 = inlined_call_operand.vmem [shape: f32[8,1], index: 16, kind: input, shape index: {}]
  %s17 = inlined_call_operand.hbm [shape: f32[8,1024], index: 17, kind: output, shape index: {}]
  %s18 = sld [smem:[#allocation0]]
  $region105: #{tpu_custom_call.1} parent=0
    _
  %s20 = ssub.s32 1, %s18
  %s21 = scalar_select 0, %s20, %s18
  $region1: #{tpu_custom_call.1} parent=0
    #allocation4 [shape = 'u8[65536]{0}', space=vmem, size = 0x10000, scoped, tag = 'input window, operand 1, single buffered']
    #allocation5 [shape = 's32[2]{0}', space=sflag, size = 0x8, scoped, tag = 'scoped memory for tpu_custom_call.1']
    #allocation6 [shape = 's32[2]{0}', space=sflag, size = 0x8, scoped, tag = 'scoped memory for tpu_custom_call.1']
    #allocation7 [shape = 'u8[32768]{0}', space=vmem, size = 0x8000, scoped, tag = 'output window, operand 0']
    %22 = vsyncpa [#allocation5], 0
    %23 = vsyncpa [#allocation6], 0
    %s24 = scalar_lea.sflag [#allocation6], 1
    %25 = vsyncpa %s24, 0
    loop: start=0, step=1, limit=4
    $region2: #{tpu_custom_call.1} parent=1 // loop_pre_header
      _
    $region3: #{tpu_custom_call.1} parent=1 // loop_header
      %s27 = sphi 0, %s31
      %p28 = scmp.ge.s32.totalorder %s27, 4
      %s37 = sphi 0, %s39
      %s40 = sphi 0, %s37
      %s41 = sphi 0, %s40
      %s57 = sphi 0, %s41
      %s61 = sphi 0, %s61
      %s63 = sphi 0, %s61
      %s64 = sphi 0, %s63
      %s78 = sphi 0, %s64
      %s82 = sphi 0, %s82
      %s84 = sphi 0, %s82
      %s85 = sphi 0, %s84
      %s99 = sphi 0, %s85
      %s103 = sphi 0, %s103
      %s105 = sphi 0, %s103
      %s106 = sphi 0, %s105
      %s120 = sphi 0, %s106
      %s124 = sphi 0, %s124
      %s126 = sphi 0, %s124
      %s127 = sphi 0, %s126
      %s141 = sphi 0, %s127
      %s145 = sphi 0, %s145
      %s147 = sphi 0, %s145
      %s148 = sphi 0, %s147
      %s162 = sphi 0, %s148
      %s166 = sphi 0, %s166
      %s168 = sphi 0, %s166
      %s169 = sphi 0, %s168
      %s183 = sphi 0, %s169
      %s187 = sphi 0, %s187
      %s189 = sphi 0, %s187
      %s190 = sphi 0, %s189
      %s204 = sphi 0, %s190
      %s208 = sphi 0, %s208
      %s210 = sphi 0, %s208
      %s211 = sphi 0, %s210
      %s225 = sphi 0, %s211
      %s229 = sphi 0, %s229
      %s231 = sphi 0, %s229
      %s232 = sphi 0, %s231
      %s246 = sphi 0, %s232
      %s250 = sphi 0, %s250
      %s252 = sphi 0, %s250
      %s253 = sphi 0, %s252
      %s267 = sphi 0, %s253
      %s271 = sphi 0, %s271
      %s273 = sphi 0, %s271
      %s274 = sphi 0, %s273
      %s288 = sphi 0, %s274
      %s292 = sphi 0, %s292
      %s294 = sphi 0, %s292
      %s295 = sphi 0, %s294
      %s309 = sphi 0, %s295
      %s313 = sphi 0, %s313
      %s315 = sphi 0, %s313
      %s316 = sphi 0, %s315
      %s330 = sphi 0, %s316
      %s334 = sphi 0, %s334
      %s336 = sphi 0, %s334
      %s337 = sphi 0, %s336
      %s351 = sphi 0, %s337
      %s355 = sphi 0, %s355
      %s357 = sphi 0, %s355
      %s358 = sphi 0, %s357
      %s372 = sphi 0, %s358
      %s376 = sphi 0, %s376
      %s378 = sphi 0, %s376
      %s379 = sphi 0, %s378
      %s393 = sphi 0, %s379
      %s399 = sphi 0, %s401
      %s402 = sphi 0, %s399
      %s403 = sphi 0, %s402
      %s419 = sphi 0, %s403
    $region4: #{tpu_custom_call.1} parent=1 // loop_header_branch
      %30 = sbr.rel (%p28) target = $region8
    $region5: #{tpu_custom_call.1} parent=1 // loop_body
      %s32 = ssub.s32 %s27, 1
      %s33 = ssub.s32 %s27, 2
      %s34 = sadd.s32 %s27, 1
      %s35 = ssub.s32 %s27, %s34
      %p36 = scmp.eq.s32.totalorder %s35, 0
      %s38 = sadd.s32 %s37, 1
      %s39 = scalar_select %p36, %s37, %s38
      %p42 = pneg %p36
      %p43 = scmp.eq.s32.totalorder %s27, 1
      %p44 = por %p42, %p43
      %p45 = scmp.ne.s32.totalorder %s37, %s40
      %p46 = scmp.eq.s32.totalorder %s27, 0
      %p47 = por %p45, %p46
      %p48 = scmp.ne.s32.totalorder %s37, %s40
      %p49 = scmp.eq.s32.totalorder %s32, 1
      %p50 = por %p48, %p49
      %p51 = scmp.ne.s32.totalorder %s40, %s41
      %p52 = scmp.eq.s32.totalorder %s32, 0
      %p53 = por %p51, %p52
      %p54 = scmp.ne.s32.totalorder %s40, %s41
      %p55 = scmp.eq.s32.totalorder %s33, 1
      %p56 = por %p54, %p55
      %p58 = scmp.ne.s32.totalorder %s41, %s57
      %p59 = scmp.eq.s32.totalorder %s33, 0
      %p60 = por %p58, %p59
      %s62 = sadd.s32 %s61, 1
      %p65 = scmp.eq.s32.totalorder %s27, 1
      %p66 = scmp.ne.s32.totalorder %s61, %s63
      %p67 = scmp.eq.s32.totalorder %s27, 0
      %p68 = por %p66, %p67
      %p69 = scmp.ne.s32.totalorder %s61, %s63
      %p70 = scmp.eq.s32.totalorder %s32, 1
      %p71 = por %p69, %p70
      %p72 = scmp.ne.s32.totalorder %s63, %s64
      %p73 = scmp.eq.s32.totalorder %s32, 0
      %p74 = por %p72, %p73
      %p75 = scmp.ne.s32.totalorder %s63, %s64
      %p76 = scmp.eq.s32.totalorder %s33, 1
      %p77 = por %p75, %p76
      %p79 = scmp.ne.s32.totalorder %s64, %s78
      %p80 = scmp.eq.s32.totalorder %s33, 0
      %p81 = por %p79, %p80
      %s83 = sadd.s32 %s82, 1
      %p86 = scmp.eq.s32.totalorder %s27, 1
      %p87 = scmp.ne.s32.totalorder %s82, %s84
      %p88 = scmp.eq.s32.totalorder %s27, 0
      %p89 = por %p87, %p88
      %p90 = scmp.ne.s32.totalorder %s82, %s84
      %p91 = scmp.eq.s32.totalorder %s32, 1
      %p92 = por %p90, %p91
      %p93 = scmp.ne.s32.totalorder %s84, %s85
      %p94 = scmp.eq.s32.totalorder %s32, 0
      %p95 = por %p93, %p94
      %p96 = scmp.ne.s32.totalorder %s84, %s85
      %p97 = scmp.eq.s32.totalorder %s33, 1
      %p98 = por %p96, %p97
      %p100 = scmp.ne.s32.totalorder %s85, %s99
      %p101 = scmp.eq.s32.totalorder %s33, 0
      %p102 = por %p100, %p101
      %s104 = sadd.s32 %s103, 1
      %p107 = scmp.eq.s32.totalorder %s27, 1
      %p108 = scmp.ne.s32.totalorder %s103, %s105
      %p109 = scmp.eq.s32.totalorder %s27, 0
      %p110 = por %p108, %p109
      %p111 = scmp.ne.s32.totalorder %s103, %s105
      %p112 = scmp.eq.s32.totalorder %s32, 1
      %p113 = por %p111, %p112
      %p114 = scmp.ne.s32.totalorder %s105, %s106
      %p115 = scmp.eq.s32.totalorder %s32, 0
      %p116 = por %p114, %p115
      %p117 = scmp.ne.s32.totalorder %s105, %s106
      %p118 = scmp.eq.s32.totalorder %s33, 1
      %p119 = por %p117, %p118
      %p121 = scmp.ne.s32.totalorder %s106, %s120
      %p122 = scmp.eq.s32.totalorder %s33, 0
      %p123 = por %p121, %p122
      %s125 = sadd.s32 %s124, 1
      %p128 = scmp.eq.s32.totalorder %s27, 1
      %p129 = scmp.ne.s32.totalorder %s124, %s126
      %p130 = scmp.eq.s32.totalorder %s27, 0
      %p131 = por %p129, %p130
      %p132 = scmp.ne.s32.totalorder %s124, %s126
      %p133 = scmp.eq.s32.totalorder %s32, 1
      %p134 = por %p132, %p133
      %p135 = scmp.ne.s32.totalorder %s126, %s127
      %p136 = scmp.eq.s32.totalorder %s32, 0
      %p137 = por %p135, %p136
      %p138 = scmp.ne.s32.totalorder %s126, %s127
      %p139 = scmp.eq.s32.totalorder %s33, 1
      %p140 = por %p138, %p139
      %p142 = scmp.ne.s32.totalorder %s127, %s141
      %p143 = scmp.eq.s32.totalorder %s33, 0
      %p144 = por %p142, %p143
      %s146 = sadd.s32 %s145, 1
      %p149 = scmp.eq.s32.totalorder %s27, 1
      %p150 = scmp.ne.s32.totalorder %s145, %s147
      %p151 = scmp.eq.s32.totalorder %s27, 0
      %p152 = por %p150, %p151
      %p153 = scmp.ne.s32.totalorder %s145, %s147
      %p154 = scmp.eq.s32.totalorder %s32, 1
      %p155 = por %p153, %p154
      %p156 = scmp.ne.s32.totalorder %s147, %s148
      %p157 = scmp.eq.s32.totalorder %s32, 0
      %p158 = por %p156, %p157
      %p159 = scmp.ne.s32.totalorder %s147, %s148
      %p160 = scmp.eq.s32.totalorder %s33, 1
      %p161 = por %p159, %p160
      %p163 = scmp.ne.s32.totalorder %s148, %s162
      %p164 = scmp.eq.s32.totalorder %s33, 0
      %p165 = por %p163, %p164
      %s167 = sadd.s32 %s166, 1
      %p170 = scmp.eq.s32.totalorder %s27, 1
      %p171 = scmp.ne.s32.totalorder %s166, %s168
      %p172 = scmp.eq.s32.totalorder %s27, 0
      %p173 = por %p171, %p172
      %p174 = scmp.ne.s32.totalorder %s166, %s168
      %p175 = scmp.eq.s32.totalorder %s32, 1
      %p176 = por %p174, %p175
      %p177 = scmp.ne.s32.totalorder %s168, %s169
      %p178 = scmp.eq.s32.totalorder %s32, 0
      %p179 = por %p177, %p178
      %p180 = scmp.ne.s32.totalorder %s168, %s169
      %p181 = scmp.eq.s32.totalorder %s33, 1
      %p182 = por %p180, %p181
      %p184 = scmp.ne.s32.totalorder %s169, %s183
      %p185 = scmp.eq.s32.totalorder %s33, 0
      %p186 = por %p184, %p185
      %s188 = sadd.s32 %s187, 1
      %p191 = scmp.eq.s32.totalorder %s27, 1
      %p192 = scmp.ne.s32.totalorder %s187, %s189
      %p193 = scmp.eq.s32.totalorder %s27, 0
      %p194 = por %p192, %p193
      %p195 = scmp.ne.s32.totalorder %s187, %s189
      %p196 = scmp.eq.s32.totalorder %s32, 1
      %p197 = por %p195, %p196
      %p198 = scmp.ne.s32.totalorder %s189, %s190
      %p199 = scmp.eq.s32.totalorder %s32, 0
      %p200 = por %p198, %p199
      %p201 = scmp.ne.s32.totalorder %s189, %s190
      %p202 = scmp.eq.s32.totalorder %s33, 1
      %p203 = por %p201, %p202
      %p205 = scmp.ne.s32.totalorder %s190, %s204
      %p206 = scmp.eq.s32.totalorder %s33, 0
      %p207 = por %p205, %p206
      %s209 = sadd.s32 %s208, 1
      %p212 = scmp.eq.s32.totalorder %s27, 1
      %p213 = scmp.ne.s32.totalorder %s208, %s210
      %p214 = scmp.eq.s32.totalorder %s27, 0
      %p215 = por %p213, %p214
      %p216 = scmp.ne.s32.totalorder %s208, %s210
      %p217 = scmp.eq.s32.totalorder %s32, 1
      %p218 = por %p216, %p217
      %p219 = scmp.ne.s32.totalorder %s210, %s211
      %p220 = scmp.eq.s32.totalorder %s32, 0
      %p221 = por %p219, %p220
      %p222 = scmp.ne.s32.totalorder %s210, %s211
      %p223 = scmp.eq.s32.totalorder %s33, 1
      %p224 = por %p222, %p223
      %p226 = scmp.ne.s32.totalorder %s211, %s225
      %p227 = scmp.eq.s32.totalorder %s33, 0
      %p228 = por %p226, %p227
      %s230 = sadd.s32 %s229, 1
      %p233 = scmp.eq.s32.totalorder %s27, 1
      %p234 = scmp.ne.s32.totalorder %s229, %s231
      %p235 = scmp.eq.s32.totalorder %s27, 0
      %p236 = por %p234, %p235
      %p237 = scmp.ne.s32.totalorder %s229, %s231
      %p238 = scmp.eq.s32.totalorder %s32, 1
      %p239 = por %p237, %p238
      %p240 = scmp.ne.s32.totalorder %s231, %s232
      %p241 = scmp.eq.s32.totalorder %s32, 0
      %p242 = por %p240, %p241
      %p243 = scmp.ne.s32.totalorder %s231, %s232
      %p244 = scmp.eq.s32.totalorder %s33, 1
      %p245 = por %p243, %p244
      %p247 = scmp.ne.s32.totalorder %s232, %s246
      %p248 = scmp.eq.s32.totalorder %s33, 0
      %p249 = por %p247, %p248
      %s251 = sadd.s32 %s250, 1
      %p254 = scmp.eq.s32.totalorder %s27, 1
      %p255 = scmp.ne.s32.totalorder %s250, %s252
      %p256 = scmp.eq.s32.totalorder %s27, 0
      %p257 = por %p255, %p256
      %p258 = scmp.ne.s32.totalorder %s250, %s252
      %p259 = scmp.eq.s32.totalorder %s32, 1
      %p260 = por %p258, %p259
      %p261 = scmp.ne.s32.totalorder %s252, %s253
      %p262 = scmp.eq.s32.totalorder %s32, 0
      %p263 = por %p261, %p262
      %p264 = scmp.ne.s32.totalorder %s252, %s253
      %p265 = scmp.eq.s32.totalorder %s33, 1
      %p266 = por %p264, %p265
      %p268 = scmp.ne.s32.totalorder %s253, %s267
      %p269 = scmp.eq.s32.totalorder %s33, 0
      %p270 = por %p268, %p269
      %s272 = sadd.s32 %s271, 1
      %p275 = scmp.eq.s32.totalorder %s27, 1
      %p276 = scmp.ne.s32.totalorder %s271, %s273
      %p277 = scmp.eq.s32.totalorder %s27, 0
      %p278 = por %p276, %p277
      %p279 = scmp.ne.s32.totalorder %s271, %s273
      %p280 = scmp.eq.s32.totalorder %s32, 1
      %p281 = por %p279, %p280
      %p282 = scmp.ne.s32.totalorder %s273, %s274
      %p283 = scmp.eq.s32.totalorder %s32, 0
      %p284 = por %p282, %p283
      %p285 = scmp.ne.s32.totalorder %s273, %s274
      %p286 = scmp.eq.s32.totalorder %s33, 1
      %p287 = por %p285, %p286
      %p289 = scmp.ne.s32.totalorder %s274, %s288
      %p290 = scmp.eq.s32.totalorder %s33, 0
      %p291 = por %p289, %p290
      %s293 = sadd.s32 %s292, 1
      %p296 = scmp.eq.s32.totalorder %s27, 1
      %p297 = scmp.ne.s32.totalorder %s292, %s294
      %p298 = scmp.eq.s32.totalorder %s27, 0
      %p299 = por %p297, %p298
      %p300 = scmp.ne.s32.totalorder %s292, %s294
      %p301 = scmp.eq.s32.totalorder %s32, 1
      %p302 = por %p300, %p301
      %p303 = scmp.ne.s32.totalorder %s294, %s295
      %p304 = scmp.eq.s32.totalorder %s32, 0
      %p305 = por %p303, %p304
      %p306 = scmp.ne.s32.totalorder %s294, %s295
      %p307 = scmp.eq.s32.totalorder %s33, 1
      %p308 = por %p306, %p307
      %p310 = scmp.ne.s32.totalorder %s295, %s309
      %p311 = scmp.eq.s32.totalorder %s33, 0
      %p312 = por %p310, %p311
      %s314 = sadd.s32 %s313, 1
      %p317 = scmp.eq.s32.totalorder %s27, 1
      %p318 = scmp.ne.s32.totalorder %s313, %s315
      %p319 = scmp.eq.s32.totalorder %s27, 0
      %p320 = por %p318, %p319
      %p321 = scmp.ne.s32.totalorder %s313, %s315
      %p322 = scmp.eq.s32.totalorder %s32, 1
      %p323 = por %p321, %p322
      %p324 = scmp.ne.s32.totalorder %s315, %s316
      %p325 = scmp.eq.s32.totalorder %s32, 0
      %p326 = por %p324, %p325
      %p327 = scmp.ne.s32.totalorder %s315, %s316
      %p328 = scmp.eq.s32.totalorder %s33, 1
      %p329 = por %p327, %p328
      %p331 = scmp.ne.s32.totalorder %s316, %s330
      %p332 = scmp.eq.s32.totalorder %s33, 0
      %p333 = por %p331, %p332
      %s335 = sadd.s32 %s334, 1
      %p338 = scmp.eq.s32.totalorder %s27, 1
      %p339 = scmp.ne.s32.totalorder %s334, %s336
      %p340 = scmp.eq.s32.totalorder %s27, 0
      %p341 = por %p339, %p340
      %p342 = scmp.ne.s32.totalorder %s334, %s336
      %p343 = scmp.eq.s32.totalorder %s32, 1
      %p344 = por %p342, %p343
      %p345 = scmp.ne.s32.totalorder %s336, %s337
      %p346 = scmp.eq.s32.totalorder %s32, 0
      %p347 = por %p345, %p346
      %p348 = scmp.ne.s32.totalorder %s336, %s337
      %p349 = scmp.eq.s32.totalorder %s33, 1
      %p350 = por %p348, %p349
      %p352 = scmp.ne.s32.totalorder %s337, %s351
      %p353 = scmp.eq.s32.totalorder %s33, 0
      %p354 = por %p352, %p353
      %s356 = sadd.s32 %s355, 1
      %p359 = scmp.eq.s32.totalorder %s27, 1
      %p360 = scmp.ne.s32.totalorder %s355, %s357
      %p361 = scmp.eq.s32.totalorder %s27, 0
      %p362 = por %p360, %p361
      %p363 = scmp.ne.s32.totalorder %s355, %s357
      %p364 = scmp.eq.s32.totalorder %s32, 1
      %p365 = por %p363, %p364
      %p366 = scmp.ne.s32.totalorder %s357, %s358
      %p367 = scmp.eq.s32.totalorder %s32, 0
      %p368 = por %p366, %p367
      %p369 = scmp.ne.s32.totalorder %s357, %s358
      %p370 = scmp.eq.s32.totalorder %s33, 1
      %p371 = por %p369, %p370
      %p373 = scmp.ne.s32.totalorder %s358, %s372
      %p374 = scmp.eq.s32.totalorder %s33, 0
      %p375 = por %p373, %p374
      %s377 = sadd.s32 %s376, 1
      %p380 = scmp.eq.s32.totalorder %s27, 1
      %p381 = scmp.ne.s32.totalorder %s376, %s378
      %p382 = scmp.eq.s32.totalorder %s27, 0
      %p383 = por %p381, %p382
      %p384 = scmp.ne.s32.totalorder %s376, %s378
      %p385 = scmp.eq.s32.totalorder %s32, 1
      %p386 = por %p384, %p385
      %p387 = scmp.ne.s32.totalorder %s378, %s379
      %p388 = scmp.eq.s32.totalorder %s32, 0
      %p389 = por %p387, %p388
      %p390 = scmp.ne.s32.totalorder %s378, %s379
      %p391 = scmp.eq.s32.totalorder %s33, 1
      %p392 = por %p390, %p391
      %p394 = scmp.ne.s32.totalorder %s379, %s393
      %p395 = scmp.eq.s32.totalorder %s33, 0
      %p396 = por %p394, %p395
      %s397 = ssub.s32 %s27, %s34
      %p398 = scmp.eq.s32.totalorder %s397, 0
      %s400 = sadd.s32 %s399, 1
      %s401 = scalar_select %p398, %s399, %s400
      %p404 = pneg %p398
      %p405 = scmp.eq.s32.totalorder %s27, 1
      %p406 = por %p404, %p405
      %p407 = scmp.ne.s32.totalorder %s399, %s402
      %p408 = scmp.eq.s32.totalorder %s27, 0
      %p409 = por %p407, %p408
      %p410 = scmp.ne.s32.totalorder %s399, %s402
      %p411 = scmp.eq.s32.totalorder %s32, 1
      %p412 = por %p410, %p411
      %p413 = scmp.ne.s32.totalorder %s402, %s403
      %p414 = scmp.eq.s32.totalorder %s32, 0
      %p415 = por %p413, %p414
      %p416 = scmp.ne.s32.totalorder %s402, %s403
      %p417 = scmp.eq.s32.totalorder %s33, 1
      %p418 = por %p416, %p417
      %p420 = scmp.ne.s32.totalorder %s403, %s419
      %p421 = scmp.eq.s32.totalorder %s33, 0
      %p422 = por %p420, %p421
      %p423 = scmp.le.s32.totalorder 1, %s27
      %p424 = scmp.lt.s32.totalorder %s27, 3
      %p425 = pnand %p423, %p424
      %p426 = pneg %p425
      // Predicated region
      $region9: #{tpu_custom_call.1} parent=5 // pred_check
        _
      $region10: #{tpu_custom_call.1} parent=5 // pred_check_branch
        %428 = sbr.rel (%p425) target = $region12
      $region11: #{tpu_custom_call.1} parent=5 // pred_region
        %s429 = ssub.s32 %s27, 1
        // Predicated region
        $region13: #{tpu_custom_call.1} parent=11 // pred_check
          %p430 = pneg %p74
        $region14: #{tpu_custom_call.1} parent=11 // pred_check_branch
          %432 = sbr.rel (%p430) target = $region16
        $region15: #{tpu_custom_call.1} parent=11 // pred_region
          %s434 = ssub.s32 2048, 2048
          %435 = vsyncadd [#allocation5], %s434
          %s436 = sshll.u32 [#allocation4], 4
          %s437 = int_to_ptr.vmem [resolvable:$true] %s436
          %442 = dma.hbm_to_vmem [thread:$0]  %s1, 2048, %s437, [#allocation5], 512, 512, 32
        $region16: #{tpu_custom_call.1} parent=11 // pred_fallthru
          _
        // Predicated region
        $region17: #{tpu_custom_call.1} parent=11 // pred_check
          %p443 = pneg %p95
        $region18: #{tpu_custom_call.1} parent=11 // pred_check_branch
          %445 = sbr.rel (%p443) target = $region20
        $region19: #{tpu_custom_call.1} parent=11 // pred_region
          _
        $region20: #{tpu_custom_call.1} parent=11 // pred_fallthru
          _
        // Predicated region
        $region21: #{tpu_custom_call.1} parent=11 // pred_check
          %p446 = pneg %p116
        $region22: #{tpu_custom_call.1} parent=11 // pred_check_branch
          %448 = sbr.rel (%p446) target = $region24
        $region23: #{tpu_custom_call.1} parent=11 // pred_region
          _
        $region24: #{tpu_custom_call.1} parent=11 // pred_fallthru
          _
        // Predicated region
        $region25: #{tpu_custom_call.1} parent=11 // pred_check
          %p449 = pneg %p137
        $region26: #{tpu_custom_call.1} parent=11 // pred_check_branch
          %451 = sbr.rel (%p449) target = $region28
        $region27: #{tpu_custom_call.1} parent=11 // pred_region
          _
        $region28: #{tpu_custom_call.1} parent=11 // pred_fallthru
          _
        // Predicated region
        $region29: #{tpu_custom_call.1} parent=11 // pred_check
          %p452 = pneg %p158
        $region30: #{tpu_custom_call.1} parent=11 // pred_check_branch
          %454 = sbr.rel (%p452) target = $region32
        $region31: #{tpu_custom_call.1} parent=11 // pred_region
          _
        $region32: #{tpu_custom_call.1} parent=11 // pred_fallthru
          _
        // Predicated region
        $region33: #{tpu_custom_call.1} parent=11 // pred_check
          %p455 = pneg %p179
        $region34: #{tpu_custom_call.1} parent=11 // pred_check_branch
          %457 = sbr.rel (%p455) target = $region36
        $region35: #{tpu_custom_call.1} parent=11 // pred_region
          _
        $region36: #{tpu_custom_call.1} parent=11 // pred_fallthru
          _
        // Predicated region
        $region37: #{tpu_custom_call.1} parent=11 // pred_check
          %p458 = pneg %p200
        $region38: #{tpu_custom_call.1} parent=11 // pred_check_branch
          %460 = sbr.rel (%p458) target = $region40
        $region39: #{tpu_custom_call.1} parent=11 // pred_region
          _
        $region40: #{tpu_custom_call.1} parent=11 // pred_fallthru
          _
        // Predicated region
        $region41: #{tpu_custom_call.1} parent=11 // pred_check
          %p461 = pneg %p221
        $region42: #{tpu_custom_call.1} parent=11 // pred_check_branch
          %463 = sbr.rel (%p461) target = $region44
        $region43: #{tpu_custom_call.1} parent=11 // pred_region
          _
        $region44: #{tpu_custom_call.1} parent=11 // pred_fallthru
          _
        // Predicated region
        $region45: #{tpu_custom_call.1} parent=11 // pred_check
          %p464 = pneg %p242
        $region46: #{tpu_custom_call.1} parent=11 // pred_check_branch
          %466 = sbr.rel (%p464) target = $region48
        $region47: #{tpu_custom_call.1} parent=11 // pred_region
          _
        $region48: #{tpu_custom_call.1} parent=11 // pred_fallthru
          _
        // Predicated region
        $region49: #{tpu_custom_call.1} parent=11 // pred_check
          %p467 = pneg %p263
        $region50: #{tpu_custom_call.1} parent=11 // pred_check_branch
          %469 = sbr.rel (%p467) target = $region52
        $region51: #{tpu_custom_call.1} parent=11 // pred_region
          _
        $region52: #{tpu_custom_call.1} parent=11 // pred_fallthru
          _
        // Predicated region
        $region53: #{tpu_custom_call.1} parent=11 // pred_check
          %p470 = pneg %p284
        $region54: #{tpu_custom_call.1} parent=11 // pred_check_branch
          %472 = sbr.rel (%p470) target = $region56
        $region55: #{tpu_custom_call.1} parent=11 // pred_region
          _
        $region56: #{tpu_custom_call.1} parent=11 // pred_fallthru
          _
        // Predicated region
        $region57: #{tpu_custom_call.1} parent=11 // pred_check
          %p473 = pneg %p305
        $region58: #{tpu_custom_call.1} parent=11 // pred_check_branch
          %475 = sbr.rel (%p473) target = $region60
        $region59: #{tpu_custom_call.1} parent=11 // pred_region
          _
        $region60: #{tpu_custom_call.1} parent=11 // pred_fallthru
          _
        // Predicated region
        $region61: #{tpu_custom_call.1} parent=11 // pred_check
          %p476 = pneg %p326
        $region62: #{tpu_custom_call.1} parent=11 // pred_check_branch
          %478 = sbr.rel (%p476) target = $region64
        $region63: #{tpu_custom_call.1} parent=11 // pred_region
          _
        $region64: #{tpu_custom_call.1} parent=11 // pred_fallthru
          _
        // Predicated region
        $region65: #{tpu_custom_call.1} parent=11 // pred_check
          %p479 = pneg %p347
        $region66: #{tpu_custom_call.1} parent=11 // pred_check_branch
          %481 = sbr.rel (%p479) target = $region68
        $region67: #{tpu_custom_call.1} parent=11 // pred_region
          _
        $region68: #{tpu_custom_call.1} parent=11 // pred_fallthru
          _
        // Predicated region
        $region69: #{tpu_custom_call.1} parent=11 // pred_check
          %p482 = pneg %p368
        $region70: #{tpu_custom_call.1} parent=11 // pred_check_branch
          %484 = sbr.rel (%p482) target = $region72
        $region71: #{tpu_custom_call.1} parent=11 // pred_region
          _
        $region72: #{tpu_custom_call.1} parent=11 // pred_fallthru
          _
        // Predicated region
        $region73: #{tpu_custom_call.1} parent=11 // pred_check
          %p485 = pneg %p389
        $region74: #{tpu_custom_call.1} parent=11 // pred_check_branch
          %487 = sbr.rel (%p485) target = $region76
        $region75: #{tpu_custom_call.1} parent=11 // pred_region
          _
        $region76: #{tpu_custom_call.1} parent=11 // pred_fallthru
          _
      $region12: #{tpu_custom_call.1} parent=5 // pred_fallthru
        _
      %p488 = scmp.lt.s32.totalorder %s27, 2
      // Predicated region
      $region77: #{tpu_custom_call.1} parent=5 // pred_check
        %p489 = pneg %p488
      $region78: #{tpu_custom_call.1} parent=5 // pred_check_branch
        %491 = sbr.rel (%p489) target = $region80
      $region79: #{tpu_custom_call.1} parent=5 // pred_region
        // Predicated region
        $region81: #{tpu_custom_call.1} parent=79 // pred_check
          %p492 = pneg %p47
        $region82: #{tpu_custom_call.1} parent=79 // pred_check_branch
          %494 = sbr.rel (%p492) target = $region84
        $region83: #{tpu_custom_call.1} parent=79 // pred_region
          %s495 = smul.u32 4, %s27
          %p496 = scmp.lt.s32.totalorder %s495, 7
          %s497 = scalar_select %p496, %s495, 7
          %s498 = smul.addr %s497, 8
          %s499 = scalar_lea.vmem %s0, %s498
          %s500 = smul.u32 4, %s27
        $region84: #{tpu_custom_call.1} parent=79 // pred_fallthru
          _
      $region80: #{tpu_custom_call.1} parent=5 // pred_fallthru
        _
      %p501 = scmp.le.s32.totalorder 1, %s27
      %p502 = scmp.lt.s32.totalorder %s27, 3
      %p503 = pnand %p501, %p502
      %p504 = pneg %p503
      // Predicated region
      $region85: #{tpu_custom_call.1} parent=5 // pred_check
        _
      $region86: #{tpu_custom_call.1} parent=5 // pred_check_branch
        %506 = sbr.rel (%p503) target = $region88
      $region87: #{tpu_custom_call.1} parent=5 // pred_region
        %s507 = ssub.s32 %s27, 1
        // Predicated region
        $region89: #{tpu_custom_call.1} parent=87 // pred_check
          %p508 = pneg %p74
        $region90: #{tpu_custom_call.1} parent=87 // pred_check_branch
          %510 = sbr.rel (%p508) target = $region92
        $region91: #{tpu_custom_call.1} parent=87 // pred_region
          %511 = dma.done [#allocation5], 2048
        $region92: #{tpu_custom_call.1} parent=87 // pred_fallthru
          _
        %s512 = smul.u32 4, %s32
        %p513 = scmp.lt.s32.totalorder %s512, 7
        %s514 = scalar_select %p513, %s512, 7
        %s515 = smul.addr %s514, 8
        %s516 = scalar_lea.vmem %s0, %s515
        %p517 = pneg %p53
        %p518 = pneg %p50
        %p519 = pneg %p74
        %p520 = pneg %p71
        %p521 = pneg %p95
        %p522 = pneg %p92
        %p523 = pneg %p116
        %p524 = pneg %p113
        %p525 = pneg %p137
        %p526 = pneg %p134
        %p527 = pneg %p158
        %p528 = pneg %p155
        %p529 = pneg %p179
        %p530 = pneg %p176
        %p531 = pneg %p200
        %p532 = pneg %p197
        %p533 = pneg %p221
        %p534 = pneg %p218
        %p535 = pneg %p242
        %p536 = pneg %p239
        %p537 = pneg %p263
        %p538 = pneg %p260
        %p539 = pneg %p284
        %p540 = pneg %p281
        %p541 = pneg %p305
        %p542 = pneg %p302
        %p543 = pneg %p326
        %p544 = pneg %p323
        %p545 = pneg %p347
        %p546 = pneg %p344
        %p547 = pneg %p368
        %p548 = pneg %p365
        %p549 = pneg %p389
        %p550 = pneg %p386
        %p551 = pneg %p415
        %p552 = pneg %p412
        %s553 = sand.u32 %s402, 1
        %s554 = scalar_lea.sflag [#allocation6], %s553
        %s555 = sand.u32 %s402, 1
        %s556 = smul.addr %s555, 32
        %s557 = scalar_lea.vmem [#allocation7], %s556
        %s558 = smul.u32 4, %s32
        %p559 = scmp.lt.s32.totalorder %s558, 7
        %s560 = scalar_select %p559, %s558, 7
        %s561 = smul.addr %s560, 8
        %s562 = scalar_lea.vmem %s0, %s561
        %s563 = smul.u32 4, %s32
        %s564 = smul.u32 4, %s32
        %v566 = vld [vmem:[%s562] sm:$0xff]
        %v567 = vld [vmem:[%s562 + $0x8] sm:$0xff]
        %v568 = vld [vmem:[%s562 + $0x10] sm:$0xff]
        %v569 = vld [vmem:[%s562 + $0x18] sm:$0xff]
        %v570 = vpack.c.bf16 %v566, %v566
        %v571 = vpack.c.bf16 %v567, %v567
        %v572 = vpack.c.bf16 %v568, %v568
        %v573 = vpack.c.bf16 %v569, %v569
        %v574 = vld [vmem:[%s2] sm:$0xf]
        %v575 = vld [vmem:[%s3] sm:$0xff]
        %v576 = vld [vmem:[%s4] sm:$0xff]
        %vm577 = vcmask 64512
        %v579 = vsel %vm577, %v574, 0
        %vm581 = vcmask 1043456
        %v583 = vsel %vm581, %v570, 0
        %v586 = vsel %vm581, %v571, 0
        %v589 = vsel %vm581, %v572, 0
        %v592 = vsel %vm581, %v573, 0
        %594 = vmatprep.subr.bf16.mxu0 %v586
        %595 = vmatpush1.bf16.msra.mxu0 %v583
        %596 = vmatprep.subr.bf16.mxu0 0
        %597 = vmatpush1.bf16.msra.mxu0 0
        %598 = vmatprep.subr.bf16.mxu0 0
        %599 = vmatpush1.bf16.msra.mxu0 0
        %600 = vmatprep.subr.bf16.mxu0 0
        %601 = vmatpush1.bf16.msra.mxu0 0
        %602 = vmatprep.subr.bf16.mxu0 0
        %603 = vmatpush1.bf16.msra.mxu0 0
        %604 = vmatprep.subr.bf16.mxu0 0
        %605 = vmatpush1.bf16.msra.mxu0 0
        %606 = vmatprep.subr.bf16.mxu0 0
        %607 = vmatpush1.bf16.msra.mxu0 0
        %608 = vmatprep.subr.bf16.mxu0 0
        %609 = vmatpush1.bf16.msra.mxu0 0
        %610 = vmatprep.subr.bf16.mxu0 0
        %611 = vmatpush1.bf16.msra.mxu0 0
        %612 = vmatprep.subr.bf16.mxu0 0
        %613 = vmatpush1.bf16.msra.mxu0 0
        %614 = vmatprep.subr.bf16.mxu0 0
        %615 = vmatpush1.bf16.msra.mxu0 0
        %616 = vmatprep.subr.bf16.mxu0 0
        %617 = vmatpush1.bf16.msra.mxu0 0
        %618 = vmatprep.subr.bf16.mxu0 0
        %619 = vmatpush1.bf16.msra.mxu0 0
        %620 = vmatprep.subr.bf16.mxu0 0
        %621 = vmatpush1.bf16.msra.mxu0 0
        %622 = vmatprep.subr.bf16.mxu0 0
        %623 = vmatpush1.bf16.msra.mxu0 0
        %624 = vmatprep.subr.bf16.mxu0 0
        %625 = vmatpush1.bf16.msra.mxu0 0
        %626 = vmatprep.mubr.bf16.mxu0 0
        %627 = vmatmul.mubr.bf16.gmra.mrb[0].mxu0 %v579
        %v628 = vpop.f32.mrb[0].mxu0
        %v629 = vadd.f32 0.0, %v628
        %v630 = vpop.f32.mrb[0].mxu0
        %v631 = vadd.f32 0.0, %v630
        %v632 = vpop.f32.mrb[0].mxu0
        %v633 = vpop.f32.mrb[0].mxu0
        %634 = vdwg.mxu0
        %635 = vmatprep.subr.bf16.mxu0 %v592
        %636 = vmatpush1.bf16.msra.mxu0 %v589
        %637 = vmatprep.subr.bf16.mxu0 0
        %638 = vmatpush1.bf16.msra.mxu0 0
        %639 = vmatprep.subr.bf16.mxu0 0
        %640 = vmatpush1.bf16.msra.mxu0 0
        %641 = vmatprep.subr.bf16.mxu0 0
        %642 = vmatpush1.bf16.msra.mxu0 0
        %643 = vmatprep.subr.bf16.mxu0 0
        %644 = vmatpush1.bf16.msra.mxu0 0
        %645 = vmatprep.subr.bf16.mxu0 0
        %646 = vmatpush1.bf16.msra.mxu0 0
        %647 = vmatprep.subr.bf16.mxu0 0
        %648 = vmatpush1.bf16.msra.mxu0 0
        %649 = vmatprep.subr.bf16.mxu0 0
        %650 = vmatpush1.bf16.msra.mxu0 0
        %651 = vmatprep.subr.bf16.mxu0 0
        %652 = vmatpush1.bf16.msra.mxu0 0
        %653 = vmatprep.subr.bf16.mxu0 0
        %654 = vmatpush1.bf16.msra.mxu0 0
        %655 = vmatprep.subr.bf16.mxu0 0
        %656 = vmatpush1.bf16.msra.mxu0 0
        %657 = vmatprep.subr.bf16.mxu0 0
        %658 = vmatpush1.bf16.msra.mxu0 0
        %659 = vmatprep.subr.bf16.mxu0 0
        %660 = vmatpush1.bf16.msra.mxu0 0
        %661 = vmatprep.subr.bf16.mxu0 0
        %662 = vmatpush1.bf16.msra.mxu0 0
        %663 = vmatprep.subr.bf16.mxu0 0
        %664 = vmatpush1.bf16.msra.mxu0 0
        %665 = vmatprep.subr.bf16.mxu0 0
        %666 = vmatpush1.bf16.msra.mxu0 0
        %667 = vmatprep.mubr.bf16.mxu0 0
        %668 = vmatmul.mubr.bf16.gmra.mrb[0].mxu0 %v579
        %v669 = vpop.f32.mrb[0].mxu0
        %v670 = vadd.f32 0.0, %v669
        %v671 = vpop.f32.mrb[0].mxu0
        %v672 = vadd.f32 0.0, %v671
        %v673 = vpop.f32.mrb[0].mxu0
        %v674 = vpop.f32.mrb[0].mxu0
        %675 = vdwg.mxu0
        %677 = vset.pattern.permute.xlu0 0
        %678 = vperm.xlu0 %677, %v575
        %v679 = vpop.permute.xlu0 %678
        %v681 = vmul.f32 %v629, %v679
        %v682 = vmul.f32 %v631, %v679
        %v683 = vmul.f32 %v670, %v679
        %v684 = vmul.f32 %v672, %v679
        %686 = vset.pattern.permute.xlu0 0
        %687 = vperm.xlu0 %686, %v576
        %v688 = vpop.permute.xlu0 %687
        %v690 = vadd.f32 %v681, %v688
        %v691 = vadd.f32 %v682, %v688
        %v692 = vadd.f32 %v683, %v688
        %v693 = vadd.f32 %v684, %v688
        %v694 = vxor.u32 %v690, 2147483648
        %v695 = vxor.u32 %v691, 2147483648
        %v696 = vxor.u32 %v692, 2147483648
        %v697 = vxor.u32 %v693, 2147483648
        %v698 = vmul.f32 %v694, 1.442695
        %v699 = vpow.pop %v698
        %v700 = vmul.f32 %v695, 1.442695
        %v701 = vpow.pop %v700
        %v702 = vmul.f32 %v696, 1.442695
        %v703 = vpow.pop %v702
        %v704 = vmul.f32 %v697, 1.442695
        %v705 = vpow.pop %v704
        %v706 = vadd.f32 %v699, 1.0
        %v707 = vadd.f32 %v701, 1.0
        %v708 = vadd.f32 %v703, 1.0
        %v709 = vadd.f32 %v705, 1.0
        %v710 = vrcp.pop %v706
        %v711 = vmul.f32 1.0, %v710
        %v712 = vrcp.pop %v707
        %v713 = vmul.f32 1.0, %v712
        %v714 = vrcp.pop %v708
        %v715 = vmul.f32 1.0, %v714
        %v716 = vrcp.pop %v709
        %v717 = vmul.f32 1.0, %v716
        %v718 = vmul.f32 %v690, %v711
        %v719 = vmul.f32 %v691, %v713
        %v720 = vmul.f32 %v692, %v715
        %v721 = vmul.f32 %v693, %v717
        %v722 = vld [vmem:[%s5] sm:$0xf]
        %v723 = vld [vmem:[%s6] sm:$0xff]
        %v724 = vld [vmem:[%s7] sm:$0xff]
        %v726 = vsel %vm577, %v722, 0
        %728 = vmatprep.subr.bf16.mxu0 %v586
        %729 = vmatpush1.bf16.msra.mxu0 %v583
        %730 = vmatprep.subr.bf16.mxu0 0
        %731 = vmatpush1.bf16.msra.mxu0 0
        %732 = vmatprep.subr.bf16.mxu0 0
        %733 = vmatpush1.bf16.msra.mxu0 0
        %734 = vmatprep.subr.bf16.mxu0 0
        %735 = vmatpush1.bf16.msra.mxu0 0
        %736 = vmatprep.subr.bf16.mxu0 0
        %737 = vmatpush1.bf16.msra.mxu0 0
        %738 = vmatprep.subr.bf16.mxu0 0
        %739 = vmatpush1.bf16.msra.mxu0 0
        %740 = vmatprep.subr.bf16.mxu0 0
        %741 = vmatpush1.bf16.msra.mxu0 0
        %742 = vmatprep.subr.bf16.mxu0 0
        %743 = vmatpush1.bf16.msra.mxu0 0
        %744 = vmatprep.subr.bf16.mxu0 0
        %745 = vmatpush1.bf16.msra.mxu0 0
        %746 = vmatprep.subr.bf16.mxu0 0
        %747 = vmatpush1.bf16.msra.mxu0 0
        %748 = vmatprep.subr.bf16.mxu0 0
        %749 = vmatpush1.bf16.msra.mxu0 0
        %750 = vmatprep.subr.bf16.mxu0 0
        %751 = vmatpush1.bf16.msra.mxu0 0
        %752 = vmatprep.subr.bf16.mxu0 0
        %753 = vmatpush1.bf16.msra.mxu0 0
        %754 = vmatprep.subr.bf16.mxu0 0
        %755 = vmatpush1.bf16.msra.mxu0 0
        %756 = vmatprep.subr.bf16.mxu0 0
        %757 = vmatpush1.bf16.msra.mxu0 0
        %758 = vmatprep.subr.bf16.mxu0 0
        %759 = vmatpush1.bf16.msra.mxu0 0
        %760 = vmatprep.mubr.bf16.mxu0 0
        %761 = vmatmul.mubr.bf16.gmra.mrb[0].mxu0 %v726
        %v762 = vpop.f32.mrb[0].mxu0
        %v763 = vadd.f32 0.0, %v762
        %v764 = vpop.f32.mrb[0].mxu0
        %v765 = vadd.f32 0.0, %v764
        %v766 = vpop.f32.mrb[0].mxu0
        %v767 = vpop.f32.mrb[0].mxu0
        %768 = vdwg.mxu0
        %769 = vmatprep.subr.bf16.mxu0 %v592
        %770 = vmatpush1.bf16.msra.mxu0 %v589
        %771 = vmatprep.subr.bf16.mxu0 0
        %772 = vmatpush1.bf16.msra.mxu0 0
        %773 = vmatprep.subr.bf16.mxu0 0
        %774 = vmatpush1.bf16.msra.mxu0 0
        %775 = vmatprep.subr.bf16.mxu0 0
        %776 = vmatpush1.bf16.msra.mxu0 0
        %777 = vmatprep.subr.bf16.mxu0 0
        %778 = vmatpush1.bf16.msra.mxu0 0
        %779 = vmatprep.subr.bf16.mxu0 0
        %780 = vmatpush1.bf16.msra.mxu0 0
        %781 = vmatprep.subr.bf16.mxu0 0
        %782 = vmatpush1.bf16.msra.mxu0 0
        %783 = vmatprep.subr.bf16.mxu0 0
        %784 = vmatpush1.bf16.msra.mxu0 0
        %785 = vmatprep.subr.bf16.mxu0 0
        %786 = vmatpush1.bf16.msra.mxu0 0
        %787 = vmatprep.subr.bf16.mxu0 0
        %788 = vmatpush1.bf16.msra.mxu0 0
        %789 = vmatprep.subr.bf16.mxu0 0
        %790 = vmatpush1.bf16.msra.mxu0 0
        %791 = vmatprep.subr.bf16.mxu0 0
        %792 = vmatpush1.bf16.msra.mxu0 0
        %793 = vmatprep.subr.bf16.mxu0 0
        %794 = vmatpush1.bf16.msra.mxu0 0
        %795 = vmatprep.subr.bf16.mxu0 0
        %796 = vmatpush1.bf16.msra.mxu0 0
        %797 = vmatprep.subr.bf16.mxu0 0
        %798 = vmatpush1.bf16.msra.mxu0 0
        %799 = vmatprep.subr.bf16.mxu0 0
        %800 = vmatpush1.bf16.msra.mxu0 0
        %801 = vmatprep.mubr.bf16.mxu0 0
        %802 = vmatmul.mubr.bf16.gmra.mrb[0].mxu0 %v726
        %v803 = vpop.f32.mrb[0].mxu0
        %v804 = vadd.f32 0.0, %v803
        %v805 = vpop.f32.mrb[0].mxu0
        %v806 = vadd.f32 0.0, %v805
        %v807 = vpop.f32.mrb[0].mxu0
        %v808 = vpop.f32.mrb[0].mxu0
        %809 = vdwg.mxu0
        %811 = vset.pattern.permute.xlu0 0
        %812 = vperm.xlu0 %811, %v723
        %v813 = vpop.permute.xlu0 %812
        %v815 = vmul.f32 %v763, %v813
        %v816 = vmul.f32 %v765, %v813
        %v817 = vmul.f32 %v804, %v813
        %v818 = vmul.f32 %v806, %v813
        %820 = vset.pattern.permute.xlu0 0
        %821 = vperm.xlu0 %820, %v724
        %v822 = vpop.permute.xlu0 %821
        %v824 = vadd.f32 %v815, %v822
        %v825 = vadd.f32 %v816, %v822
        %v826 = vadd.f32 %v817, %v822
        %v827 = vadd.f32 %v818, %v822
        %v828 = vxor.u32 %v824, 2147483648
        %v829 = vxor.u32 %v825, 2147483648
        %v830 = vxor.u32 %v826, 2147483648
        %v831 = vxor.u32 %v827, 2147483648
        %v832 = vmul.f32 %v828, 1.442695
        %v833 = vpow.pop %v832
        %v834 = vmul.f32 %v829, 1.442695
        %v835 = vpow.pop %v834
        %v836 = vmul.f32 %v830, 1.442695
        %v837 = vpow.pop %v836
        %v838 = vmul.f32 %v831, 1.442695
        %v839 = vpow.pop %v838
        %v840 = vadd.f32 %v833, 1.0
        %v841 = vadd.f32 %v835, 1.0
        %v842 = vadd.f32 %v837, 1.0
        %v843 = vadd.f32 %v839, 1.0
        %v844 = vrcp.pop %v840
        %v845 = vmul.f32 1.0, %v844
        %v846 = vrcp.pop %v841
        %v847 = vmul.f32 1.0, %v846
        %v848 = vrcp.pop %v842
        %v849 = vmul.f32 1.0, %v848
        %v850 = vrcp.pop %v843
        %v851 = vmul.f32 1.0, %v850
        %v852 = vmul.f32 %v824, %v845
        %v853 = vmul.f32 %v825, %v847
        %v854 = vmul.f32 %v826, %v849
        %v855 = vmul.f32 %v827, %v851
        %v856 = vld [vmem:[%s8] sm:$0xf]
        %v857 = vpack.c.bf16 %v718, %v718
        %v858 = vpack.c.bf16 %v719, %v719
        %v859 = vpack.c.bf16 %v720, %v720
        %v860 = vpack.c.bf16 %v721, %v721
        %v861 = vld [vmem:[%s9] sm:$0xff]
        %v862 = vld [vmem:[%s10] sm:$0xff]
        %v864 = vsel %vm577, %v856, 0
        %v867 = vsel %vm581, %v857, 0
        %v870 = vsel %vm581, %v858, 0
        %v873 = vsel %vm581, %v859, 0
        %v876 = vsel %vm581, %v860, 0
        %878 = vmatprep.subr.bf16.mxu0 %v870
        %879 = vmatpush1.bf16.msra.mxu0 %v867
        %880 = vmatprep.subr.bf16.mxu0 0
        %881 = vmatpush1.bf16.msra.mxu0 0
        %882 = vmatprep.subr.bf16.mxu0 0
        %883 = vmatpush1.bf16.msra.mxu0 0
        %884 = vmatprep.subr.bf16.mxu0 0
        %885 = vmatpush1.bf16.msra.mxu0 0
        %886 = vmatprep.subr.bf16.mxu0 0
        %887 = vmatpush1.bf16.msra.mxu0 0
        %888 = vmatprep.subr.bf16.mxu0 0
        %889 = vmatpush1.bf16.msra.mxu0 0
        %890 = vmatprep.subr.bf16.mxu0 0
        %891 = vmatpush1.bf16.msra.mxu0 0
        %892 = vmatprep.subr.bf16.mxu0 0
        %893 = vmatpush1.bf16.msra.mxu0 0
        %894 = vmatprep.subr.bf16.mxu0 0
        %895 = vmatpush1.bf16.msra.mxu0 0
        %896 = vmatprep.subr.bf16.mxu0 0
        %897 = vmatpush1.bf16.msra.mxu0 0
        %898 = vmatprep.subr.bf16.mxu0 0
        %899 = vmatpush1.bf16.msra.mxu0 0
        %900 = vmatprep.subr.bf16.mxu0 0
        %901 = vmatpush1.bf16.msra.mxu0 0
        %902 = vmatprep.subr.bf16.mxu0 0
        %903 = vmatpush1.bf16.msra.mxu0 0
        %904 = vmatprep.subr.bf16.mxu0 0
        %905 = vmatpush1.bf16.msra.mxu0 0
        %906 = vmatprep.subr.bf16.mxu0 0
        %907 = vmatpush1.bf16.msra.mxu0 0
        %908 = vmatprep.subr.bf16.mxu0 0
        %909 = vmatpush1.bf16.msra.mxu0 0
        %910 = vmatprep.mubr.bf16.mxu0 0
        %911 = vmatmul.mubr.bf16.gmra.mrb[0].mxu0 %v864
        %v912 = vpop.f32.mrb[0].mxu0
        %v913 = vadd.f32 0.0, %v912
        %v914 = vpop.f32.mrb[0].mxu0
        %v915 = vadd.f32 0.0, %v914
        %v916 = vpop.f32.mrb[0].mxu0
        %v917 = vpop.f32.mrb[0].mxu0
        %918 = vdwg.mxu0
        %919 = vmatprep.subr.bf16.mxu0 %v876
        %920 = vmatpush1.bf16.msra.mxu0 %v873
        %921 = vmatprep.subr.bf16.mxu0 0
        %922 = vmatpush1.bf16.msra.mxu0 0
        %923 = vmatprep.subr.bf16.mxu0 0
        %924 = vmatpush1.bf16.msra.mxu0 0
        %925 = vmatprep.subr.bf16.mxu0 0
        %926 = vmatpush1.bf16.msra.mxu0 0
        %927 = vmatprep.subr.bf16.mxu0 0
        %928 = vmatpush1.bf16.msra.mxu0 0
        %929 = vmatprep.subr.bf16.mxu0 0
        %930 = vmatpush1.bf16.msra.mxu0 0
        %931 = vmatprep.subr.bf16.mxu0 0
        %932 = vmatpush1.bf16.msra.mxu0 0
        %933 = vmatprep.subr.bf16.mxu0 0
        %934 = vmatpush1.bf16.msra.mxu0 0
        %935 = vmatprep.subr.bf16.mxu0 0
        %936 = vmatpush1.bf16.msra.mxu0 0
        %937 = vmatprep.subr.bf16.mxu0 0
        %938 = vmatpush1.bf16.msra.mxu0 0
        %939 = vmatprep.subr.bf16.mxu0 0
        %940 = vmatpush1.bf16.msra.mxu0 0
        %941 = vmatprep.subr.bf16.mxu0 0
        %942 = vmatpush1.bf16.msra.mxu0 0
        %943 = vmatprep.subr.bf16.mxu0 0
        %944 = vmatpush1.bf16.msra.mxu0 0
        %945 = vmatprep.subr.bf16.mxu0 0
        %946 = vmatpush1.bf16.msra.mxu0 0
        %947 = vmatprep.subr.bf16.mxu0 0
        %948 = vmatpush1.bf16.msra.mxu0 0
        %949 = vmatprep.subr.bf16.mxu0 0
        %950 = vmatpush1.bf16.msra.mxu0 0
        %951 = vmatprep.mubr.bf16.mxu0 0
        %952 = vmatmul.mubr.bf16.gmra.mrb[0].mxu0 %v864
        %v953 = vpop.f32.mrb[0].mxu0
        %v954 = vadd.f32 0.0, %v953
        %v955 = vpop.f32.mrb[0].mxu0
        %v956 = vadd.f32 0.0, %v955
        %v957 = vpop.f32.mrb[0].mxu0
        %v958 = vpop.f32.mrb[0].mxu0
        %959 = vdwg.mxu0
        %961 = vset.pattern.permute.xlu0 0
        %962 = vperm.xlu0 %961, %v861
        %v963 = vpop.permute.xlu0 %962
        %v965 = vmul.f32 %v913, %v963
        %v966 = vmul.f32 %v915, %v963
        %v967 = vmul.f32 %v954, %v963
        %v968 = vmul.f32 %v956, %v963
        %970 = vset.pattern.permute.xlu0 0
        %971 = vperm.xlu0 %970, %v862
        %v972 = vpop.permute.xlu0 %971
        %v974 = vadd.f32 %v965, %v972
        %v975 = vadd.f32 %v966, %v972
        %v976 = vadd.f32 %v967, %v972
        %v977 = vadd.f32 %v968, %v972
        %v978 = vxor.u32 %v974, 2147483648
        %v979 = vxor.u32 %v975, 2147483648
        %v980 = vxor.u32 %v976, 2147483648
        %v981 = vxor.u32 %v977, 2147483648
        %v982 = vmul.f32 %v978, 1.442695
        %v983 = vpow.pop %v982
        %v984 = vmul.f32 %v979, 1.442695
        %v985 = vpow.pop %v984
        %v986 = vmul.f32 %v980, 1.442695
        %v987 = vpow.pop %v986
        %v988 = vmul.f32 %v981, 1.442695
        %v989 = vpow.pop %v988
        %v990 = vadd.f32 %v983, 1.0
        %v991 = vadd.f32 %v985, 1.0
        %v992 = vadd.f32 %v987, 1.0
        %v993 = vadd.f32 %v989, 1.0
        %v994 = vrcp.pop %v990
        %v995 = vmul.f32 1.0, %v994
        %v996 = vrcp.pop %v991
        %v997 = vmul.f32 1.0, %v996
        %v998 = vrcp.pop %v992
        %v999 = vmul.f32 1.0, %v998
        %v1000 = vrcp.pop %v993
        %v1001 = vmul.f32 1.0, %v1000
        %v1002 = vmul.f32 %v974, %v995
        %v1003 = vmul.f32 %v975, %v997
        %v1004 = vmul.f32 %v976, %v999
        %v1005 = vmul.f32 %v977, %v1001
        %1006 = vrot.lane.b32.xlu0 %v1002, 73
        %v1007 = vpop.permute.xlu0 %1006
        %1008 = vrot.lane.b32.xlu0 %v1003, 73
        %v1009 = vpop.permute.xlu0 %1008
        %1010 = vrot.lane.b32.xlu0 %v1004, 73
        %v1011 = vpop.permute.xlu0 %1010
        %1012 = vrot.lane.b32.xlu0 %v1005, 73
        %v1013 = vpop.permute.xlu0 %1012
        %v1014 = vlaneseq
        %v1015 = vand.u32 %v1014, 127
        %vm1016 = vcmp.lt.s32.totalorder %v1015, 73
        %v1017 = vsel %vm1016, %v1011, %v1013
        %v1018 = vsel %vm1016, %v1009, %v1011
        %v1019 = vsel %vm1016, %v1007, %v1009
        %v1020 = vsel %vm1016, %v1013, %v1007
        %v1021 = vld [vmem:[#allocation4] ss:$8 sm:$0xf]
        %v1023 = vlaneseq
        %v1024 = vshrl.u32 %v1023, 7
        %v1025 = vsub.s32 0, %v1024
        %v1026 = vrot.slane %v1021, %v1025
        %v1027 = vlaneseq
        %v1028 = vshrl.u32 %v1027, 7
        %v1029 = vsub.s32 1, %v1028
        %v1030 = vrot.slane %v1021, %v1029
        %v1031 = vlaneseq
        %v1032 = vshrl.u32 %v1031, 7
        %v1033 = vsub.s32 2, %v1032
        %v1034 = vrot.slane %v1021, %v1033
        %v1035 = vlaneseq
        %v1036 = vshrl.u32 %v1035, 7
        %v1037 = vsub.s32 3, %v1036
        %v1038 = vrot.slane %v1021, %v1037
        %v1043 = vmul.f32 %v1020, %v1026
        %v1044 = vmul.f32 %v1019, %v1030
        %v1045 = vmul.f32 %v1018, %v1034
        %v1046 = vmul.f32 %v1017, %v1038
        %1047 = vst [vmem:[#allocation2] sm:$0xff] %v1043
        %1048 = vst [vmem:[#allocation2 + $0x8] sm:$0xff] %v1044
        %1049 = vst [vmem:[#allocation2 + $0x10] sm:$0xff] %v1045
        %1050 = vst [vmem:[#allocation2 + $0x18] sm:$0xff] %v1046
        %1051 = vrot.lane.b32.xlu0 %v1002, 72
        %v1052 = vpop.permute.xlu0 %1051
        %1053 = vrot.lane.b32.xlu0 %v1003, 72
        %v1054 = vpop.permute.xlu0 %1053
        %1055 = vrot.lane.b32.xlu0 %v1004, 72
        %v1056 = vpop.permute.xlu0 %1055
        %1057 = vrot.lane.b32.xlu0 %v1005, 72
        %v1058 = vpop.permute.xlu0 %1057
        %vm1059 = vcmp.lt.s32.totalorder %v1015, 72
        %v1060 = vsel %vm1059, %v1056, %v1058
        %v1061 = vsel %vm1059, %v1054, %v1056
        %v1062 = vsel %vm1059, %v1052, %v1054
        %v1063 = vsel %vm1059, %v1058, %v1052
        %s1064 = scalar_lea.vmem [#allocation4], 1
        %v1065 = vld [vmem:[%s1064] ss:$8 sm:$0xf]
        %v1067 = vlaneseq
        %v1068 = vshrl.u32 %v1067, 7
        %v1069 = vsub.s32 0, %v1068
        %v1070 = vrot.slane %v1065, %v1069
        %v1071 = vlaneseq
        %v1072 = vshrl.u32 %v1071, 7
        %v1073 = vsub.s32 1, %v1072
        %v1074 = vrot.slane %v1065, %v1073
        %v1075 = vlaneseq
        %v1076 = vshrl.u32 %v1075, 7
        %v1077 = vsub.s32 2, %v1076
        %v1078 = vrot.slane %v1065, %v1077
        %v1079 = vlaneseq
        %v1080 = vshrl.u32 %v1079, 7
        %v1081 = vsub.s32 3, %v1080
        %v1082 = vrot.slane %v1065, %v1081
        %v1087 = vmul.f32 %v1063, %v1070
        %v1088 = vmul.f32 %v1062, %v1074
        %v1089 = vmul.f32 %v1061, %v1078
        %v1090 = vmul.f32 %v1060, %v1082
        %1091 = vst [vmem:[#allocation2 + $0x20] sm:$0xff] %v1087
        %1092 = vst [vmem:[#allocation2 + $0x28] sm:$0xff] %v1088
        %1093 = vst [vmem:[#allocation2 + $0x30] sm:$0xff] %v1089
        %1094 = vst [vmem:[#allocation2 + $0x38] sm:$0xff] %v1090
        %1095 = vrot.lane.b32.xlu0 %v1002, 71
        %v1096 = vpop.permute.xlu0 %1095
        %1097 = vrot.lane.b32.xlu0 %v1003, 71
        %v1098 = vpop.permute.xlu0 %1097
        %1099 = vrot.lane.b32.xlu0 %v1004, 71
        %v1100 = vpop.permute.xlu0 %1099
        %1101 = vrot.lane.b32.xlu0 %v1005, 71
        %v1102 = vpop.permute.xlu0 %1101
        %vm1103 = vcmp.lt.s32.totalorder %v1015, 71
        %v1104 = vsel %vm1103, %v1100, %v1102
        %v1105 = vsel %vm1103, %v1098, %v1100
        %v1106 = vsel %vm1103, %v1096, %v1098
        %v1107 = vsel %vm1103, %v1102, %v1096
        %s1108 = scalar_lea.vmem [#allocation4], 2
        %v1109 = vld [vmem:[%s1108] ss:$8 sm:$0xf]
        %v1111 = vlaneseq
        %v1112 = vshrl.u32 %v1111, 7
        %v1113 = vsub.s32 0, %v1112
        %v1114 = vrot.slane %v1109, %v1113
        %v1115 = vlaneseq
        %v1116 = vshrl.u32 %v1115, 7
        %v1117 = vsub.s32 1, %v1116
        %v1118 = vrot.slane %v1109, %v1117
        %v1119 = vlaneseq
        %v1120 = vshrl.u32 %v1119, 7
        %v1121 = vsub.s32 2, %v1120
        %v1122 = vrot.slane %v1109, %v1121
        %v1123 = vlaneseq
        %v1124 = vshrl.u32 %v1123, 7
        %v1125 = vsub.s32 3, %v1124
        %v1126 = vrot.slane %v1109, %v1125
        %v1131 = vmul.f32 %v1107, %v1114
        %v1132 = vmul.f32 %v1106, %v1118
        %v1133 = vmul.f32 %v1105, %v1122
        %v1134 = vmul.f32 %v1104, %v1126
        %1135 = vst [vmem:[#allocation2 + $0x40] sm:$0xff] %v1131
        %1136 = vst [vmem:[#allocation2 + $0x48] sm:$0xff] %v1132
        %1137 = vst [vmem:[#allocation2 + $0x50] sm:$0xff] %v1133
        %1138 = vst [vmem:[#allocation2 + $0x58] sm:$0xff] %v1134
        %1139 = vrot.lane.b32.xlu0 %v1002, 65
        %v1140 = vpop.permute.xlu0 %1139
        %1141 = vrot.lane.b32.xlu0 %v1003, 65
        %v1142 = vpop.permute.xlu0 %1141
        %1143 = vrot.lane.b32.xlu0 %v1004, 65
        %v1144 = vpop.permute.xlu0 %1143
        %1145 = vrot.lane.b32.xlu0 %v1005, 65
        %v1146 = vpop.permute.xlu0 %1145
        %vm1147 = vcmp.lt.s32.totalorder %v1015, 65
        %v1148 = vsel %vm1147, %v1144, %v1146
        %v1149 = vsel %vm1147, %v1142, %v1144
        %v1150 = vsel %vm1147, %v1140, %v1142
        %v1151 = vsel %vm1147, %v1146, %v1140
        %s1152 = scalar_lea.vmem [#allocation4], 3
        %v1153 = vld [vmem:[%s1152] ss:$8 sm:$0xf]
        %v1155 = vlaneseq
        %v1156 = vshrl.u32 %v1155, 7
        %v1157 = vsub.s32 0, %v1156
        %v1158 = vrot.slane %v1153, %v1157
        %v1159 = vlaneseq
        %v1160 = vshrl.u32 %v1159, 7
        %v1161 = vsub.s32 1, %v1160
        %v1162 = vrot.slane %v1153, %v1161
        %v1163 = vlaneseq
        %v1164 = vshrl.u32 %v1163, 7
        %v1165 = vsub.s32 2, %v1164
        %v1166 = vrot.slane %v1153, %v1165
        %v1167 = vlaneseq
        %v1168 = vshrl.u32 %v1167, 7
        %v1169 = vsub.s32 3, %v1168
        %v1170 = vrot.slane %v1153, %v1169
        %v1175 = vmul.f32 %v1151, %v1158
        %v1176 = vmul.f32 %v1150, %v1162
        %v1177 = vmul.f32 %v1149, %v1166
        %v1178 = vmul.f32 %v1148, %v1170
        %1179 = vst [vmem:[#allocation2 + $0x60] sm:$0xff] %v1175
        %1180 = vst [vmem:[#allocation2 + $0x68] sm:$0xff] %v1176
        %1181 = vst [vmem:[#allocation2 + $0x70] sm:$0xff] %v1177
        %1182 = vst [vmem:[#allocation2 + $0x78] sm:$0xff] %v1178
        %1183 = vrot.lane.b32.xlu0 %v1002, 64
        %v1184 = vpop.permute.xlu0 %1183
        %1185 = vrot.lane.b32.xlu0 %v1003, 64
        %v1186 = vpop.permute.xlu0 %1185
        %1187 = vrot.lane.b32.xlu0 %v1004, 64
        %v1188 = vpop.permute.xlu0 %1187
        %1189 = vrot.lane.b32.xlu0 %v1005, 64
        %v1190 = vpop.permute.xlu0 %1189
        %vm1191 = vcmp.lt.s32.totalorder %v1015, 64
        %v1192 = vsel %vm1191, %v1188, %v1190
        %v1193 = vsel %vm1191, %v1186, %v1188
        %v1194 = vsel %vm1191, %v1184, %v1186
        %v1195 = vsel %vm1191, %v1190, %v1184
        %s1196 = scalar_lea.vmem [#allocation4], 4
        %v1197 = vld [vmem:[%s1196] ss:$8 sm:$0xf]
        %v1199 = vlaneseq
        %v1200 = vshrl.u32 %v1199, 7
        %v1201 = vsub.s32 0, %v1200
        %v1202 = vrot.slane %v1197, %v1201
        %v1203 = vlaneseq
        %v1204 = vshrl.u32 %v1203, 7
        %v1205 = vsub.s32 1, %v1204
        %v1206 = vrot.slane %v1197, %v1205
        %v1207 = vlaneseq
        %v1208 = vshrl.u32 %v1207, 7
        %v1209 = vsub.s32 2, %v1208
        %v1210 = vrot.slane %v1197, %v1209
        %v1211 = vlaneseq
        %v1212 = vshrl.u32 %v1211, 7
        %v1213 = vsub.s32 3, %v1212
        %v1214 = vrot.slane %v1197, %v1213
        %v1219 = vmul.f32 %v1195, %v1202
        %v1220 = vmul.f32 %v1194, %v1206
        %v1221 = vmul.f32 %v1193, %v1210
        %v1222 = vmul.f32 %v1192, %v1214
        %1223 = vst [vmem:[#allocation2 + $0x80] sm:$0xff] %v1219
        %1224 = vst [vmem:[#allocation2 + $0x88] sm:$0xff] %v1220
        %1225 = vst [vmem:[#allocation2 + $0x90] sm:$0xff] %v1221
        %1226 = vst [vmem:[#allocation2 + $0x98] sm:$0xff] %v1222
        %1227 = vrot.lane.b32.xlu0 %v1002, 63
        %v1228 = vpop.permute.xlu0 %1227
        %1229 = vrot.lane.b32.xlu0 %v1003, 63
        %v1230 = vpop.permute.xlu0 %1229
        %1231 = vrot.lane.b32.xlu0 %v1004, 63
        %v1232 = vpop.permute.xlu0 %1231
        %1233 = vrot.lane.b32.xlu0 %v1005, 63
        %v1234 = vpop.permute.xlu0 %1233
        %vm1235 = vcmp.lt.s32.totalorder %v1015, 63
        %v1236 = vsel %vm1235, %v1232, %v1234
        %v1237 = vsel %vm1235, %v1230, %v1232
        %v1238 = vsel %vm1235, %v1228, %v1230
        %v1239 = vsel %vm1235, %v1234, %v1228
        %s1240 = scalar_lea.vmem [#allocation4], 5
        %v1241 = vld [vmem:[%s1240] ss:$8 sm:$0xf]
        %v1243 = vlaneseq
        %v1244 = vshrl.u32 %v1243, 7
        %v1245 = vsub.s32 0, %v1244
        %v1246 = vrot.slane %v1241, %v1245
        %v1247 = vlaneseq
        %v1248 = vshrl.u32 %v1247, 7
        %v1249 = vsub.s32 1, %v1248
        %v1250 = vrot.slane %v1241, %v1249
        %v1251 = vlaneseq
        %v1252 = vshrl.u32 %v1251, 7
        %v1253 = vsub.s32 2, %v1252
        %v1254 = vrot.slane %v1241, %v1253
        %v1255 = vlaneseq
        %v1256 = vshrl.u32 %v1255, 7
        %v1257 = vsub.s32 3, %v1256
        %v1258 = vrot.slane %v1241, %v1257
        %v1263 = vmul.f32 %v1239, %v1246
        %v1264 = vmul.f32 %v1238, %v1250
        %v1265 = vmul.f32 %v1237, %v1254
        %v1266 = vmul.f32 %v1236, %v1258
        %1267 = vst [vmem:[#allocation2 + $0xa0] sm:$0xff] %v1263
        %1268 = vst [vmem:[#allocation2 + $0xa8] sm:$0xff] %v1264
        %1269 = vst [vmem:[#allocation2 + $0xb0] sm:$0xff] %v1265
        %1270 = vst [vmem:[#allocation2 + $0xb8] sm:$0xff] %v1266
        %1271 = vrot.lane.b32.xlu0 %v1002, 57
        %v1272 = vpop.permute.xlu0 %1271
        %1273 = vrot.lane.b32.xlu0 %v1003, 57
        %v1274 = vpop.permute.xlu0 %1273
        %1275 = vrot.lane.b32.xlu0 %v1004, 57
        %v1276 = vpop.permute.xlu0 %1275
        %1277 = vrot.lane.b32.xlu0 %v1005, 57
        %v1278 = vpop.permute.xlu0 %1277
        %vm1279 = vcmp.lt.s32.totalorder %v1015, 57
        %v1280 = vsel %vm1279, %v1276, %v1278
        %v1281 = vsel %vm1279, %v1274, %v1276
        %v1282 = vsel %vm1279, %v1272, %v1274
        %v1283 = vsel %vm1279, %v1278, %v1272
        %s1284 = scalar_lea.vmem [#allocation4], 6
        %v1285 = vld [vmem:[%s1284] ss:$8 sm:$0xf]
        %v1287 = vlaneseq
        %v1288 = vshrl.u32 %v1287, 7
        %v1289 = vsub.s32 0, %v1288
        %v1290 = vrot.slane %v1285, %v1289
        %v1291 = vlaneseq
        %v1292 = vshrl.u32 %v1291, 7
        %v1293 = vsub.s32 1, %v1292
        %v1294 = vrot.slane %v1285, %v1293
        %v1295 = vlaneseq
        %v1296 = vshrl.u32 %v1295, 7
        %v1297 = vsub.s32 2, %v1296
        %v1298 = vrot.slane %v1285, %v1297
        %v1299 = vlaneseq
        %v1300 = vshrl.u32 %v1299, 7
        %v1301 = vsub.s32 3, %v1300
        %v1302 = vrot.slane %v1285, %v1301
        %v1307 = vmul.f32 %v1283, %v1290
        %v1308 = vmul.f32 %v1282, %v1294
        %v1309 = vmul.f32 %v1281, %v1298
        %v1310 = vmul.f32 %v1280, %v1302
        %1311 = vst [vmem:[#allocation2 + $0xc0] sm:$0xff] %v1307
        %1312 = vst [vmem:[#allocation2 + $0xc8] sm:$0xff] %v1308
        %1313 = vst [vmem:[#allocation2 + $0xd0] sm:$0xff] %v1309
        %1314 = vst [vmem:[#allocation2 + $0xd8] sm:$0xff] %v1310
        %1315 = vrot.lane.b32.xlu0 %v1002, 56
        %v1316 = vpop.permute.xlu0 %1315
        %1317 = vrot.lane.b32.xlu0 %v1003, 56
        %v1318 = vpop.permute.xlu0 %1317
        %1319 = vrot.lane.b32.xlu0 %v1004, 56
        %v1320 = vpop.permute.xlu0 %1319
        %1321 = vrot.lane.b32.xlu0 %v1005, 56
        %v1322 = vpop.permute.xlu0 %1321
        %vm1323 = vcmp.lt.s32.totalorder %v1015, 56
        %v1324 = vsel %vm1323, %v1320, %v1322
        %v1325 = vsel %vm1323, %v1318, %v1320
        %v1326 = vsel %vm1323, %v1316, %v1318
        %v1327 = vsel %vm1323, %v1322, %v1316
        %s1328 = scalar_lea.vmem [#allocation4], 7
        %v1329 = vld [vmem:[%s1328] ss:$8 sm:$0xf]
        %v1331 = vlaneseq
        %v1332 = vshrl.u32 %v1331, 7
        %v1333 = vsub.s32 0, %v1332
        %v1334 = vrot.slane %v1329, %v1333
        %v1335 = vlaneseq
        %v1336 = vshrl.u32 %v1335, 7
        %v1337 = vsub.s32 1, %v1336
        %v1338 = vrot.slane %v1329, %v1337
        %v1339 = vlaneseq
        %v1340 = vshrl.u32 %v1339, 7
        %v1341 = vsub.s32 2, %v1340
        %v1342 = vrot.slane %v1329, %v1341
        %v1343 = vlaneseq
        %v1344 = vshrl.u32 %v1343, 7
        %v1345 = vsub.s32 3, %v1344
        %v1346 = vrot.slane %v1329, %v1345
        %v1351 = vmul.f32 %v1327, %v1334
        %v1352 = vmul.f32 %v1326, %v1338
        %v1353 = vmul.f32 %v1325, %v1342
        %v1354 = vmul.f32 %v1324, %v1346
        %1355 = vst [vmem:[#allocation2 + $0xe0] sm:$0xff] %v1351
        %1356 = vst [vmem:[#allocation2 + $0xe8] sm:$0xff] %v1352
        %1357 = vst [vmem:[#allocation2 + $0xf0] sm:$0xff] %v1353
        %1358 = vst [vmem:[#allocation2 + $0xf8] sm:$0xff] %v1354
        %1359 = vrot.lane.b32.xlu0 %v1002, 55
        %v1360 = vpop.permute.xlu0 %1359
        %1361 = vrot.lane.b32.xlu0 %v1003, 55
        %v1362 = vpop.permute.xlu0 %1361
        %1363 = vrot.lane.b32.xlu0 %v1004, 55
        %v1364 = vpop.permute.xlu0 %1363
        %1365 = vrot.lane.b32.xlu0 %v1005, 55
        %v1366 = vpop.permute.xlu0 %1365
        %vm1367 = vcmp.lt.s32.totalorder %v1015, 55
        %v1368 = vsel %vm1367, %v1364, %v1366
        %v1369 = vsel %vm1367, %v1362, %v1364
        %v1370 = vsel %vm1367, %v1360, %v1362
        %v1371 = vsel %vm1367, %v1366, %v1360
        %s1372 = scalar_lea.vmem [#allocation4], 32
        %v1373 = vld [vmem:[%s1372] ss:$8 sm:$0xf]
        %v1375 = vlaneseq
        %v1376 = vshrl.u32 %v1375, 7
        %v1377 = vsub.s32 0, %v1376
        %v1378 = vrot.slane %v1373, %v1377
        %v1379 = vlaneseq
        %v1380 = vshrl.u32 %v1379, 7
        %v1381 = vsub.s32 1, %v1380
        %v1382 = vrot.slane %v1373, %v1381
        %v1383 = vlaneseq
        %v1384 = vshrl.u32 %v1383, 7
        %v1385 = vsub.s32 2, %v1384
        %v1386 = vrot.slane %v1373, %v1385
        %v1387 = vlaneseq
        %v1388 = vshrl.u32 %v1387, 7
        %v1389 = vsub.s32 3, %v1388
        %v1390 = vrot.slane %v1373, %v1389
        %v1395 = vmul.f32 %v1371, %v1378
        %v1396 = vmul.f32 %v1370, %v1382
        %v1397 = vmul.f32 %v1369, %v1386
        %v1398 = vmul.f32 %v1368, %v1390
        %1399 = vst [vmem:[#allocation2 + $0x100] sm:$0xff] %v1395
        %1400 = vst [vmem:[#allocation2 + $0x108] sm:$0xff] %v1396
        %1401 = vst [vmem:[#allocation2 + $0x110] sm:$0xff] %v1397
        %1402 = vst [vmem:[#allocation2 + $0x118] sm:$0xff] %v1398
        %1403 = vrot.lane.b32.xlu0 %v1002, 9
        %v1404 = vpop.permute.xlu0 %1403
        %1405 = vrot.lane.b32.xlu0 %v1003, 9
        %v1406 = vpop.permute.xlu0 %1405
        %1407 = vrot.lane.b32.xlu0 %v1004, 9
        %v1408 = vpop.permute.xlu0 %1407
        %1409 = vrot.lane.b32.xlu0 %v1005, 9
        %v1410 = vpop.permute.xlu0 %1409
        %vm1411 = vcmp.lt.s32.totalorder %v1015, 9
        %v1412 = vsel %vm1411, %v1408, %v1410
        %v1413 = vsel %vm1411, %v1406, %v1408
        %v1414 = vsel %vm1411, %v1404, %v1406
        %v1415 = vsel %vm1411, %v1410, %v1404
        %s1416 = scalar_lea.vmem [#allocation4], 33
        %v1417 = vld [vmem:[%s1416] ss:$8 sm:$0xf]
        %v1419 = vlaneseq
        %v1420 = vshrl.u32 %v1419, 7
        %v1421 = vsub.s32 0, %v1420
        %v1422 = vrot.slane %v1417, %v1421
        %v1423 = vlaneseq
        %v1424 = vshrl.u32 %v1423, 7
        %v1425 = vsub.s32 1, %v1424
        %v1426 = vrot.slane %v1417, %v1425
        %v1427 = vlaneseq
        %v1428 = vshrl.u32 %v1427, 7
        %v1429 = vsub.s32 2, %v1428
        %v1430 = vrot.slane %v1417, %v1429
        %v1431 = vlaneseq
        %v1432 = vshrl.u32 %v1431, 7
        %v1433 = vsub.s32 3, %v1432
        %v1434 = vrot.slane %v1417, %v1433
        %v1439 = vmul.f32 %v1415, %v1422
        %v1440 = vmul.f32 %v1414, %v1426
        %v1441 = vmul.f32 %v1413, %v1430
        %v1442 = vmul.f32 %v1412, %v1434
        %1443 = vst [vmem:[#allocation2 + $0x120] sm:$0xff] %v1439
        %1444 = vst [vmem:[#allocation2 + $0x128] sm:$0xff] %v1440
        %1445 = vst [vmem:[#allocation2 + $0x130] sm:$0xff] %v1441
        %1446 = vst [vmem:[#allocation2 + $0x138] sm:$0xff] %v1442
        %1447 = vrot.lane.b32.xlu0 %v1002, 8
        %v1448 = vpop.permute.xlu0 %1447
        %1449 = vrot.lane.b32.xlu0 %v1003, 8
        %v1450 = vpop.permute.xlu0 %1449
        %1451 = vrot.lane.b32.xlu0 %v1004, 8
        %v1452 = vpop.permute.xlu0 %1451
        %1453 = vrot.lane.b32.xlu0 %v1005, 8
        %v1454 = vpop.permute.xlu0 %1453
        %vm1455 = vcmp.lt.s32.totalorder %v1015, 8
        %v1456 = vsel %vm1455, %v1452, %v1454
        %v1457 = vsel %vm1455, %v1450, %v1452
        %v1458 = vsel %vm1455, %v1448, %v1450
        %v1459 = vsel %vm1455, %v1454, %v1448
        %s1460 = scalar_lea.vmem [#allocation4], 34
        %v1461 = vld [vmem:[%s1460] ss:$8 sm:$0xf]
        %v1463 = vlaneseq
        %v1464 = vshrl.u32 %v1463, 7
        %v1465 = vsub.s32 0, %v1464
        %v1466 = vrot.slane %v1461, %v1465
        %v1467 = vlaneseq
        %v1468 = vshrl.u32 %v1467, 7
        %v1469 = vsub.s32 1, %v1468
        %v1470 = vrot.slane %v1461, %v1469
        %v1471 = vlaneseq
        %v1472 = vshrl.u32 %v1471, 7
        %v1473 = vsub.s32 2, %v1472
        %v1474 = vrot.slane %v1461, %v1473
        %v1475 = vlaneseq
        %v1476 = vshrl.u32 %v1475, 7
        %v1477 = vsub.s32 3, %v1476
        %v1478 = vrot.slane %v1461, %v1477
        %v1483 = vmul.f32 %v1459, %v1466
        %v1484 = vmul.f32 %v1458, %v1470
        %v1485 = vmul.f32 %v1457, %v1474
        %v1486 = vmul.f32 %v1456, %v1478
        %1487 = vst [vmem:[#allocation2 + $0x140] sm:$0xff] %v1483
        %1488 = vst [vmem:[#allocation2 + $0x148] sm:$0xff] %v1484
        %1489 = vst [vmem:[#allocation2 + $0x150] sm:$0xff] %v1485
        %1490 = vst [vmem:[#allocation2 + $0x158] sm:$0xff] %v1486
        %1491 = vrot.lane.b32.xlu0 %v1002, 7
        %v1492 = vpop.permute.xlu0 %1491
        %1493 = vrot.lane.b32.xlu0 %v1003, 7
        %v1494 = vpop.permute.xlu0 %1493
        %1495 = vrot.lane.b32.xlu0 %v1004, 7
        %v1496 = vpop.permute.xlu0 %1495
        %1497 = vrot.lane.b32.xlu0 %v1005, 7
        %v1498 = vpop.permute.xlu0 %1497
        %vm1499 = vcmp.lt.s32.totalorder %v1015, 7
        %v1500 = vsel %vm1499, %v1496, %v1498
        %v1501 = vsel %vm1499, %v1494, %v1496
        %v1502 = vsel %vm1499, %v1492, %v1494
        %v1503 = vsel %vm1499, %v1498, %v1492
        %s1504 = scalar_lea.vmem [#allocation4], 35
        %v1505 = vld [vmem:[%s1504] ss:$8 sm:$0xf]
        %v1507 = vlaneseq
        %v1508 = vshrl.u32 %v1507, 7
        %v1509 = vsub.s32 0, %v1508
        %v1510 = vrot.slane %v1505, %v1509
        %v1511 = vlaneseq
        %v1512 = vshrl.u32 %v1511, 7
        %v1513 = vsub.s32 1, %v1512
        %v1514 = vrot.slane %v1505, %v1513
        %v1515 = vlaneseq
        %v1516 = vshrl.u32 %v1515, 7
        %v1517 = vsub.s32 2, %v1516
        %v1518 = vrot.slane %v1505, %v1517
        %v1519 = vlaneseq
        %v1520 = vshrl.u32 %v1519, 7
        %v1521 = vsub.s32 3, %v1520
        %v1522 = vrot.slane %v1505, %v1521
        %v1527 = vmul.f32 %v1503, %v1510
        %v1528 = vmul.f32 %v1502, %v1514
        %v1529 = vmul.f32 %v1501, %v1518
        %v1530 = vmul.f32 %v1500, %v1522
        %1531 = vst [vmem:[#allocation2 + $0x160] sm:$0xff] %v1527
        %1532 = vst [vmem:[#allocation2 + $0x168] sm:$0xff] %v1528
        %1533 = vst [vmem:[#allocation2 + $0x170] sm:$0xff] %v1529
        %1534 = vst [vmem:[#allocation2 + $0x178] sm:$0xff] %v1530
        %1535 = vrot.lane.b32.xlu0 %v1002, 1
        %v1536 = vpop.permute.xlu0 %1535
        %1537 = vrot.lane.b32.xlu0 %v1003, 1
        %v1538 = vpop.permute.xlu0 %1537
        %1539 = vrot.lane.b32.xlu0 %v1004, 1
        %v1540 = vpop.permute.xlu0 %1539
        %1541 = vrot.lane.b32.xlu0 %v1005, 1
        %v1542 = vpop.permute.xlu0 %1541
        %vm1543 = vcmp.lt.s32.totalorder %v1015, 1
        %v1544 = vsel %vm1543, %v1540, %v1542
        %v1545 = vsel %vm1543, %v1538, %v1540
        %v1546 = vsel %vm1543, %v1536, %v1538
        %v1547 = vsel %vm1543, %v1542, %v1536
        %s1548 = scalar_lea.vmem [#allocation4], 36
        %v1549 = vld [vmem:[%s1548] ss:$8 sm:$0xf]
        %v1551 = vlaneseq
        %v1552 = vshrl.u32 %v1551, 7
        %v1553 = vsub.s32 0, %v1552
        %v1554 = vrot.slane %v1549, %v1553
        %v1555 = vlaneseq
        %v1556 = vshrl.u32 %v1555, 7
        %v1557 = vsub.s32 1, %v1556
        %v1558 = vrot.slane %v1549, %v1557
        %v1559 = vlaneseq
        %v1560 = vshrl.u32 %v1559, 7
        %v1561 = vsub.s32 2, %v1560
        %v1562 = vrot.slane %v1549, %v1561
        %v1563 = vlaneseq
        %v1564 = vshrl.u32 %v1563, 7
        %v1565 = vsub.s32 3, %v1564
        %v1566 = vrot.slane %v1549, %v1565
        %v1571 = vmul.f32 %v1547, %v1554
        %v1572 = vmul.f32 %v1546, %v1558
        %v1573 = vmul.f32 %v1545, %v1562
        %v1574 = vmul.f32 %v1544, %v1566
        %1575 = vst [vmem:[#allocation2 + $0x180] sm:$0xff] %v1571
        %1576 = vst [vmem:[#allocation2 + $0x188] sm:$0xff] %v1572
        %1577 = vst [vmem:[#allocation2 + $0x190] sm:$0xff] %v1573
        %1578 = vst [vmem:[#allocation2 + $0x198] sm:$0xff] %v1574
        %s1579 = scalar_lea.vmem [#allocation4], 37
        %v1580 = vld [vmem:[%s1579] ss:$8 sm:$0xf]
        %v1582 = vlaneseq
        %v1583 = vshrl.u32 %v1582, 7
        %v1584 = vsub.s32 0, %v1583
        %v1585 = vrot.slane %v1580, %v1584
        %v1586 = vlaneseq
        %v1587 = vshrl.u32 %v1586, 7
        %v1588 = vsub.s32 1, %v1587
        %v1589 = vrot.slane %v1580, %v1588
        %v1590 = vlaneseq
        %v1591 = vshrl.u32 %v1590, 7
        %v1592 = vsub.s32 2, %v1591
        %v1593 = vrot.slane %v1580, %v1592
        %v1594 = vlaneseq
        %v1595 = vshrl.u32 %v1594, 7
        %v1596 = vsub.s32 3, %v1595
        %v1597 = vrot.slane %v1580, %v1596
        %v1602 = vmul.f32 %v1002, %v1585
        %v1603 = vmul.f32 %v1003, %v1589
        %v1604 = vmul.f32 %v1004, %v1593
        %v1605 = vmul.f32 %v1005, %v1597
        %1606 = vst [vmem:[#allocation2 + $0x1a0] sm:$0xff] %v1602
        %1607 = vst [vmem:[#allocation2 + $0x1a8] sm:$0xff] %v1603
        %1608 = vst [vmem:[#allocation2 + $0x1b0] sm:$0xff] %v1604
        %1609 = vst [vmem:[#allocation2 + $0x1b8] sm:$0xff] %v1605
        %1610 = vrot.lane.b32.xlu0 %v1002, 127
        %v1611 = vpop.permute.xlu0 %1610
        %1612 = vrot.lane.b32.xlu0 %v1003, 127
        %v1613 = vpop.permute.xlu0 %1612
        %1614 = vrot.lane.b32.xlu0 %v1004, 127
        %v1615 = vpop.permute.xlu0 %1614
        %1616 = vrot.lane.b32.xlu0 %v1005, 127
        %v1617 = vpop.permute.xlu0 %1616
        %vm1618 = vcmp.lt.s32.totalorder %v1015, 127
        %v1619 = vsel %vm1618, %v1615, %v1617
        %v1620 = vsel %vm1618, %v1613, %v1615
        %v1621 = vsel %vm1618, %v1611, %v1613
        %v1622 = vsel %vm1618, %v1617, %v1611
        %s1623 = scalar_lea.vmem [#allocation4], 38
        %v1624 = vld [vmem:[%s1623] ss:$8 sm:$0xf]
        %v1626 = vlaneseq
        %v1627 = vshrl.u32 %v1626, 7
        %v1628 = vsub.s32 0, %v1627
        %v1629 = vrot.slane %v1624, %v1628
        %v1630 = vlaneseq
        %v1631 = vshrl.u32 %v1630, 7
        %v1632 = vsub.s32 1, %v1631
        %v1633 = vrot.slane %v1624, %v1632
        %v1634 = vlaneseq
        %v1635 = vshrl.u32 %v1634, 7
        %v1636 = vsub.s32 2, %v1635
        %v1637 = vrot.slane %v1624, %v1636
        %v1638 = vlaneseq
        %v1639 = vshrl.u32 %v1638, 7
        %v1640 = vsub.s32 3, %v1639
        %v1641 = vrot.slane %v1624, %v1640
        %v1646 = vmul.f32 %v1621, %v1629
        %v1647 = vmul.f32 %v1620, %v1633
        %v1648 = vmul.f32 %v1619, %v1637
        %v1649 = vmul.f32 %v1622, %v1641
        %1650 = vst [vmem:[#allocation2 + $0x1c0] sm:$0xff] %v1646
        %1651 = vst [vmem:[#allocation2 + $0x1c8] sm:$0xff] %v1647
        %1652 = vst [vmem:[#allocation2 + $0x1d0] sm:$0xff] %v1648
        %1653 = vst [vmem:[#allocation2 + $0x1d8] sm:$0xff] %v1649
        %1654 = vrot.lane.b32.xlu0 %v1002, 121
        %v1655 = vpop.permute.xlu0 %1654
        %1656 = vrot.lane.b32.xlu0 %v1003, 121
        %v1657 = vpop.permute.xlu0 %1656
        %1658 = vrot.lane.b32.xlu0 %v1004, 121
        %v1659 = vpop.permute.xlu0 %1658
        %1660 = vrot.lane.b32.xlu0 %v1005, 121
        %v1661 = vpop.permute.xlu0 %1660
        %vm1662 = vcmp.lt.s32.totalorder %v1015, 121
        %v1663 = vsel %vm1662, %v1659, %v1661
        %v1664 = vsel %vm1662, %v1657, %v1659
        %v1665 = vsel %vm1662, %v1655, %v1657
        %v1666 = vsel %vm1662, %v1661, %v1655
        %s1667 = scalar_lea.vmem [#allocation4], 39
        %v1668 = vld [vmem:[%s1667] ss:$8 sm:$0xf]
        %v1670 = vlaneseq
        %v1671 = vshrl.u32 %v1670, 7
        %v1672 = vsub.s32 0, %v1671
        %v1673 = vrot.slane %v1668, %v1672
        %v1674 = vlaneseq
        %v1675 = vshrl.u32 %v1674, 7
        %v1676 = vsub.s32 1, %v1675
        %v1677 = vrot.slane %v1668, %v1676
        %v1678 = vlaneseq
        %v1679 = vshrl.u32 %v1678, 7
        %v1680 = vsub.s32 2, %v1679
        %v1681 = vrot.slane %v1668, %v1680
        %v1682 = vlaneseq
        %v1683 = vshrl.u32 %v1682, 7
        %v1684 = vsub.s32 3, %v1683
        %v1685 = vrot.slane %v1668, %v1684
        %v1690 = vmul.f32 %v1665, %v1673
        %v1691 = vmul.f32 %v1664, %v1677
        %v1692 = vmul.f32 %v1663, %v1681
        %v1693 = vmul.f32 %v1666, %v1685
        %1694 = vst [vmem:[#allocation2 + $0x1e0] sm:$0xff] %v1690
        %1695 = vst [vmem:[#allocation2 + $0x1e8] sm:$0xff] %v1691
        %1696 = vst [vmem:[#allocation2 + $0x1f0] sm:$0xff] %v1692
        %1697 = vst [vmem:[#allocation2 + $0x1f8] sm:$0xff] %v1693
        %1698 = vrot.lane.b32.xlu0 %v1002, 120
        %v1699 = vpop.permute.xlu0 %1698
        %1700 = vrot.lane.b32.xlu0 %v1003, 120
        %v1701 = vpop.permute.xlu0 %1700
        %1702 = vrot.lane.b32.xlu0 %v1004, 120
        %v1703 = vpop.permute.xlu0 %1702
        %1704 = vrot.lane.b32.xlu0 %v1005, 120
        %v1705 = vpop.permute.xlu0 %1704
        %vm1706 = vcmp.lt.s32.totalorder %v1015, 120
        %v1707 = vsel %vm1706, %v1703, %v1705
        %v1708 = vsel %vm1706, %v1701, %v1703
        %v1709 = vsel %vm1706, %v1699, %v1701
        %v1710 = vsel %vm1706, %v1705, %v1699
        %s1711 = scalar_lea.vmem [#allocation4], 64
        %v1712 = vld [vmem:[%s1711] ss:$8 sm:$0xf]
        %v1714 = vlaneseq
        %v1715 = vshrl.u32 %v1714, 7
        %v1716 = vsub.s32 0, %v1715
        %v1717 = vrot.slane %v1712, %v1716
        %v1718 = vlaneseq
        %v1719 = vshrl.u32 %v1718, 7
        %v1720 = vsub.s32 1, %v1719
        %v1721 = vrot.slane %v1712, %v1720
        %v1722 = vlaneseq
        %v1723 = vshrl.u32 %v1722, 7
        %v1724 = vsub.s32 2, %v1723
        %v1725 = vrot.slane %v1712, %v1724
        %v1726 = vlaneseq
        %v1727 = vshrl.u32 %v1726, 7
        %v1728 = vsub.s32 3, %v1727
        %v1729 = vrot.slane %v1712, %v1728
        %v1734 = vmul.f32 %v1709, %v1717
        %v1735 = vmul.f32 %v1708, %v1721
        %v1736 = vmul.f32 %v1707, %v1725
        %v1737 = vmul.f32 %v1710, %v1729
        %1738 = vst [vmem:[#allocation2 + $0x200] sm:$0xff] %v1734
        %1739 = vst [vmem:[#allocation2 + $0x208] sm:$0xff] %v1735
        %1740 = vst [vmem:[#allocation2 + $0x210] sm:$0xff] %v1736
        %1741 = vst [vmem:[#allocation2 + $0x218] sm:$0xff] %v1737
        %1742 = vrot.lane.b32.xlu0 %v1002, 119
        %v1743 = vpop.permute.xlu0 %1742
        %1744 = vrot.lane.b32.xlu0 %v1003, 119
        %v1745 = vpop.permute.xlu0 %1744
        %1746 = vrot.lane.b32.xlu0 %v1004, 119
        %v1747 = vpop.permute.xlu0 %1746
        %1748 = vrot.lane.b32.xlu0 %v1005, 119
        %v1749 = vpop.permute.xlu0 %1748
        %vm1750 = vcmp.lt.s32.totalorder %v1015, 119
        %v1751 = vsel %vm1750, %v1747, %v1749
        %v1752 = vsel %vm1750, %v1745, %v1747
        %v1753 = vsel %vm1750, %v1743, %v1745
        %v1754 = vsel %vm1750, %v1749, %v1743
        %s1755 = scalar_lea.vmem [#allocation4], 65
        %v1756 = vld [vmem:[%s1755] ss:$8 sm:$0xf]
        %v1758 = vlaneseq
        %v1759 = vshrl.u32 %v1758, 7
        %v1760 = vsub.s32 0, %v1759
        %v1761 = vrot.slane %v1756, %v1760
        %v1762 = vlaneseq
        %v1763 = vshrl.u32 %v1762, 7
        %v1764 = vsub.s32 1, %v1763
        %v1765 = vrot.slane %v1756, %v1764
        %v1766 = vlaneseq
        %v1767 = vshrl.u32 %v1766, 7
        %v1768 = vsub.s32 2, %v1767
        %v1769 = vrot.slane %v1756, %v1768
        %v1770 = vlaneseq
        %v1771 = vshrl.u32 %v1770, 7
        %v1772 = vsub.s32 3, %v1771
        %v1773 = vrot.slane %v1756, %v1772
        %v1778 = vmul.f32 %v1753, %v1761
        %v1779 = vmul.f32 %v1752, %v1765
        %v1780 = vmul.f32 %v1751, %v1769
        %v1781 = vmul.f32 %v1754, %v1773
        %1782 = vst [vmem:[#allocation2 + $0x220] sm:$0xff] %v1778
        %1783 = vst [vmem:[#allocation2 + $0x228] sm:$0xff] %v1779
        %1784 = vst [vmem:[#allocation2 + $0x230] sm:$0xff] %v1780
        %1785 = vst [vmem:[#allocation2 + $0x238] sm:$0xff] %v1781
        %s1786 = scalar_lea.vmem [#allocation4], 66
        %v1787 = vld [vmem:[%s1786] ss:$8 sm:$0xf]
        %v1789 = vlaneseq
        %v1790 = vshrl.u32 %v1789, 7
        %v1791 = vsub.s32 0, %v1790
        %v1792 = vrot.slane %v1787, %v1791
        %v1793 = vlaneseq
        %v1794 = vshrl.u32 %v1793, 7
        %v1795 = vsub.s32 1, %v1794
        %v1796 = vrot.slane %v1787, %v1795
        %v1797 = vlaneseq
        %v1798 = vshrl.u32 %v1797, 7
        %v1799 = vsub.s32 2, %v1798
        %v1800 = vrot.slane %v1787, %v1799
        %v1801 = vlaneseq
        %v1802 = vshrl.u32 %v1801, 7
        %v1803 = vsub.s32 3, %v1802
        %v1804 = vrot.slane %v1787, %v1803
        %v1809 = vmul.f32 %v1019, %v1792
        %v1810 = vmul.f32 %v1018, %v1796
        %v1811 = vmul.f32 %v1017, %v1800
        %v1812 = vmul.f32 %v1020, %v1804
        %1813 = vst [vmem:[#allocation2 + $0x240] sm:$0xff] %v1809
        %1814 = vst [vmem:[#allocation2 + $0x248] sm:$0xff] %v1810
        %1815 = vst [vmem:[#allocation2 + $0x250] sm:$0xff] %v1811
        %1816 = vst [vmem:[#allocation2 + $0x258] sm:$0xff] %v1812
        %s1817 = scalar_lea.vmem [#allocation4], 67
        %v1818 = vld [vmem:[%s1817] ss:$8 sm:$0xf]
        %v1820 = vlaneseq
        %v1821 = vshrl.u32 %v1820, 7
        %v1822 = vsub.s32 0, %v1821
        %v1823 = vrot.slane %v1818, %v1822
        %v1824 = vlaneseq
        %v1825 = vshrl.u32 %v1824, 7
        %v1826 = vsub.s32 1, %v1825
        %v1827 = vrot.slane %v1818, %v1826
        %v1828 = vlaneseq
        %v1829 = vshrl.u32 %v1828, 7
        %v1830 = vsub.s32 2, %v1829
        %v1831 = vrot.slane %v1818, %v1830
        %v1832 = vlaneseq
        %v1833 = vshrl.u32 %v1832, 7
        %v1834 = vsub.s32 3, %v1833
        %v1835 = vrot.slane %v1818, %v1834
        %v1840 = vmul.f32 %v1062, %v1823
        %v1841 = vmul.f32 %v1061, %v1827
        %v1842 = vmul.f32 %v1060, %v1831
        %v1843 = vmul.f32 %v1063, %v1835
        %1844 = vst [vmem:[#allocation2 + $0x260] sm:$0xff] %v1840
        %1845 = vst [vmem:[#allocation2 + $0x268] sm:$0xff] %v1841
        %1846 = vst [vmem:[#allocation2 + $0x270] sm:$0xff] %v1842
        %1847 = vst [vmem:[#allocation2 + $0x278] sm:$0xff] %v1843
        %s1848 = scalar_lea.vmem [#allocation4], 68
        %v1849 = vld [vmem:[%s1848] ss:$8 sm:$0xf]
        %v1851 = vlaneseq
        %v1852 = vshrl.u32 %v1851, 7
        %v1853 = vsub.s32 0, %v1852
        %v1854 = vrot.slane %v1849, %v1853
        %v1855 = vlaneseq
        %v1856 = vshrl.u32 %v1855, 7
        %v1857 = vsub.s32 1, %v1856
        %v1858 = vrot.slane %v1849, %v1857
        %v1859 = vlaneseq
        %v1860 = vshrl.u32 %v1859, 7
        %v1861 = vsub.s32 2, %v1860
        %v1862 = vrot.slane %v1849, %v1861
        %v1863 = vlaneseq
        %v1864 = vshrl.u32 %v1863, 7
        %v1865 = vsub.s32 3, %v1864
        %v1866 = vrot.slane %v1849, %v1865
        %v1871 = vmul.f32 %v1106, %v1854
        %v1872 = vmul.f32 %v1105, %v1858
        %v1873 = vmul.f32 %v1104, %v1862
        %v1874 = vmul.f32 %v1107, %v1866
        %1875 = vst [vmem:[#allocation2 + $0x280] sm:$0xff] %v1871
        %1876 = vst [vmem:[#allocation2 + $0x288] sm:$0xff] %v1872
        %1877 = vst [vmem:[#allocation2 + $0x290] sm:$0xff] %v1873
        %1878 = vst [vmem:[#allocation2 + $0x298] sm:$0xff] %v1874
        %s1879 = scalar_lea.vmem [#allocation4], 69
        %v1880 = vld [vmem:[%s1879] ss:$8 sm:$0xf]
        %v1882 = vlaneseq
        %v1883 = vshrl.u32 %v1882, 7
        %v1884 = vsub.s32 0, %v1883
        %v1885 = vrot.slane %v1880, %v1884
        %v1886 = vlaneseq
        %v1887 = vshrl.u32 %v1886, 7
        %v1888 = vsub.s32 1, %v1887
        %v1889 = vrot.slane %v1880, %v1888
        %v1890 = vlaneseq
        %v1891 = vshrl.u32 %v1890, 7
        %v1892 = vsub.s32 2, %v1891
        %v1893 = vrot.slane %v1880, %v1892
        %v1894 = vlaneseq
        %v1895 = vshrl.u32 %v1894, 7
        %v1896 = vsub.s32 3, %v1895
        %v1897 = vrot.slane %v1880, %v1896
        %v1902 = vmul.f32 %v1150, %v1885
        %v1903 = vmul.f32 %v1149, %v1889
        %v1904 = vmul.f32 %v1148, %v1893
        %v1905 = vmul.f32 %v1151, %v1897
        %1906 = vst [vmem:[#allocation2 + $0x2a0] sm:$0xff] %v1902
        %1907 = vst [vmem:[#allocation2 + $0x2a8] sm:$0xff] %v1903
        %1908 = vst [vmem:[#allocation2 + $0x2b0] sm:$0xff] %v1904
        %1909 = vst [vmem:[#allocation2 + $0x2b8] sm:$0xff] %v1905
        %s1910 = scalar_lea.vmem [#allocation4], 70
        %v1911 = vld [vmem:[%s1910] ss:$8 sm:$0xf]
        %v1913 = vlaneseq
        %v1914 = vshrl.u32 %v1913, 7
        %v1915 = vsub.s32 0, %v1914
        %v1916 = vrot.slane %v1911, %v1915
        %v1917 = vlaneseq
        %v1918 = vshrl.u32 %v1917, 7
        %v1919 = vsub.s32 1, %v1918
        %v1920 = vrot.slane %v1911, %v1919
        %v1921 = vlaneseq
        %v1922 = vshrl.u32 %v1921, 7
        %v1923 = vsub.s32 2, %v1922
        %v1924 = vrot.slane %v1911, %v1923
        %v1925 = vlaneseq
        %v1926 = vshrl.u32 %v1925, 7
        %v1927 = vsub.s32 3, %v1926
        %v1928 = vrot.slane %v1911, %v1927
        %v1933 = vmul.f32 %v1194, %v1916
        %v1934 = vmul.f32 %v1193, %v1920
        %v1935 = vmul.f32 %v1192, %v1924
        %v1936 = vmul.f32 %v1195, %v1928
        %1937 = vst [vmem:[#allocation2 + $0x2c0] sm:$0xff] %v1933
        %1938 = vst [vmem:[#allocation2 + $0x2c8] sm:$0xff] %v1934
        %1939 = vst [vmem:[#allocation2 + $0x2d0] sm:$0xff] %v1935
        %1940 = vst [vmem:[#allocation2 + $0x2d8] sm:$0xff] %v1936
        %s1941 = scalar_lea.vmem [#allocation4], 71
        %v1942 = vld [vmem:[%s1941] ss:$8 sm:$0xf]
        %v1944 = vlaneseq
        %v1945 = vshrl.u32 %v1944, 7
        %v1946 = vsub.s32 0, %v1945
        %v1947 = vrot.slane %v1942, %v1946
        %v1948 = vlaneseq
        %v1949 = vshrl.u32 %v1948, 7
        %v1950 = vsub.s32 1, %v1949
        %v1951 = vrot.slane %v1942, %v1950
        %v1952 = vlaneseq
        %v1953 = vshrl.u32 %v1952, 7
        %v1954 = vsub.s32 2, %v1953
        %v1955 = vrot.slane %v1942, %v1954
        %v1956 = vlaneseq
        %v1957 = vshrl.u32 %v1956, 7
        %v1958 = vsub.s32 3, %v1957
        %v1959 = vrot.slane %v1942, %v1958
        %v1964 = vmul.f32 %v1238, %v1947
        %v1965 = vmul.f32 %v1237, %v1951
        %v1966 = vmul.f32 %v1236, %v1955
        %v1967 = vmul.f32 %v1239, %v1959
        %1968 = vst [vmem:[#allocation2 + $0x2e0] sm:$0xff] %v1964
        %1969 = vst [vmem:[#allocation2 + $0x2e8] sm:$0xff] %v1965
        %1970 = vst [vmem:[#allocation2 + $0x2f0] sm:$0xff] %v1966
        %1971 = vst [vmem:[#allocation2 + $0x2f8] sm:$0xff] %v1967
        %s1972 = scalar_lea.vmem [#allocation4], 96
        %v1973 = vld [vmem:[%s1972] ss:$8 sm:$0xf]
        %v1975 = vlaneseq
        %v1976 = vshrl.u32 %v1975, 7
        %v1977 = vsub.s32 0, %v1976
        %v1978 = vrot.slane %v1973, %v1977
        %v1979 = vlaneseq
        %v1980 = vshrl.u32 %v1979, 7
        %v1981 = vsub.s32 1, %v1980
        %v1982 = vrot.slane %v1973, %v1981
        %v1983 = vlaneseq
        %v1984 = vshrl.u32 %v1983, 7
        %v1985 = vsub.s32 2, %v1984
        %v1986 = vrot.slane %v1973, %v1985
        %v1987 = vlaneseq
        %v1988 = vshrl.u32 %v1987, 7
        %v1989 = vsub.s32 3, %v1988
        %v1990 = vrot.slane %v1973, %v1989
        %v1995 = vmul.f32 %v1282, %v1978
        %v1996 = vmul.f32 %v1281, %v1982
        %v1997 = vmul.f32 %v1280, %v1986
        %v1998 = vmul.f32 %v1283, %v1990
        %1999 = vst [vmem:[#allocation2 + $0x300] sm:$0xff] %v1995
        %2000 = vst [vmem:[#allocation2 + $0x308] sm:$0xff] %v1996
        %2001 = vst [vmem:[#allocation2 + $0x310] sm:$0xff] %v1997
        %2002 = vst [vmem:[#allocation2 + $0x318] sm:$0xff] %v1998
        %s2003 = scalar_lea.vmem [#allocation4], 97
        %v2004 = vld [vmem:[%s2003] ss:$8 sm:$0xf]
        %v2006 = vlaneseq
        %v2007 = vshrl.u32 %v2006, 7
        %v2008 = vsub.s32 0, %v2007
        %v2009 = vrot.slane %v2004, %v2008
        %v2010 = vlaneseq
        %v2011 = vshrl.u32 %v2010, 7
        %v2012 = vsub.s32 1, %v2011
        %v2013 = vrot.slane %v2004, %v2012
        %v2014 = vlaneseq
        %v2015 = vshrl.u32 %v2014, 7
        %v2016 = vsub.s32 2, %v2015
        %v2017 = vrot.slane %v2004, %v2016
        %v2018 = vlaneseq
        %v2019 = vshrl.u32 %v2018, 7
        %v2020 = vsub.s32 3, %v2019
        %v2021 = vrot.slane %v2004, %v2020
        %v2026 = vmul.f32 %v1326, %v2009
        %v2027 = vmul.f32 %v1325, %v2013
        %v2028 = vmul.f32 %v1324, %v2017
        %v2029 = vmul.f32 %v1327, %v2021
        %2030 = vst [vmem:[#allocation2 + $0x320] sm:$0xff] %v2026
        %2031 = vst [vmem:[#allocation2 + $0x328] sm:$0xff] %v2027
        %2032 = vst [vmem:[#allocation2 + $0x330] sm:$0xff] %v2028
        %2033 = vst [vmem:[#allocation2 + $0x338] sm:$0xff] %v2029
        %s2034 = scalar_lea.vmem [#allocation4], 98
        %v2035 = vld [vmem:[%s2034] ss:$8 sm:$0xf]
        %v2037 = vlaneseq
        %v2038 = vshrl.u32 %v2037, 7
        %v2039 = vsub.s32 0, %v2038
        %v2040 = vrot.slane %v2035, %v2039
        %v2041 = vlaneseq
        %v2042 = vshrl.u32 %v2041, 7
        %v2043 = vsub.s32 1, %v2042
        %v2044 = vrot.slane %v2035, %v2043
        %v2045 = vlaneseq
        %v2046 = vshrl.u32 %v2045, 7
        %v2047 = vsub.s32 2, %v2046
        %v2048 = vrot.slane %v2035, %v2047
        %v2049 = vlaneseq
        %v2050 = vshrl.u32 %v2049, 7
        %v2051 = vsub.s32 3, %v2050
        %v2052 = vrot.slane %v2035, %v2051
        %v2057 = vmul.f32 %v1370, %v2040
        %v2058 = vmul.f32 %v1369, %v2044
        %v2059 = vmul.f32 %v1368, %v2048
        %v2060 = vmul.f32 %v1371, %v2052
        %2061 = vst [vmem:[#allocation2 + $0x340] sm:$0xff] %v2057
        %2062 = vst [vmem:[#allocation2 + $0x348] sm:$0xff] %v2058
        %2063 = vst [vmem:[#allocation2 + $0x350] sm:$0xff] %v2059
        %2064 = vst [vmem:[#allocation2 + $0x358] sm:$0xff] %v2060
        %v2065 = vld [vmem:[%s11] sm:$0xff]
        %v2066 = vld [vmem:[#allocation2] sm:$0xff]
        %v2067 = vld [vmem:[#allocation2 + $0x8] sm:$0xff]
        %v2068 = vld [vmem:[#allocation2 + $0x10] sm:$0xff]
        %v2069 = vld [vmem:[#allocation2 + $0x18] sm:$0xff]
        %v2070 = vld [vmem:[#allocation2 + $0x20] sm:$0xff]
        %v2071 = vld [vmem:[#allocation2 + $0x28] sm:$0xff]
        %v2072 = vld [vmem:[#allocation2 + $0x30] sm:$0xff]
        %v2073 = vld [vmem:[#allocation2 + $0x38] sm:$0xff]
        %v2074 = vld [vmem:[#allocation2 + $0x40] sm:$0xff]
        %v2075 = vld [vmem:[#allocation2 + $0x48] sm:$0xff]
        %v2076 = vld [vmem:[#allocation2 + $0x50] sm:$0xff]
        %v2077 = vld [vmem:[#allocation2 + $0x58] sm:$0xff]
        %v2078 = vld [vmem:[#allocation2 + $0x60] sm:$0xff]
        %v2079 = vld [vmem:[#allocation2 + $0x68] sm:$0xff]
        %v2080 = vld [vmem:[#allocation2 + $0x70] sm:$0xff]
        %v2081 = vld [vmem:[#allocation2 + $0x78] sm:$0xff]
        %v2082 = vld [vmem:[#allocation2 + $0x80] sm:$0xff]
        %v2083 = vld [vmem:[#allocation2 + $0x88] sm:$0xff]
        %v2084 = vld [vmem:[#allocation2 + $0x90] sm:$0xff]
        %v2085 = vld [vmem:[#allocation2 + $0x98] sm:$0xff]
        %v2086 = vld [vmem:[#allocation2 + $0xa0] sm:$0xff]
        %v2087 = vld [vmem:[#allocation2 + $0xa8] sm:$0xff]
        %v2088 = vld [vmem:[#allocation2 + $0xb0] sm:$0xff]
        %v2089 = vld [vmem:[#allocation2 + $0xb8] sm:$0xff]
        %v2090 = vld [vmem:[#allocation2 + $0xc0] sm:$0xff]
        %v2091 = vld [vmem:[#allocation2 + $0xc8] sm:$0xff]
        %v2092 = vld [vmem:[#allocation2 + $0xd0] sm:$0xff]
        %v2093 = vld [vmem:[#allocation2 + $0xd8] sm:$0xff]
        %v2094 = vld [vmem:[#allocation2 + $0xe0] sm:$0xff]
        %v2095 = vld [vmem:[#allocation2 + $0xe8] sm:$0xff]
        %v2096 = vld [vmem:[#allocation2 + $0xf0] sm:$0xff]
        %v2097 = vld [vmem:[#allocation2 + $0xf8] sm:$0xff]
        %v2098 = vld [vmem:[#allocation2 + $0x100] sm:$0xff]
        %v2099 = vld [vmem:[#allocation2 + $0x108] sm:$0xff]
        %v2100 = vld [vmem:[#allocation2 + $0x110] sm:$0xff]
        %v2101 = vld [vmem:[#allocation2 + $0x118] sm:$0xff]
        %v2102 = vld [vmem:[#allocation2 + $0x120] sm:$0xff]
        %v2103 = vld [vmem:[#allocation2 + $0x128] sm:$0xff]
        %v2104 = vld [vmem:[#allocation2 + $0x130] sm:$0xff]
        %v2105 = vld [vmem:[#allocation2 + $0x138] sm:$0xff]
        %v2106 = vld [vmem:[#allocation2 + $0x140] sm:$0xff]
        %v2107 = vld [vmem:[#allocation2 + $0x148] sm:$0xff]
        %v2108 = vld [vmem:[#allocation2 + $0x150] sm:$0xff]
        %v2109 = vld [vmem:[#allocation2 + $0x158] sm:$0xff]
        %v2110 = vld [vmem:[#allocation2 + $0x160] sm:$0xff]
        %v2111 = vld [vmem:[#allocation2 + $0x168] sm:$0xff]
        %v2112 = vld [vmem:[#allocation2 + $0x170] sm:$0xff]
        %v2113 = vld [vmem:[#allocation2 + $0x178] sm:$0xff]
        %v2114 = vld [vmem:[#allocation2 + $0x180] sm:$0xff]
        %v2115 = vld [vmem:[#allocation2 + $0x188] sm:$0xff]
        %v2116 = vld [vmem:[#allocation2 + $0x190] sm:$0xff]
        %v2117 = vld [vmem:[#allocation2 + $0x198] sm:$0xff]
        %v2118 = vld [vmem:[#allocation2 + $0x1a0] sm:$0xff]
        %v2119 = vld [vmem:[#allocation2 + $0x1a8] sm:$0xff]
        %v2120 = vld [vmem:[#allocation2 + $0x1b0] sm:$0xff]
        %v2121 = vld [vmem:[#allocation2 + $0x1b8] sm:$0xff]
        %v2122 = vld [vmem:[#allocation2 + $0x1c0] sm:$0xff]
        %v2123 = vld [vmem:[#allocation2 + $0x1c8] sm:$0xff]
        %v2124 = vld [vmem:[#allocation2 + $0x1d0] sm:$0xff]
        %v2125 = vld [vmem:[#allocation2 + $0x1d8] sm:$0xff]
        %v2126 = vld [vmem:[#allocation2 + $0x1e0] sm:$0xff]
        %v2127 = vld [vmem:[#allocation2 + $0x1e8] sm:$0xff]
        %v2128 = vld [vmem:[#allocation2 + $0x1f0] sm:$0xff]
        %v2129 = vld [vmem:[#allocation2 + $0x1f8] sm:$0xff]
        %v2130 = vld [vmem:[#allocation2 + $0x200] sm:$0xff]
        %v2131 = vld [vmem:[#allocation2 + $0x208] sm:$0xff]
        %v2132 = vld [vmem:[#allocation2 + $0x210] sm:$0xff]
        %v2133 = vld [vmem:[#allocation2 + $0x218] sm:$0xff]
        %v2134 = vld [vmem:[#allocation2 + $0x220] sm:$0xff]
        %v2135 = vld [vmem:[#allocation2 + $0x228] sm:$0xff]
        %v2136 = vld [vmem:[#allocation2 + $0x230] sm:$0xff]
        %v2137 = vld [vmem:[#allocation2 + $0x238] sm:$0xff]
        %v2138 = vld [vmem:[#allocation2 + $0x240] sm:$0xff]
        %v2139 = vld [vmem:[#allocation2 + $0x248] sm:$0xff]
        %v2140 = vld [vmem:[#allocation2 + $0x250] sm:$0xff]
        %v2141 = vld [vmem:[#allocation2 + $0x258] sm:$0xff]
        %v2142 = vld [vmem:[#allocation2 + $0x260] sm:$0xff]
        %v2143 = vld [vmem:[#allocation2 + $0x268] sm:$0xff]
        %v2144 = vld [vmem:[#allocation2 + $0x270] sm:$0xff]
        %v2145 = vld [vmem:[#allocation2 + $0x278] sm:$0xff]
        %v2146 = vld [vmem:[#allocation2 + $0x280] sm:$0xff]
        %v2147 = vld [vmem:[#allocation2 + $0x288] sm:$0xff]
        %v2148 = vld [vmem:[#allocation2 + $0x290] sm:$0xff]
        %v2149 = vld [vmem:[#allocation2 + $0x298] sm:$0xff]
        %v2150 = vld [vmem:[#allocation2 + $0x2a0] sm:$0xff]
        %v2151 = vld [vmem:[#allocation2 + $0x2a8] sm:$0xff]
        %v2152 = vld [vmem:[#allocation2 + $0x2b0] sm:$0xff]
        %v2153 = vld [vmem:[#allocation2 + $0x2b8] sm:$0xff]
        %v2154 = vld [vmem:[#allocation2 + $0x2c0] sm:$0xff]
        %v2155 = vld [vmem:[#allocation2 + $0x2c8] sm:$0xff]
        %v2156 = vld [vmem:[#allocation2 + $0x2d0] sm:$0xff]
        %v2157 = vld [vmem:[#allocation2 + $0x2d8] sm:$0xff]
        %v2158 = vld [vmem:[#allocation2 + $0x2e0] sm:$0xff]
        %v2159 = vld [vmem:[#allocation2 + $0x2e8] sm:$0xff]
        %v2160 = vld [vmem:[#allocation2 + $0x2f0] sm:$0xff]
        %v2161 = vld [vmem:[#allocation2 + $0x2f8] sm:$0xff]
        %v2162 = vld [vmem:[#allocation2 + $0x300] sm:$0xff]
        %v2163 = vld [vmem:[#allocation2 + $0x308] sm:$0xff]
        %v2164 = vld [vmem:[#allocation2 + $0x310] sm:$0xff]
        %v2165 = vld [vmem:[#allocation2 + $0x318] sm:$0xff]
        %v2166 = vld [vmem:[#allocation2 + $0x320] sm:$0xff]
        %v2167 = vld [vmem:[#allocation2 + $0x328] sm:$0xff]
        %v2168 = vld [vmem:[#allocation2 + $0x330] sm:$0xff]
        %v2169 = vld [vmem:[#allocation2 + $0x338] sm:$0xff]
        %v2170 = vld [vmem:[#allocation2 + $0x340] sm:$0xff]
        %v2171 = vld [vmem:[#allocation2 + $0x348] sm:$0xff]
        %v2172 = vld [vmem:[#allocation2 + $0x350] sm:$0xff]
        %v2173 = vld [vmem:[#allocation2 + $0x358] sm:$0xff]
        %v2174 = vpack.c.bf16 %v2070, %v2066
        %v2175 = vpack.c.bf16 %v2071, %v2067
        %v2176 = vpack.c.bf16 %v2072, %v2068
        %v2177 = vpack.c.bf16 %v2073, %v2069
        %v2178 = vpack.c.bf16 %v2078, %v2074
        %v2179 = vpack.c.bf16 %v2079, %v2075
        %v2180 = vpack.c.bf16 %v2080, %v2076
        %v2181 = vpack.c.bf16 %v2081, %v2077
        %v2182 = vpack.c.bf16 %v2086, %v2082
        %v2183 = vpack.c.bf16 %v2087, %v2083
        %v2184 = vpack.c.bf16 %v2088, %v2084
        %v2185 = vpack.c.bf16 %v2089, %v2085
        %v2186 = vpack.c.bf16 %v2094, %v2090
        %v2187 = vpack.c.bf16 %v2095, %v2091
        %v2188 = vpack.c.bf16 %v2096, %v2092
        %v2189 = vpack.c.bf16 %v2097, %v2093
        %v2190 = vpack.c.bf16 %v2102, %v2098
        %v2191 = vpack.c.bf16 %v2103, %v2099
        %v2192 = vpack.c.bf16 %v2104, %v2100
        %v2193 = vpack.c.bf16 %v2105, %v2101
        %v2194 = vpack.c.bf16 %v2110, %v2106
        %v2195 = vpack.c.bf16 %v2111, %v2107
        %v2196 = vpack.c.bf16 %v2112, %v2108
        %v2197 = vpack.c.bf16 %v2113, %v2109
        %v2198 = vpack.c.bf16 %v2118, %v2114
        %v2199 = vpack.c.bf16 %v2119, %v2115
        %v2200 = vpack.c.bf16 %v2120, %v2116
        %v2201 = vpack.c.bf16 %v2121, %v2117
        %v2202 = vpack.c.bf16 %v2126, %v2122
        %v2203 = vpack.c.bf16 %v2127, %v2123
        %v2204 = vpack.c.bf16 %v2128, %v2124
        %v2205 = vpack.c.bf16 %v2129, %v2125
        %v2206 = vpack.c.bf16 %v2134, %v2130
        %v2207 = vpack.c.bf16 %v2135, %v2131
        %v2208 = vpack.c.bf16 %v2136, %v2132
        %v2209 = vpack.c.bf16 %v2137, %v2133
        %v2210 = vpack.c.bf16 %v2142, %v2138
        %v2211 = vpack.c.bf16 %v2143, %v2139
        %v2212 = vpack.c.bf16 %v2144, %v2140
        %v2213 = vpack.c.bf16 %v2145, %v2141
        %v2214 = vpack.c.bf16 %v2150, %v2146
        %v2215 = vpack.c.bf16 %v2151, %v2147
        %v2216 = vpack.c.bf16 %v2152, %v2148
        %v2217 = vpack.c.bf16 %v2153, %v2149
        %v2218 = vpack.c.bf16 %v2158, %v2154
        %v2219 = vpack.c.bf16 %v2159, %v2155
        %v2220 = vpack.c.bf16 %v2160, %v2156
        %v2221 = vpack.c.bf16 %v2161, %v2157
        %v2222 = vpack.c.bf16 %v2166, %v2162
        %v2223 = vpack.c.bf16 %v2167, %v2163
        %v2224 = vpack.c.bf16 %v2168, %v2164
        %v2225 = vpack.c.bf16 %v2169, %v2165
        %v2226 = vpack.c.bf16 %v2170, %v2170
        %v2227 = vpack.c.bf16 %v2171, %v2171
        %v2228 = vpack.c.bf16 %v2172, %v2172
        %v2229 = vpack.c.bf16 %v2173, %v2173
        %v2231 = vunpack.c.l.b16 %v2065
        %v2232 = vunpack.c.h.b16 %v2065
        %v2233 = vpack.c.b16 %v2231, %v2231
        %v2234 = vpack.c.b16 %v2232, %v2232
        %vm2236 = vcmask 719872
        %v2238 = vsel %vm2236, %v2234, 0
        %v2241 = vsel %vm581, %v2226, 0
        %v2244 = vsel %vm581, %v2227, 0
        %v2247 = vsel %vm581, %v2228, 0
        %v2250 = vsel %vm581, %v2229, 0
        %2252 = vmatprep.subr.bf16.mxu0 %v2175
        %2253 = vmatpush1.bf16.msra.mxu0 %v2174
        %2254 = vmatprep.subr.bf16.mxu0 %v2179
        %2255 = vmatpush1.bf16.msra.mxu0 %v2178
        %2256 = vmatprep.subr.bf16.mxu0 %v2183
        %2257 = vmatpush1.bf16.msra.mxu0 %v2182
        %2258 = vmatprep.subr.bf16.mxu0 %v2187
        %2259 = vmatpush1.bf16.msra.mxu0 %v2186
        %2260 = vmatprep.subr.bf16.mxu0 %v2191
        %2261 = vmatpush1.bf16.msra.mxu0 %v2190
        %2262 = vmatprep.subr.bf16.mxu0 %v2195
        %2263 = vmatpush1.bf16.msra.mxu0 %v2194
        %2264 = vmatprep.subr.bf16.mxu0 %v2199
        %2265 = vmatpush1.bf16.msra.mxu0 %v2198
        %2266 = vmatprep.subr.bf16.mxu0 %v2203
        %2267 = vmatpush1.bf16.msra.mxu0 %v2202
        %2268 = vmatprep.subr.bf16.mxu0 %v2207
        %2269 = vmatpush1.bf16.msra.mxu0 %v2206
        %2270 = vmatprep.subr.bf16.mxu0 %v2211
        %2271 = vmatpush1.bf16.msra.mxu0 %v2210
        %2272 = vmatprep.subr.bf16.mxu0 %v2215
        %2273 = vmatpush1.bf16.msra.mxu0 %v2214
        %2274 = vmatprep.subr.bf16.mxu0 %v2219
        %2275 = vmatpush1.bf16.msra.mxu0 %v2218
        %2276 = vmatprep.subr.bf16.mxu0 %v2223
        %2277 = vmatpush1.bf16.msra.mxu0 %v2222
        %2278 = vmatprep.subr.bf16.mxu0 %v2244
        %2279 = vmatpush1.bf16.msra.mxu0 %v2241
        %2280 = vmatprep.subr.bf16.mxu0 0
        %2281 = vmatpush1.bf16.msra.mxu0 0
        %2282 = vmatprep.subr.bf16.mxu0 0
        %2283 = vmatpush1.bf16.msra.mxu0 0
        %2284 = vmatprep.mubr.bf16.mxu0 %v2238
        %2285 = vmatmul.mubr.bf16.gmra.mrb[0].mxu0 %v2233
        %v2286 = vpop.f32.mrb[0].mxu0
        %v2287 = vadd.f32 0.0, %v2286
        %v2288 = vpop.f32.mrb[0].mxu0
        %v2289 = vadd.f32 0.0, %v2288
        %v2290 = vpop.f32.mrb[0].mxu0
        %v2291 = vpop.f32.mrb[0].mxu0
        %2292 = vdwg.mxu0
        %2293 = vmatprep.subr.bf16.mxu0 %v2177
        %2294 = vmatpush1.bf16.msra.mxu0 %v2176
        %2295 = vmatprep.subr.bf16.mxu0 %v2181
        %2296 = vmatpush1.bf16.msra.mxu0 %v2180
        %2297 = vmatprep.subr.bf16.mxu0 %v2185
        %2298 = vmatpush1.bf16.msra.mxu0 %v2184
        %2299 = vmatprep.subr.bf16.mxu0 %v2189
        %2300 = vmatpush1.bf16.msra.mxu0 %v2188
        %2301 = vmatprep.subr.bf16.mxu0 %v2193
        %2302 = vmatpush1.bf16.msra.mxu0 %v2192
        %2303 = vmatprep.subr.bf16.mxu0 %v2197
        %2304 = vmatpush1.bf16.msra.mxu0 %v2196
        %2305 = vmatprep.subr.bf16.mxu0 %v2201
        %2306 = vmatpush1.bf16.msra.mxu0 %v2200
        %2307 = vmatprep.subr.bf16.mxu0 %v2205
        %2308 = vmatpush1.bf16.msra.mxu0 %v2204
        %2309 = vmatprep.subr.bf16.mxu0 %v2209
        %2310 = vmatpush1.bf16.msra.mxu0 %v2208
        %2311 = vmatprep.subr.bf16.mxu0 %v2213
        %2312 = vmatpush1.bf16.msra.mxu0 %v2212
        %2313 = vmatprep.subr.bf16.mxu0 %v2217
        %2314 = vmatpush1.bf16.msra.mxu0 %v2216
        %2315 = vmatprep.subr.bf16.mxu0 %v2221
        %2316 = vmatpush1.bf16.msra.mxu0 %v2220
        %2317 = vmatprep.subr.bf16.mxu0 %v2225
        %2318 = vmatpush1.bf16.msra.mxu0 %v2224
        %2319 = vmatprep.subr.bf16.mxu0 %v2250
        %2320 = vmatpush1.bf16.msra.mxu0 %v2247
        %2321 = vmatprep.subr.bf16.mxu0 0
        %2322 = vmatpush1.bf16.msra.mxu0 0
        %2323 = vmatprep.subr.bf16.mxu0 0
        %2324 = vmatpush1.bf16.msra.mxu0 0
        %2325 = vmatprep.mubr.bf16.mxu0 %v2238
        %2326 = vmatmul.mubr.bf16.gmra.mrb[0].mxu0 %v2233
        %v2327 = vpop.f32.mrb[0].mxu0
        %v2328 = vadd.f32 0.0, %v2327
        %v2329 = vpop.f32.mrb[0].mxu0
        %v2330 = vadd.f32 0.0, %v2329
        %v2331 = vpop.f32.mrb[0].mxu0
        %v2332 = vpop.f32.mrb[0].mxu0
        %2333 = vdwg.mxu0
        %v2334 = vld [vmem:[%s12] sm:$0xff]
        %2336 = vset.pattern.permute.xlu0 0
        %2337 = vperm.xlu0 %2336, %v2334
        %v2338 = vpop.permute.xlu0 %2337
        %v2340 = vmul.f32 %v2287, %v2338
        %v2341 = vmul.f32 %v2289, %v2338
        %v2342 = vmul.f32 %v2328, %v2338
        %v2343 = vmul.f32 %v2330, %v2338
        %v2344 = vld [vmem:[%s13] sm:$0xff]
        %2346 = vset.pattern.permute.xlu0 0
        %2347 = vperm.xlu0 %2346, %v2344
        %v2348 = vpop.permute.xlu0 %2347
        %v2350 = vadd.f32 %v2340, %v2348
        %v2351 = vadd.f32 %v2341, %v2348
        %v2352 = vadd.f32 %v2342, %v2348
        %v2353 = vadd.f32 %v2343, %v2348
        %v2354 = vxor.u32 %v2350, 2147483648
        %v2355 = vxor.u32 %v2351, 2147483648
        %v2356 = vxor.u32 %v2352, 2147483648
        %v2357 = vxor.u32 %v2353, 2147483648
        %v2358 = vmul.f32 %v2354, 1.442695
        %v2359 = vpow.pop %v2358
        %v2360 = vmul.f32 %v2355, 1.442695
        %v2361 = vpow.pop %v2360
        %v2362 = vmul.f32 %v2356, 1.442695
        %v2363 = vpow.pop %v2362
        %v2364 = vmul.f32 %v2357, 1.442695
        %v2365 = vpow.pop %v2364
        %v2366 = vadd.f32 %v2359, 1.0
        %v2367 = vadd.f32 %v2361, 1.0
        %v2368 = vadd.f32 %v2363, 1.0
        %v2369 = vadd.f32 %v2365, 1.0
        %v2370 = vrcp.pop %v2366
        %v2371 = vmul.f32 1.0, %v2370
        %v2372 = vrcp.pop %v2367
        %v2373 = vmul.f32 1.0, %v2372
        %v2374 = vrcp.pop %v2368
        %v2375 = vmul.f32 1.0, %v2374
        %v2376 = vrcp.pop %v2369
        %v2377 = vmul.f32 1.0, %v2376
        %v2378 = vmul.f32 %v2350, %v2371
        %v2379 = vmul.f32 %v2351, %v2373
        %v2380 = vmul.f32 %v2352, %v2375
        %v2381 = vmul.f32 %v2353, %v2377
        %v2382 = vadd.f32 %v718, %v2378
        %v2383 = vadd.f32 %v719, %v2379
        %v2384 = vadd.f32 %v720, %v2380
        %v2385 = vadd.f32 %v721, %v2381
        %2386 = vst [vmem:[#allocation3] sm:$0xff] %v2382
        %2387 = vst [vmem:[#allocation3 + $0x8] sm:$0xff] %v2383
        %2388 = vst [vmem:[#allocation3 + $0x10] sm:$0xff] %v2384
        %2389 = vst [vmem:[#allocation3 + $0x18] sm:$0xff] %v2385
        %2390 = vst [vmem:[#allocation3 + $0x20] sm:$0xff] %v852
        %2391 = vst [vmem:[#allocation3 + $0x28] sm:$0xff] %v853
        %2392 = vst [vmem:[#allocation3 + $0x30] sm:$0xff] %v854
        %2393 = vst [vmem:[#allocation3 + $0x38] sm:$0xff] %v855
        %v2394 = vld [vmem:[%s14] sm:$0xf]
        %v2395 = vld [vmem:[#allocation3] sm:$0xff]
        %v2396 = vld [vmem:[#allocation3 + $0x8] sm:$0xff]
        %v2397 = vld [vmem:[#allocation3 + $0x10] sm:$0xff]
        %v2398 = vld [vmem:[#allocation3 + $0x18] sm:$0xff]
        %v2399 = vld [vmem:[#allocation3 + $0x20] sm:$0xff]
        %v2400 = vld [vmem:[#allocation3 + $0x28] sm:$0xff]
        %v2401 = vld [vmem:[#allocation3 + $0x30] sm:$0xff]
        %v2402 = vld [vmem:[#allocation3 + $0x38] sm:$0xff]
        %v2403 = vpack.c.bf16 %v2399, %v2395
        %v2404 = vpack.c.bf16 %v2400, %v2396
        %v2405 = vpack.c.bf16 %v2401, %v2397
        %v2406 = vpack.c.bf16 %v2402, %v2398
        %vm2407 = vcmask 130048
        %v2409 = vsel %vm2407, %v2394, 0
        %2411 = vmatprep.subr.bf16.mxu0 %v2404
        %2412 = vmatpush1.bf16.msra.mxu0 %v2403
        %2413 = vmatprep.subr.bf16.mxu0 0
        %2414 = vmatpush1.bf16.msra.mxu0 0
        %2415 = vmatprep.subr.bf16.mxu0 0
        %2416 = vmatpush1.bf16.msra.mxu0 0
        %2417 = vmatprep.subr.bf16.mxu0 0
        %2418 = vmatpush1.bf16.msra.mxu0 0
        %2419 = vmatprep.subr.bf16.mxu0 0
        %2420 = vmatpush1.bf16.msra.mxu0 0
        %2421 = vmatprep.subr.bf16.mxu0 0
        %2422 = vmatpush1.bf16.msra.mxu0 0
        %2423 = vmatprep.subr.bf16.mxu0 0
        %2424 = vmatpush1.bf16.msra.mxu0 0
        %2425 = vmatprep.subr.bf16.mxu0 0
        %2426 = vmatpush1.bf16.msra.mxu0 0
        %2427 = vmatprep.subr.bf16.mxu0 0
        %2428 = vmatpush1.bf16.msra.mxu0 0
        %2429 = vmatprep.subr.bf16.mxu0 0
        %2430 = vmatpush1.bf16.msra.mxu0 0
        %2431 = vmatprep.subr.bf16.mxu0 0
        %2432 = vmatpush1.bf16.msra.mxu0 0
        %2433 = vmatprep.subr.bf16.mxu0 0
        %2434 = vmatpush1.bf16.msra.mxu0 0
        %2435 = vmatprep.subr.bf16.mxu0 0
        %2436 = vmatpush1.bf16.msra.mxu0 0
        %2437 = vmatprep.subr.bf16.mxu0 0
        %2438 = vmatpush1.bf16.msra.mxu0 0
        %2439 = vmatprep.subr.bf16.mxu0 0
        %2440 = vmatpush1.bf16.msra.mxu0 0
        %2441 = vmatprep.subr.bf16.mxu0 0
        %2442 = vmatpush1.bf16.msra.mxu0 0
        %2443 = vmatprep.mubr.bf16.mxu0 0
        %2444 = vmatmul.mubr.bf16.gmra.mrb[0].mxu0 %v2409
        %v2445 = vpop.f32.mrb[0].mxu0
        %v2446 = vadd.f32 0.0, %v2445
        %v2447 = vpop.f32.mrb[0].mxu0
        %v2448 = vadd.f32 0.0, %v2447
        %v2449 = vpop.f32.mrb[0].mxu0
        %v2450 = vpop.f32.mrb[0].mxu0
        %2451 = vdwg.mxu0
        %2452 = vmatprep.subr.bf16.mxu0 %v2406
        %2453 = vmatpush1.bf16.msra.mxu0 %v2405
        %2454 = vmatprep.subr.bf16.mxu0 0
        %2455 = vmatpush1.bf16.msra.mxu0 0
        %2456 = vmatprep.subr.bf16.mxu0 0
        %2457 = vmatpush1.bf16.msra.mxu0 0
        %2458 = vmatprep.subr.bf16.mxu0 0
        %2459 = vmatpush1.bf16.msra.mxu0 0
        %2460 = vmatprep.subr.bf16.mxu0 0
        %2461 = vmatpush1.bf16.msra.mxu0 0
        %2462 = vmatprep.subr.bf16.mxu0 0
        %2463 = vmatpush1.bf16.msra.mxu0 0
        %2464 = vmatprep.subr.bf16.mxu0 0
        %2465 = vmatpush1.bf16.msra.mxu0 0
        %2466 = vmatprep.subr.bf16.mxu0 0
        %2467 = vmatpush1.bf16.msra.mxu0 0
        %2468 = vmatprep.subr.bf16.mxu0 0
        %2469 = vmatpush1.bf16.msra.mxu0 0
        %2470 = vmatprep.subr.bf16.mxu0 0
        %2471 = vmatpush1.bf16.msra.mxu0 0
        %2472 = vmatprep.subr.bf16.mxu0 0
        %2473 = vmatpush1.bf16.msra.mxu0 0
        %2474 = vmatprep.subr.bf16.mxu0 0
        %2475 = vmatpush1.bf16.msra.mxu0 0
        %2476 = vmatprep.subr.bf16.mxu0 0
        %2477 = vmatpush1.bf16.msra.mxu0 0
        %2478 = vmatprep.subr.bf16.mxu0 0
        %2479 = vmatpush1.bf16.msra.mxu0 0
        %2480 = vmatprep.subr.bf16.mxu0 0
        %2481 = vmatpush1.bf16.msra.mxu0 0
        %2482 = vmatprep.subr.bf16.mxu0 0
        %2483 = vmatpush1.bf16.msra.mxu0 0
        %2484 = vmatprep.mubr.bf16.mxu0 0
        %2485 = vmatmul.mubr.bf16.gmra.mrb[0].mxu0 %v2409
        %v2486 = vpop.f32.mrb[0].mxu0
        %v2487 = vadd.f32 0.0, %v2486
        %v2488 = vpop.f32.mrb[0].mxu0
        %v2489 = vadd.f32 0.0, %v2488
        %v2490 = vpop.f32.mrb[0].mxu0
        %v2491 = vpop.f32.mrb[0].mxu0
        %2492 = vdwg.mxu0
        %v2493 = vld [vmem:[%s15] sm:$0xff]
        %2495 = vset.pattern.permute.xlu0 0
        %2496 = vperm.xlu0 %2495, %v2493
        %v2497 = vpop.permute.xlu0 %2496
        %v2499 = vmul.f32 %v2446, %v2497
        %v2500 = vmul.f32 %v2448, %v2497
        %v2501 = vmul.f32 %v2487, %v2497
        %v2502 = vmul.f32 %v2489, %v2497
        %v2503 = vld [vmem:[%s16] sm:$0xff]
        %2505 = vset.pattern.permute.xlu0 0
        %2506 = vperm.xlu0 %2505, %v2503
        %v2507 = vpop.permute.xlu0 %2506
        %v2509 = vadd.f32 %v2499, %v2507
        %v2510 = vadd.f32 %v2500, %v2507
        %v2511 = vadd.f32 %v2501, %v2507
        %v2512 = vadd.f32 %v2502, %v2507
        %v2513 = vxor.u32 %v2509, 2147483648
        %v2514 = vxor.u32 %v2510, 2147483648
        %v2515 = vxor.u32 %v2511, 2147483648
        %v2516 = vxor.u32 %v2512, 2147483648
        %v2517 = vmul.f32 %v2513, 1.442695
        %v2518 = vpow.pop %v2517
        %v2519 = vmul.f32 %v2514, 1.442695
        %v2520 = vpow.pop %v2519
        %v2521 = vmul.f32 %v2515, 1.442695
        %v2522 = vpow.pop %v2521
        %v2523 = vmul.f32 %v2516, 1.442695
        %v2524 = vpow.pop %v2523
        %v2525 = vadd.f32 %v2518, 1.0
        %v2526 = vadd.f32 %v2520, 1.0
        %v2527 = vadd.f32 %v2522, 1.0
        %v2528 = vadd.f32 %v2524, 1.0
        %v2529 = vrcp.pop %v2525
        %v2530 = vmul.f32 1.0, %v2529
        %v2531 = vrcp.pop %v2526
        %v2532 = vmul.f32 1.0, %v2531
        %v2533 = vrcp.pop %v2527
        %v2534 = vmul.f32 1.0, %v2533
        %v2535 = vrcp.pop %v2528
        %v2536 = vmul.f32 1.0, %v2535
        %v2537 = vmul.f32 %v2509, %v2530
        %v2538 = vmul.f32 %v2510, %v2532
        %v2539 = vmul.f32 %v2511, %v2534
        %v2540 = vmul.f32 %v2512, %v2536
        %2541 = vst [vmem:[%s557] sm:$0xff] %v2537
        %2542 = vst [vmem:[%s557 + $0x8] sm:$0xff] %v2538
        %2543 = vst [vmem:[%s557 + $0x10] sm:$0xff] %v2539
        %2544 = vst [vmem:[%s557 + $0x18] sm:$0xff] %v2540
        %s2545 = sand.u32 %s402, 1
        %s2546 = scalar_lea.sflag [#allocation6], %s2545
        %s2547 = sand.u32 %s402, 1
        %s2548 = smul.addr %s2547, 32
        %s2549 = scalar_lea.vmem [#allocation7], %s2548
        // Predicated region
        $region93: #{tpu_custom_call.1} parent=87 // pred_check
          %p2550 = pneg %p412
        $region94: #{tpu_custom_call.1} parent=87 // pred_check_branch
          %2552 = sbr.rel (%p2550) target = $region96
        $region95: #{tpu_custom_call.1} parent=87 // pred_region
          %s2553 = smul.u32 4, %s32
          %s2555 = ssub.s32 512, 512
          %2556 = vsyncadd %s2546, %s2555
          %s2557 = smul.addr %s2553, 128
          %s2558 = scalar_lea.hbm %s17, %s2557
          %s2560 = sshll.u32 %s2549, 4
          %s2561 = int_to_ptr.vmem [resolvable:$true] %s2560
          %2563 = dma.vmem_to_hbm [thread:$0]  %s2561, 512, %s2558, %s2546
        $region96: #{tpu_custom_call.1} parent=87 // pred_fallthru
          _
      $region88: #{tpu_custom_call.1} parent=5 // pred_fallthru
        _
      %p2564 = scmp.le.s32.totalorder 2, %s27
      // Predicated region
      $region97: #{tpu_custom_call.1} parent=5 // pred_check
        %p2565 = pneg %p2564
      $region98: #{tpu_custom_call.1} parent=5 // pred_check_branch
        %2567 = sbr.rel (%p2565) target = $region100
      $region99: #{tpu_custom_call.1} parent=5 // pred_region
        %s2568 = ssub.s32 %s27, 2
        // Predicated region
        $region101: #{tpu_custom_call.1} parent=99 // pred_check
          %p2569 = pneg %p418
        $region102: #{tpu_custom_call.1} parent=99 // pred_check_branch
          %2571 = sbr.rel (%p2569) target = $region104
        $region103: #{tpu_custom_call.1} parent=99 // pred_region
          %s2572 = sand.u32 %s403, 1
          %s2573 = scalar_lea.sflag [#allocation6], %s2572
          %s2574 = sand.u32 %s403, 1
          %s2575 = smul.addr %s2574, 32
          %s2576 = scalar_lea.vmem [#allocation7], %s2575
          %2577 = dma.done %s2573, 512
        $region104: #{tpu_custom_call.1} parent=99 // pred_fallthru
          _
      $region100: #{tpu_custom_call.1} parent=5 // pred_fallthru
        _
    $region6: #{tpu_custom_call.1} parent=1 // loop_footer
      %s31 = sadd.s32 1, %s27
    $region7: #{tpu_custom_call.1} parent=1 // loop_footer_branch
      %26 = sbr.rel target = $region3
    $region8: #{tpu_custom_call.1} parent=1 // loop_exit
      _
    %2578 = vsyncpa [#allocation5], 1
    %s2579 = scalar_lea.sflag [#allocation5], 1
    %2580 = vsyncpa %s2579, 1
    %2581 = vsyncpa [#allocation6], 1
    %s2582 = scalar_lea.sflag [#allocation6], 1
    %2583 = vsyncpa %s2582, 1

</llo_original>
